<compile_context>
chip_gen: v6e
topology: v6e:2x2x1
jax: 0.10.0
libtpu: 0.0.40
codegen_flags: <defaults>
</compile_context>

<pallas_src>
import jax
import jax.numpy as jnp
import numpy as np
from jax import lax
from jax.experimental import pallas as pl
from jax.experimental.pallas import tpu as pltpu

# Small, lane-dense synthetic config (real CLIP-L: S=77, D=768, H=12, L=12, FF=3072).
B, S, D, H, L, FF, VOCAB = 2, 8, 128, 4, 2, 512, 64
DH = D // H
EPS = 1e-5
SCALE = DH ** -0.5


def _layernorm(x, w, b):
    mu = jnp.mean(x, axis=-1, keepdims=True)
    var = jnp.mean(jnp.square(x - mu), axis=-1, keepdims=True)
    return (x - mu) * lax.rsqrt(var + EPS) * w + b


def _quick_gelu(x):
    return x * jax.nn.sigmoid(1.702 * x)


def clip_encoder_kernel(x_ref, mask_ref,
                        ln1w_ref, ln1b_ref,
                        qkvw_ref, qkvb_ref,
                        ow_ref, ob_ref,
                        ln2w_ref, ln2b_ref,
                        f1w_ref, f1b_ref, f2w_ref, f2b_ref,
                        lnfw_ref, lnfb_ref,
                        out_ref, ctx_ref):
    layer = pl.program_id(0)
    last = pl.num_programs(0) - 1

    @pl.when(layer == 0)
    def _():
        out_ref[...] = x_ref[...]          # residual stream lives in out_ref

    h = out_ref[...]                        # [B*S, D] f32

    # ---------------- self-attention block ----------------
    xn = _layernorm(h, ln1w_ref[0], ln1b_ref[0])
    xn_b = xn.astype(jnp.bfloat16)          # bf16 MXU operands, f32 accumulation
    # Fused QKV projection; SCALE pre-folded into the q-portion on the host.
    qkv = jnp.dot(xn_b, qkvw_ref[0], preferred_element_type=jnp.float32) + qkvb_ref[0]
    q = qkv[:, :D]                          # lane-aligned 128-wide slices
    k = qkv[:, D:2 * D]
    v = qkv[:, 2 * D:]

    neg_mask = mask_ref[...]                # [S, S] additive causal mask (0 / -1e30)

    # Static unroll over (batch, head): tiny trip count, each head's context is
    # written directly into the VMEM ctx scratch (no per-head lists / concat).
    for b in range(B):
        r0 = b * S
        for hh in range(H):
            c0 = hh * DH
            qh = q[r0:r0 + S, c0:c0 + DH]   # [S, DH] f32
            kh = k[r0:r0 + S, c0:c0 + DH]
            vh = v[r0:r0 + S, c0:c0 + DH]
            # scores = q @ k^T (no explicit transpose); softmax kept in f32.
            s = lax.dot_general(qh, kh, (((1,), (1,)), ((), ())),
                                preferred_element_type=jnp.float32)
            s = s + neg_mask
            s = s - jnp.max(s, axis=-1, keepdims=True)
            p = jnp.exp(s)
            p = p * pl.reciprocal(jnp.sum(p, axis=-1, keepdims=True), approx=True)
            ctx_ref[r0:r0 + S, c0:c0 + DH] = jnp.dot(
                p, vh, preferred_element_type=jnp.float32)

    attn = jnp.dot(ctx_ref[...].astype(jnp.bfloat16), ow_ref[0],
                   preferred_element_type=jnp.float32) + ob_ref[0]
    h = h + attn

    # ---------------- MLP block ----------------
    xn2 = _layernorm(h, ln2w_ref[0], ln2b_ref[0])
    ff = jnp.dot(xn2.astype(jnp.bfloat16), f1w_ref[0],
                 preferred_element_type=jnp.float32) + f1b_ref[0]
    ff = _quick_gelu(ff)                    # f32 elementwise
    ff = jnp.dot(ff.astype(jnp.bfloat16), f2w_ref[0],
                 preferred_element_type=jnp.float32) + f2b_ref[0]
    h = h + ff

    @pl.when(layer != last)
    def _():
        out_ref[...] = h

    @pl.when(layer == last)                 # single store on the last layer
    def _():
        out_ref[...] = _layernorm(h, lnfw_ref[...], lnfb_ref[...])


def clip_text_encoder(x_emb, kp):
    """x_emb: [B*S, D] f32 (token + position embeddings). Returns [B, S, D] f32."""
    def full_spec(shape):
        n = len(shape)
        return pl.BlockSpec(shape, lambda i, _n=n: (0,) * _n)

    def per_layer_spec(shape):  # arrays stacked as [L, *shape]
        n = len(shape)
        return pl.BlockSpec((1,) + shape, lambda i, _n=n: (i,) + (0,) * _n)

    # Additive causal mask, built once on the host (hoisted out of the kernel).
    mask = jnp.asarray(
        np.where(np.tril(np.ones((S, S), dtype=bool)), 0.0, -1e30).astype(np.float32))

    in_specs = [
        full_spec((B * S, D)),                                 # x (embeddings)
        full_spec((S, S)),                                     # causal mask
        per_layer_spec((1, D)), per_layer_spec((1, D)),        # ln1 w, b        (f32)
        per_layer_spec((D, 3 * D)), per_layer_spec((1, 3 * D)),  # fused qkv w (bf16), b (f32)
        per_layer_spec((D, D)), per_layer_spec((1, D)),        # o  w (bf16), b  (f32)
        per_layer_spec((1, D)), per_layer_spec((1, D)),        # ln2 w, b
        per_layer_spec((D, FF)), per_layer_spec((1, FF)),      # fc1 w, b
        per_layer_spec((FF, D)), per_layer_spec((1, D)),       # fc2 w, b
        full_spec((1, D)), full_spec((1, D)),                  # final ln w, b
    ]

    out = pl.pallas_call(
        clip_encoder_kernel,
        out_shape=jax.ShapeDtypeStruct((B * S, D), jnp.float32),
        grid_spec=pltpu.PrefetchScalarGridSpec(
            num_scalar_prefetch=0,
            grid=(L,),
            in_specs=in_specs,
            out_specs=full_spec((B * S, D)),
            scratch_shapes=[pltpu.VMEM((B * S, D), jnp.float32)],   # ctx scratch
        ),
        compiler_params=pltpu.CompilerParams(
            dimension_semantics=("arbitrary",),
            vmem_limit_bytes=32 * 1024 * 1024,
        ),
    )(x_emb, mask,
      kp["ln1_w"], kp["ln1_b"],
      kp["qkv_w"], kp["qkv_b"],
      kp["o_w"], kp["o_b"],
      kp["ln2_w"], kp["ln2_b"],
      kp["fc1_w"], kp["fc1_b"], kp["fc2_w"], kp["fc2_b"],
      kp["lnf_w"], kp["lnf_b"])
    return out.reshape(B, S, D)


def init_params(key):
    ks = jax.random.split(key, 20)
    nrm = lambda k, shape, s=0.02: s * jax.random.normal(k, shape, jnp.float32)
    return {
        "tok_emb": nrm(ks[0], (VOCAB, D)),
        "pos_emb": nrm(ks[1], (S, D)),
        "ln1_w": 1.0 + nrm(ks[2], (L, 1, D)),
        "ln1_b": nrm(ks[3], (L, 1, D)),
        "q_w": nrm(ks[4], (L, D, D)), "q_b": nrm(ks[5], (L, 1, D)),
        "k_w": nrm(ks[6], (L, D, D)), "k_b": nrm(ks[7], (L, 1, D)),
        "v_w": nrm(ks[8], (L, D, D)), "v_b": nrm(ks[9], (L, 1, D)),
        "o_w": nrm(ks[10], (L, D, D)), "o_b": nrm(ks[11], (L, 1, D)),
        "ln2_w": 1.0 + nrm(ks[12], (L, 1, D)),
        "ln2_b": nrm(ks[13], (L, 1, D)),
        "fc1_w": nrm(ks[14], (L, D, FF)), "fc1_b": nrm(ks[15], (L, 1, FF)),
        "fc2_w": nrm(ks[16], (L, FF, D)), "fc2_b": nrm(ks[17], (L, 1, D)),
        "lnf_w": 1.0 + nrm(ks[18], (1, D)),
        "lnf_b": nrm(ks[19], (1, D)),
    }


def prep_params(p):
    """Host-side prep: fold SCALE into q, fuse q/k/v into one [D, 3D] projection,
    store big weights in bf16 (biases / LN params stay f32)."""
    bf = lambda a: a.astype(jnp.bfloat16)
    qkv_w = jnp.concatenate([p["q_w"] * SCALE, p["k_w"], p["v_w"]], axis=-1)
    qkv_b = jnp.concatenate([p["q_b"] * SCALE, p["k_b"], p["v_b"]], axis=-1)
    return {
        "ln1_w": p["ln1_w"], "ln1_b": p["ln1_b"],
        "qkv_w": bf(qkv_w), "qkv_b": qkv_b,
        "o_w": bf(p["o_w"]), "o_b": p["o_b"],
        "ln2_w": p["ln2_w"], "ln2_b": p["ln2_b"],
        "fc1_w": bf(p["fc1_w"]), "fc1_b": p["fc1_b"],
        "fc2_w": bf(p["fc2_w"]), "fc2_b": p["fc2_b"],
        "lnf_w": p["lnf_w"], "lnf_b": p["lnf_b"],
    }


def reference(x_emb, kp):
    """Pure-JAX reference (HF CLIPTextModel semantics; SCALE pre-folded into the
    q-portion of the fused qkv weight, bf16-quantized weights upcast to f32 so
    only the kernel's in-flight bf16 activation casts / approx reciprocal differ)."""
    f32 = lambda a: a.astype(jnp.float32)
    h = x_emb
    causal = np.tril(np.ones((S, S), dtype=bool))
    for l in range(L):
        xn = _layernorm(h, kp["ln1_w"][l], kp["ln1_b"][l])
        qkv = xn @ f32(kp["qkv_w"][l]) + kp["qkv_b"][l]
        q, k, v = qkv[:, :D], qkv[:, D:2 * D], qkv[:, 2 * D:]
        q = q.reshape(B, S, H, DH).transpose(0, 2, 1, 3)
        k = k.reshape(B, S, H, DH).transpose(0, 2, 1, 3)
        v = v.reshape(B, S, H, DH).transpose(0, 2, 1, 3)
        sc = jnp.einsum("bhqd,bhkd->bhqk", q, k)
        sc = jnp.where(causal[None, None], sc, -1e30)
        pr = jax.nn.softmax(sc, axis=-1)
        ctx = jnp.einsum("bhqk,bhkd->bhqd", pr, v).transpose(0, 2, 1, 3).reshape(B * S, D)
        h = h + ctx @ f32(kp["o_w"][l]) + kp["o_b"][l]
        xn2 = _layernorm(h, kp["ln2_w"][l], kp["ln2_b"][l])
        ff = _quick_gelu(xn2 @ f32(kp["fc1_w"][l]) + kp["fc1_b"][l])
        h = h + ff @ f32(kp["fc2_w"][l]) + kp["fc2_b"][l]
    return _layernorm(h, kp["lnf_w"], kp["lnf_b"]).reshape(B, S, D)


if __name__ == "__main__":
    key = jax.random.PRNGKey(0)
    pkey, tkey = jax.random.split(key)
    params = init_params(pkey)
    kparams = prep_params(params)

    # TODO(synk): the HF CLIPTokenizer (string -> input_ids) and the pretrained
    # StableDiffusionUpscalePipeline checkpoint load have no Pallas equivalent;
    # deterministic token ids stand in for
    # tokenizer(text, padding='max_length', max_length=S)['input_ids'].
    tokens = jax.random.randint(tkey, (B, S), 0, VOCAB, dtype=jnp.int32)

    # Embedding gather (token + position) is glue in plain JAX.
    x_emb = (params["tok_emb"][tokens] + params["pos_emb"][None]).reshape(B * S, D)
    x_emb = x_emb.astype(jnp.float32)

    out = jax.block_until_ready(clip_text_encoder(x_emb, kparams))
    ref = jax.block_until_ready(reference(x_emb, kparams))

    assert out.shape == (B, S, D) and out.dtype == jnp.float32
    np.testing.assert_allclose(np.asarray(out), np.asarray(ref), rtol=1e-2, atol=1e-2)
    print("KERNEL_OK")
</pallas_src>

<mosaic_0001>
module attributes {stable_mosaic.version = 11 : i64} {
  func.func @clip_encoder_kernel(%arg0: i32, %arg1: memref<16x128xf32, #tpu.memory_space<vmem>>, %arg2: memref<8x8xf32, #tpu.memory_space<vmem>>, %arg3: memref<1x1x128xf32, #tpu.memory_space<vmem>>, %arg4: memref<1x1x128xf32, #tpu.memory_space<vmem>>, %arg5: memref<1x128x384xbf16, #tpu.memory_space<vmem>>, %arg6: memref<1x1x384xf32, #tpu.memory_space<vmem>>, %arg7: memref<1x128x128xbf16, #tpu.memory_space<vmem>>, %arg8: memref<1x1x128xf32, #tpu.memory_space<vmem>>, %arg9: memref<1x1x128xf32, #tpu.memory_space<vmem>>, %arg10: memref<1x1x128xf32, #tpu.memory_space<vmem>>, %arg11: memref<1x128x512xbf16, #tpu.memory_space<vmem>>, %arg12: memref<1x1x512xf32, #tpu.memory_space<vmem>>, %arg13: memref<1x512x128xbf16, #tpu.memory_space<vmem>>, %arg14: memref<1x1x128xf32, #tpu.memory_space<vmem>>, %arg15: memref<1x128xf32, #tpu.memory_space<vmem>>, %arg16: memref<1x128xf32, #tpu.memory_space<vmem>>, %arg17: memref<16x128xf32, #tpu.memory_space<vmem>>, %arg18: memref<16x128xf32, #tpu.memory_space<vmem>>) attributes {dimension_semantics = [#tpu.dimension_semantics<arbitrary>], iteration_bounds = array<i64: 2>, scalar_prefetch = 0 : i64, scratch_operands = 1 : i64, tpu.core_type = #tpu.core_type<tc>, window_params = [{pipeline_mode = #tpu.pipeline_mode<synchronous>, transform_indices = @transform_0, window_bounds = array<i64: 16, 128>}, {pipeline_mode = #tpu.pipeline_mode<synchronous>, transform_indices = @transform_1, window_bounds = array<i64: 8, 8>}, {transform_indices = @transform_2, window_bounds = array<i64: 1, 1, 128>}, {transform_indices = @transform_3, window_bounds = array<i64: 1, 1, 128>}, {transform_indices = @transform_4, window_bounds = array<i64: 1, 128, 384>}, {transform_indices = @transform_5, window_bounds = array<i64: 1, 1, 384>}, {transform_indices = @transform_6, window_bounds = array<i64: 1, 128, 128>}, {transform_indices = @transform_7, window_bounds = array<i64: 1, 1, 128>}, {transform_indices = @transform_8, window_bounds = array<i64: 1, 1, 128>}, {transform_indices = @transform_9, window_bounds = array<i64: 1, 1, 128>}, {transform_indices = @transform_10, window_bounds = array<i64: 1, 128, 512>}, {transform_indices = @transform_11, window_bounds = array<i64: 1, 1, 512>}, {transform_indices = @transform_12, window_bounds = array<i64: 1, 512, 128>}, {transform_indices = @transform_13, window_bounds = array<i64: 1, 1, 128>}, {pipeline_mode = #tpu.pipeline_mode<synchronous>, transform_indices = @transform_14, window_bounds = array<i64: 1, 128>}, {pipeline_mode = #tpu.pipeline_mode<synchronous>, transform_indices = @transform_15, window_bounds = array<i64: 1, 128>}, {pipeline_mode = #tpu.pipeline_mode<synchronous>, transform_indices = @transform_16, window_bounds = array<i64: 16, 128>}]} {
    %c0_i32 = arith.constant 0 : i32
    %0 = arith.cmpi eq, %arg0, %c0_i32 : i32
    %1 = arith.extui %0 : i1 to i32
    %c0_i32_0 = arith.constant 0 : i32
    %2 = arith.cmpi ne, %1, %c0_i32_0 : i32
    scf.if %2 {
      %c0_104 = arith.constant 0 : index
      %c0_105 = arith.constant 0 : index
      %245 = vector.load %arg1[%c0_104, %c0_105] : memref<16x128xf32, #tpu.memory_space<vmem>>, vector<16x128xf32>
      %c0_106 = arith.constant 0 : index
      %c0_107 = arith.constant 0 : index
      %246 = vector.load %arg17[%c0_106, %c0_107] : memref<16x128xf32, #tpu.memory_space<vmem>>, vector<16x128xf32>
      tpu.vector_store %arg17[%c0_106, %c0_107], %245 {strides = array<i32>} : memref<16x128xf32, #tpu.memory_space<vmem>>, vector<16x128xf32>,
    } else {
    }
    %c0 = arith.constant 0 : index
    %c0_1 = arith.constant 0 : index
    %3 = vector.load %arg17[%c0, %c0_1] : memref<16x128xf32, #tpu.memory_space<vmem>>, vector<16x128xf32>
    %c0_2 = arith.constant 0 : index
    %c0_3 = arith.constant 0 : index
    %c0_4 = arith.constant 0 : index
    %4 = vector.load %arg3[%c0_2, %c0_3, %c0_4] : memref<1x1x128xf32, #tpu.memory_space<vmem>>, vector<1x1x128xf32>
    %5 = vector.shape_cast %4 : vector<1x1x128xf32> to vector<1x128xf32>
    %c0_5 = arith.constant 0 : index
    %c0_6 = arith.constant 0 : index
    %c0_7 = arith.constant 0 : index
    %6 = vector.load %arg4[%c0_5, %c0_6, %c0_7] : memref<1x1x128xf32, #tpu.memory_space<vmem>>, vector<1x1x128xf32>
    %7 = vector.shape_cast %6 : vector<1x1x128xf32> to vector<1x128xf32>
    %cst = arith.constant dense<0.000000e+00> : vector<16xf32>
    %8 = vector.multi_reduction <add>, %3, %cst [1] : vector<16x128xf32> to vector<16xf32>
    %9 = vector.shape_cast %8 : vector<16xf32> to vector<16x1xf32>
    %cst_8 = arith.constant 1.280000e+02 : f32
    %10 = vector.broadcast %cst_8 : f32 to vector<16x1xf32>
    %11 = arith.divf %9, %10 : vector<16x1xf32>
    %12 = vector.broadcast %11 : vector<16x1xf32> to vector<16x128xf32>
    %13 = arith.subf %3, %12 : vector<16x128xf32>
    %14 = arith.mulf %13, %13 : vector<16x128xf32>
    %cst_9 = arith.constant dense<0.000000e+00> : vector<16xf32>
    %15 = vector.multi_reduction <add>, %14, %cst_9 [1] : vector<16x128xf32> to vector<16xf32>
    %16 = vector.shape_cast %15 : vector<16xf32> to vector<16x1xf32>
    %cst_10 = arith.constant 1.280000e+02 : f32
    %17 = vector.broadcast %cst_10 : f32 to vector<16x1xf32>
    %18 = arith.divf %16, %17 : vector<16x1xf32>
    %19 = vector.broadcast %11 : vector<16x1xf32> to vector<16x128xf32>
    %20 = arith.subf %3, %19 : vector<16x128xf32>
    %cst_11 = arith.constant 9.99999974E-6 : f32
    %21 = vector.broadcast %cst_11 : f32 to vector<16x1xf32>
    %22 = arith.addf %18, %21 : vector<16x1xf32>
    %23 = math.rsqrt %22 : vector<16x1xf32>
    %24 = vector.broadcast %23 : vector<16x1xf32> to vector<16x128xf32>
    %25 = arith.mulf %20, %24 : vector<16x128xf32>
    %26 = vector.broadcast %5 : vector<1x128xf32> to vector<16x128xf32>
    %27 = arith.mulf %25, %26 : vector<16x128xf32>
    %28 = vector.broadcast %7 : vector<1x128xf32> to vector<16x128xf32>
    %29 = arith.addf %27, %28 : vector<16x128xf32>
    %30 = arith.truncf %29 : vector<16x128xf32> to vector<16x128xbf16>
    %c0_12 = arith.constant 0 : index
    %c0_13 = arith.constant 0 : index
    %c0_14 = arith.constant 0 : index
    %31 = vector.load %arg5[%c0_12, %c0_13, %c0_14] : memref<1x128x384xbf16, #tpu.memory_space<vmem>>, vector<1x128x384xbf16>
    %32 = vector.shape_cast %31 : vector<1x128x384xbf16> to vector<128x384xbf16>
    %cst_15 = arith.constant dense<0.000000e+00> : vector<16x384xf32>
    %33 = tpu.matmul %30, %32, %cst_15 {dimension_numbers = #tpu.dot_dimension_numbers<[1], [0], [0], [1], [0, 0, 1, 1], [], []>} : vector<16x128xbf16>, vector<128x384xbf16>, vector<16x384xf32> -> vector<16x384xf32>
    %c0_16 = arith.constant 0 : index
    %c0_17 = arith.constant 0 : index
    %c0_18 = arith.constant 0 : index
    %34 = vector.load %arg6[%c0_16, %c0_17, %c0_18] : memref<1x1x384xf32, #tpu.memory_space<vmem>>, vector<1x1x384xf32>
    %35 = vector.shape_cast %34 : vector<1x1x384xf32> to vector<1x384xf32>
    %36 = vector.broadcast %35 : vector<1x384xf32> to vector<16x384xf32>
    %37 = arith.addf %33, %36 : vector<16x384xf32>
    %38 = vector.extract_strided_slice %37 {offsets = [0, 0], sizes = [16, 128], strides = [1, 1]} : vector<16x384xf32> to vector<16x128xf32>
    %39 = vector.extract_strided_slice %37 {offsets = [0, 128], sizes = [16, 128], strides = [1, 1]} : vector<16x384xf32> to vector<16x128xf32>
    %40 = vector.extract_strided_slice %37 {offsets = [0, 256], sizes = [16, 128], strides = [1, 1]} : vector<16x384xf32> to vector<16x128xf32>
    %c0_19 = arith.constant 0 : index
    %c0_20 = arith.constant 0 : index
    %41 = vector.load %arg2[%c0_19, %c0_20] : memref<8x8xf32, #tpu.memory_space<vmem>>, vector<8x8xf32>
    %42 = vector.extract_strided_slice %38 {offsets = [0, 0], sizes = [8, 32], strides = [1, 1]} : vector<16x128xf32> to vector<8x32xf32>
    %43 = vector.extract_strided_slice %39 {offsets = [0, 0], sizes = [8, 32], strides = [1, 1]} : vector<16x128xf32> to vector<8x32xf32>
    %44 = vector.extract_strided_slice %40 {offsets = [0, 0], sizes = [8, 32], strides = [1, 1]} : vector<16x128xf32> to vector<8x32xf32>
    %cst_21 = arith.constant dense<0.000000e+00> : vector<8x8xf32>
    %45 = tpu.matmul %42, %43, %cst_21 {dimension_numbers = #tpu.dot_dimension_numbers<[1], [1], [0], [0], [0, 0, 1, 0], [], []>} : vector<8x32xf32>, vector<8x32xf32>, vector<8x8xf32> -> vector<8x8xf32>
    %46 = arith.addf %45, %41 : vector<8x8xf32>
    %cst_22 = arith.constant dense<0xFF800000> : vector<8xf32>
    %47 = vector.multi_reduction <maximumf>, %46, %cst_22 [1] : vector<8x8xf32> to vector<8xf32>
    %48 = vector.shape_cast %47 : vector<8xf32> to vector<8x1xf32>
    %49 = vector.broadcast %48 : vector<8x1xf32> to vector<8x8xf32>
    %50 = arith.subf %46, %49 : vector<8x8xf32>
    %51 = math.exp %50 : vector<8x8xf32>
    %cst_23 = arith.constant dense<0.000000e+00> : vector<8xf32>
    %52 = vector.multi_reduction <add>, %51, %cst_23 [1] : vector<8x8xf32> to vector<8xf32>
    %53 = vector.shape_cast %52 : vector<8xf32> to vector<8x1xf32>
    %54 = tpu.reciprocal %53 {approx = true} : vector<8x1xf32> -> vector<8x1xf32>
    %55 = vector.broadcast %54 : vector<8x1xf32> to vector<8x8xf32>
    %56 = arith.mulf %51, %55 : vector<8x8xf32>
    %cst_24 = arith.constant dense<0.000000e+00> : vector<8x32xf32>
    %57 = tpu.matmul %56, %44, %cst_24 {dimension_numbers = #tpu.dot_dimension_numbers<[1], [0], [0], [1], [0, 0, 1, 1], [], []>} : vector<8x8xf32>, vector<8x32xf32>, vector<8x32xf32> -> vector<8x32xf32>
    %c0_25 = arith.constant 0 : index
    %c0_26 = arith.constant 0 : index
    %58 = vector.load %arg18[%c0_25, %c0_26] : memref<16x128xf32, #tpu.memory_space<vmem>>, vector<8x32xf32>
    tpu.vector_store %arg18[%c0_25, %c0_26], %57 {strides = array<i32>} : memref<16x128xf32, #tpu.memory_space<vmem>>, vector<8x32xf32>,
    %59 = vector.extract_strided_slice %38 {offsets = [0, 32], sizes = [8, 32], strides = [1, 1]} : vector<16x128xf32> to vector<8x32xf32>
    %60 = vector.extract_strided_slice %39 {offsets = [0, 32], sizes = [8, 32], strides = [1, 1]} : vector<16x128xf32> to vector<8x32xf32>
    %61 = vector.extract_strided_slice %40 {offsets = [0, 32], sizes = [8, 32], strides = [1, 1]} : vector<16x128xf32> to vector<8x32xf32>
    %cst_27 = arith.constant dense<0.000000e+00> : vector<8x8xf32>
    %62 = tpu.matmul %59, %60, %cst_27 {dimension_numbers = #tpu.dot_dimension_numbers<[1], [1], [0], [0], [0, 0, 1, 0], [], []>} : vector<8x32xf32>, vector<8x32xf32>, vector<8x8xf32> -> vector<8x8xf32>
    %63 = arith.addf %62, %41 : vector<8x8xf32>
    %cst_28 = arith.constant dense<0xFF800000> : vector<8xf32>
    %64 = vector.multi_reduction <maximumf>, %63, %cst_28 [1] : vector<8x8xf32> to vector<8xf32>
    %65 = vector.shape_cast %64 : vector<8xf32> to vector<8x1xf32>
    %66 = vector.broadcast %65 : vector<8x1xf32> to vector<8x8xf32>
    %67 = arith.subf %63, %66 : vector<8x8xf32>
    %68 = math.exp %67 : vector<8x8xf32>
    %cst_29 = arith.constant dense<0.000000e+00> : vector<8xf32>
    %69 = vector.multi_reduction <add>, %68, %cst_29 [1] : vector<8x8xf32> to vector<8xf32>
    %70 = vector.shape_cast %69 : vector<8xf32> to vector<8x1xf32>
    %71 = tpu.reciprocal %70 {approx = true} : vector<8x1xf32> -> vector<8x1xf32>
    %72 = vector.broadcast %71 : vector<8x1xf32> to vector<8x8xf32>
    %73 = arith.mulf %68, %72 : vector<8x8xf32>
    %cst_30 = arith.constant dense<0.000000e+00> : vector<8x32xf32>
    %74 = tpu.matmul %73, %61, %cst_30 {dimension_numbers = #tpu.dot_dimension_numbers<[1], [0], [0], [1], [0, 0, 1, 1], [], []>} : vector<8x8xf32>, vector<8x32xf32>, vector<8x32xf32> -> vector<8x32xf32>
    %c0_31 = arith.constant 0 : index
    %c32 = arith.constant 32 : index
    %75 = vector.load %arg18[%c0_31, %c32] : memref<16x128xf32, #tpu.memory_space<vmem>>, vector<8x32xf32>
    tpu.vector_store %arg18[%c0_31, %c32], %74 {strides = array<i32>} : memref<16x128xf32, #tpu.memory_space<vmem>>, vector<8x32xf32>,
    %76 = vector.extract_strided_slice %38 {offsets = [0, 64], sizes = [8, 32], strides = [1, 1]} : vector<16x128xf32> to vector<8x32xf32>
    %77 = vector.extract_strided_slice %39 {offsets = [0, 64], sizes = [8, 32], strides = [1, 1]} : vector<16x128xf32> to vector<8x32xf32>
    %78 = vector.extract_strided_slice %40 {offsets = [0, 64], sizes = [8, 32], strides = [1, 1]} : vector<16x128xf32> to vector<8x32xf32>
    %cst_32 = arith.constant dense<0.000000e+00> : vector<8x8xf32>
    %79 = tpu.matmul %76, %77, %cst_32 {dimension_numbers = #tpu.dot_dimension_numbers<[1], [1], [0], [0], [0, 0, 1, 0], [], []>} : vector<8x32xf32>, vector<8x32xf32>, vector<8x8xf32> -> vector<8x8xf32>
    %80 = arith.addf %79, %41 : vector<8x8xf32>
    %cst_33 = arith.constant dense<0xFF800000> : vector<8xf32>
    %81 = vector.multi_reduction <maximumf>, %80, %cst_33 [1] : vector<8x8xf32> to vector<8xf32>
    %82 = vector.shape_cast %81 : vector<8xf32> to vector<8x1xf32>
    %83 = vector.broadcast %82 : vector<8x1xf32> to vector<8x8xf32>
    %84 = arith.subf %80, %83 : vector<8x8xf32>
    %85 = math.exp %84 : vector<8x8xf32>
    %cst_34 = arith.constant dense<0.000000e+00> : vector<8xf32>
    %86 = vector.multi_reduction <add>, %85, %cst_34 [1] : vector<8x8xf32> to vector<8xf32>
    %87 = vector.shape_cast %86 : vector<8xf32> to vector<8x1xf32>
    %88 = tpu.reciprocal %87 {approx = true} : vector<8x1xf32> -> vector<8x1xf32>
    %89 = vector.broadcast %88 : vector<8x1xf32> to vector<8x8xf32>
    %90 = arith.mulf %85, %89 : vector<8x8xf32>
    %cst_35 = arith.constant dense<0.000000e+00> : vector<8x32xf32>
    %91 = tpu.matmul %90, %78, %cst_35 {dimension_numbers = #tpu.dot_dimension_numbers<[1], [0], [0], [1], [0, 0, 1, 1], [], []>} : vector<8x8xf32>, vector<8x32xf32>, vector<8x32xf32> -> vector<8x32xf32>
    %c0_36 = arith.constant 0 : index
    %c64 = arith.constant 64 : index
    %92 = vector.load %arg18[%c0_36, %c64] : memref<16x128xf32, #tpu.memory_space<vmem>>, vector<8x32xf32>
    tpu.vector_store %arg18[%c0_36, %c64], %91 {strides = array<i32>} : memref<16x128xf32, #tpu.memory_space<vmem>>, vector<8x32xf32>,
    %93 = vector.extract_strided_slice %38 {offsets = [0, 96], sizes = [8, 32], strides = [1, 1]} : vector<16x128xf32> to vector<8x32xf32>
    %94 = vector.extract_strided_slice %39 {offsets = [0, 96], sizes = [8, 32], strides = [1, 1]} : vector<16x128xf32> to vector<8x32xf32>
    %95 = vector.extract_strided_slice %40 {offsets = [0, 96], sizes = [8, 32], strides = [1, 1]} : vector<16x128xf32> to vector<8x32xf32>
    %cst_37 = arith.constant dense<0.000000e+00> : vector<8x8xf32>
    %96 = tpu.matmul %93, %94, %cst_37 {dimension_numbers = #tpu.dot_dimension_numbers<[1], [1], [0], [0], [0, 0, 1, 0], [], []>} : vector<8x32xf32>, vector<8x32xf32>, vector<8x8xf32> -> vector<8x8xf32>
    %97 = arith.addf %96, %41 : vector<8x8xf32>
    %cst_38 = arith.constant dense<0xFF800000> : vector<8xf32>
    %98 = vector.multi_reduction <maximumf>, %97, %cst_38 [1] : vector<8x8xf32> to vector<8xf32>
    %99 = vector.shape_cast %98 : vector<8xf32> to vector<8x1xf32>
    %100 = vector.broadcast %99 : vector<8x1xf32> to vector<8x8xf32>
    %101 = arith.subf %97, %100 : vector<8x8xf32>
    %102 = math.exp %101 : vector<8x8xf32>
    %cst_39 = arith.constant dense<0.000000e+00> : vector<8xf32>
    %103 = vector.multi_reduction <add>, %102, %cst_39 [1] : vector<8x8xf32> to vector<8xf32>
    %104 = vector.shape_cast %103 : vector<8xf32> to vector<8x1xf32>
    %105 = tpu.reciprocal %104 {approx = true} : vector<8x1xf32> -> vector<8x1xf32>
    %106 = vector.broadcast %105 : vector<8x1xf32> to vector<8x8xf32>
    %107 = arith.mulf %102, %106 : vector<8x8xf32>
    %cst_40 = arith.constant dense<0.000000e+00> : vector<8x32xf32>
    %108 = tpu.matmul %107, %95, %cst_40 {dimension_numbers = #tpu.dot_dimension_numbers<[1], [0], [0], [1], [0, 0, 1, 1], [], []>} : vector<8x8xf32>, vector<8x32xf32>, vector<8x32xf32> -> vector<8x32xf32>
    %c0_41 = arith.constant 0 : index
    %c96 = arith.constant 96 : index
    %109 = vector.load %arg18[%c0_41, %c96] : memref<16x128xf32, #tpu.memory_space<vmem>>, vector<8x32xf32>
    tpu.vector_store %arg18[%c0_41, %c96], %108 {strides = array<i32>} : memref<16x128xf32, #tpu.memory_space<vmem>>, vector<8x32xf32>,
    %110 = vector.extract_strided_slice %38 {offsets = [8, 0], sizes = [8, 32], strides = [1, 1]} : vector<16x128xf32> to vector<8x32xf32>
    %111 = vector.extract_strided_slice %39 {offsets = [8, 0], sizes = [8, 32], strides = [1, 1]} : vector<16x128xf32> to vector<8x32xf32>
    %112 = vector.extract_strided_slice %40 {offsets = [8, 0], sizes = [8, 32], strides = [1, 1]} : vector<16x128xf32> to vector<8x32xf32>
    %cst_42 = arith.constant dense<0.000000e+00> : vector<8x8xf32>
    %113 = tpu.matmul %110, %111, %cst_42 {dimension_numbers = #tpu.dot_dimension_numbers<[1], [1], [0], [0], [0, 0, 1, 0], [], []>} : vector<8x32xf32>, vector<8x32xf32>, vector<8x8xf32> -> vector<8x8xf32>
    %114 = arith.addf %113, %41 : vector<8x8xf32>
    %cst_43 = arith.constant dense<0xFF800000> : vector<8xf32>
    %115 = vector.multi_reduction <maximumf>, %114, %cst_43 [1] : vector<8x8xf32> to vector<8xf32>
    %116 = vector.shape_cast %115 : vector<8xf32> to vector<8x1xf32>
    %117 = vector.broadcast %116 : vector<8x1xf32> to vector<8x8xf32>
    %118 = arith.subf %114, %117 : vector<8x8xf32>
    %119 = math.exp %118 : vector<8x8xf32>
    %cst_44 = arith.constant dense<0.000000e+00> : vector<8xf32>
    %120 = vector.multi_reduction <add>, %119, %cst_44 [1] : vector<8x8xf32> to vector<8xf32>
    %121 = vector.shape_cast %120 : vector<8xf32> to vector<8x1xf32>
    %122 = tpu.reciprocal %121 {approx = true} : vector<8x1xf32> -> vector<8x1xf32>
    %123 = vector.broadcast %122 : vector<8x1xf32> to vector<8x8xf32>
    %124 = arith.mulf %119, %123 : vector<8x8xf32>
    %cst_45 = arith.constant dense<0.000000e+00> : vector<8x32xf32>
    %125 = tpu.matmul %124, %112, %cst_45 {dimension_numbers = #tpu.dot_dimension_numbers<[1], [0], [0], [1], [0, 0, 1, 1], [], []>} : vector<8x8xf32>, vector<8x32xf32>, vector<8x32xf32> -> vector<8x32xf32>
    %c8 = arith.constant 8 : index
    %c0_46 = arith.constant 0 : index
    %126 = vector.load %arg18[%c8, %c0_46] : memref<16x128xf32, #tpu.memory_space<vmem>>, vector<8x32xf32>
    tpu.vector_store %arg18[%c8, %c0_46], %125 {strides = array<i32>} : memref<16x128xf32, #tpu.memory_space<vmem>>, vector<8x32xf32>,
    %127 = vector.extract_strided_slice %38 {offsets = [8, 32], sizes = [8, 32], strides = [1, 1]} : vector<16x128xf32> to vector<8x32xf32>
    %128 = vector.extract_strided_slice %39 {offsets = [8, 32], sizes = [8, 32], strides = [1, 1]} : vector<16x128xf32> to vector<8x32xf32>
    %129 = vector.extract_strided_slice %40 {offsets = [8, 32], sizes = [8, 32], strides = [1, 1]} : vector<16x128xf32> to vector<8x32xf32>
    %cst_47 = arith.constant dense<0.000000e+00> : vector<8x8xf32>
    %130 = tpu.matmul %127, %128, %cst_47 {dimension_numbers = #tpu.dot_dimension_numbers<[1], [1], [0], [0], [0, 0, 1, 0], [], []>} : vector<8x32xf32>, vector<8x32xf32>, vector<8x8xf32> -> vector<8x8xf32>
    %131 = arith.addf %130, %41 : vector<8x8xf32>
    %cst_48 = arith.constant dense<0xFF800000> : vector<8xf32>
    %132 = vector.multi_reduction <maximumf>, %131, %cst_48 [1] : vector<8x8xf32> to vector<8xf32>
    %133 = vector.shape_cast %132 : vector<8xf32> to vector<8x1xf32>
    %134 = vector.broadcast %133 : vector<8x1xf32> to vector<8x8xf32>
    %135 = arith.subf %131, %134 : vector<8x8xf32>
    %136 = math.exp %135 : vector<8x8xf32>
    %cst_49 = arith.constant dense<0.000000e+00> : vector<8xf32>
    %137 = vector.multi_reduction <add>, %136, %cst_49 [1] : vector<8x8xf32> to vector<8xf32>
    %138 = vector.shape_cast %137 : vector<8xf32> to vector<8x1xf32>
    %139 = tpu.reciprocal %138 {approx = true} : vector<8x1xf32> -> vector<8x1xf32>
    %140 = vector.broadcast %139 : vector<8x1xf32> to vector<8x8xf32>
    %141 = arith.mulf %136, %140 : vector<8x8xf32>
    %cst_50 = arith.constant dense<0.000000e+00> : vector<8x32xf32>
    %142 = tpu.matmul %141, %129, %cst_50 {dimension_numbers = #tpu.dot_dimension_numbers<[1], [0], [0], [1], [0, 0, 1, 1], [], []>} : vector<8x8xf32>, vector<8x32xf32>, vector<8x32xf32> -> vector<8x32xf32>
    %c8_51 = arith.constant 8 : index
    %c32_52 = arith.constant 32 : index
    %143 = vector.load %arg18[%c8_51, %c32_52] : memref<16x128xf32, #tpu.memory_space<vmem>>, vector<8x32xf32>
    tpu.vector_store %arg18[%c8_51, %c32_52], %142 {strides = array<i32>} : memref<16x128xf32, #tpu.memory_space<vmem>>, vector<8x32xf32>,
    %144 = vector.extract_strided_slice %38 {offsets = [8, 64], sizes = [8, 32], strides = [1, 1]} : vector<16x128xf32> to vector<8x32xf32>
    %145 = vector.extract_strided_slice %39 {offsets = [8, 64], sizes = [8, 32], strides = [1, 1]} : vector<16x128xf32> to vector<8x32xf32>
    %146 = vector.extract_strided_slice %40 {offsets = [8, 64], sizes = [8, 32], strides = [1, 1]} : vector<16x128xf32> to vector<8x32xf32>
    %cst_53 = arith.constant dense<0.000000e+00> : vector<8x8xf32>
    %147 = tpu.matmul %144, %145, %cst_53 {dimension_numbers = #tpu.dot_dimension_numbers<[1], [1], [0], [0], [0, 0, 1, 0], [], []>} : vector<8x32xf32>, vector<8x32xf32>, vector<8x8xf32> -> vector<8x8xf32>
    %148 = arith.addf %147, %41 : vector<8x8xf32>
    %cst_54 = arith.constant dense<0xFF800000> : vector<8xf32>
    %149 = vector.multi_reduction <maximumf>, %148, %cst_54 [1] : vector<8x8xf32> to vector<8xf32>
    %150 = vector.shape_cast %149 : vector<8xf32> to vector<8x1xf32>
    %151 = vector.broadcast %150 : vector<8x1xf32> to vector<8x8xf32>
    %152 = arith.subf %148, %151 : vector<8x8xf32>
    %153 = math.exp %152 : vector<8x8xf32>
    %cst_55 = arith.constant dense<0.000000e+00> : vector<8xf32>
    %154 = vector.multi_reduction <add>, %153, %cst_55 [1] : vector<8x8xf32> to vector<8xf32>
    %155 = vector.shape_cast %154 : vector<8xf32> to vector<8x1xf32>
    %156 = tpu.reciprocal %155 {approx = true} : vector<8x1xf32> -> vector<8x1xf32>
    %157 = vector.broadcast %156 : vector<8x1xf32> to vector<8x8xf32>
    %158 = arith.mulf %153, %157 : vector<8x8xf32>
    %cst_56 = arith.constant dense<0.000000e+00> : vector<8x32xf32>
    %159 = tpu.matmul %158, %146, %cst_56 {dimension_numbers = #tpu.dot_dimension_numbers<[1], [0], [0], [1], [0, 0, 1, 1], [], []>} : vector<8x8xf32>, vector<8x32xf32>, vector<8x32xf32> -> vector<8x32xf32>
    %c8_57 = arith.constant 8 : index
    %c64_58 = arith.constant 64 : index
    %160 = vector.load %arg18[%c8_57, %c64_58] : memref<16x128xf32, #tpu.memory_space<vmem>>, vector<8x32xf32>
    tpu.vector_store %arg18[%c8_57, %c64_58], %159 {strides = array<i32>} : memref<16x128xf32, #tpu.memory_space<vmem>>, vector<8x32xf32>,
    %161 = vector.extract_strided_slice %38 {offsets = [8, 96], sizes = [8, 32], strides = [1, 1]} : vector<16x128xf32> to vector<8x32xf32>
    %162 = vector.extract_strided_slice %39 {offsets = [8, 96], sizes = [8, 32], strides = [1, 1]} : vector<16x128xf32> to vector<8x32xf32>
    %163 = vector.extract_strided_slice %40 {offsets = [8, 96], sizes = [8, 32], strides = [1, 1]} : vector<16x128xf32> to vector<8x32xf32>
    %cst_59 = arith.constant dense<0.000000e+00> : vector<8x8xf32>
    %164 = tpu.matmul %161, %162, %cst_59 {dimension_numbers = #tpu.dot_dimension_numbers<[1], [1], [0], [0], [0, 0, 1, 0], [], []>} : vector<8x32xf32>, vector<8x32xf32>, vector<8x8xf32> -> vector<8x8xf32>
    %165 = arith.addf %164, %41 : vector<8x8xf32>
    %cst_60 = arith.constant dense<0xFF800000> : vector<8xf32>
    %166 = vector.multi_reduction <maximumf>, %165, %cst_60 [1] : vector<8x8xf32> to vector<8xf32>
    %167 = vector.shape_cast %166 : vector<8xf32> to vector<8x1xf32>
    %168 = vector.broadcast %167 : vector<8x1xf32> to vector<8x8xf32>
    %169 = arith.subf %165, %168 : vector<8x8xf32>
    %170 = math.exp %169 : vector<8x8xf32>
    %cst_61 = arith.constant dense<0.000000e+00> : vector<8xf32>
    %171 = vector.multi_reduction <add>, %170, %cst_61 [1] : vector<8x8xf32> to vector<8xf32>
    %172 = vector.shape_cast %171 : vector<8xf32> to vector<8x1xf32>
    %173 = tpu.reciprocal %172 {approx = true} : vector<8x1xf32> -> vector<8x1xf32>
    %174 = vector.broadcast %173 : vector<8x1xf32> to vector<8x8xf32>
    %175 = arith.mulf %170, %174 : vector<8x8xf32>
    %cst_62 = arith.constant dense<0.000000e+00> : vector<8x32xf32>
    %176 = tpu.matmul %175, %163, %cst_62 {dimension_numbers = #tpu.dot_dimension_numbers<[1], [0], [0], [1], [0, 0, 1, 1], [], []>} : vector<8x8xf32>, vector<8x32xf32>, vector<8x32xf32> -> vector<8x32xf32>
    %c8_63 = arith.constant 8 : index
    %c96_64 = arith.constant 96 : index
    %177 = vector.load %arg18[%c8_63, %c96_64] : memref<16x128xf32, #tpu.memory_space<vmem>>, vector<8x32xf32>
    tpu.vector_store %arg18[%c8_63, %c96_64], %176 {strides = array<i32>} : memref<16x128xf32, #tpu.memory_space<vmem>>, vector<8x32xf32>,
    %c0_65 = arith.constant 0 : index
    %c0_66 = arith.constant 0 : index
    %178 = vector.load %arg18[%c0_65, %c0_66] : memref<16x128xf32, #tpu.memory_space<vmem>>, vector<16x128xf32>
    %179 = arith.truncf %178 : vector<16x128xf32> to vector<16x128xbf16>
    %c0_67 = arith.constant 0 : index
    %c0_68 = arith.constant 0 : index
    %c0_69 = arith.constant 0 : index
    %180 = vector.load %arg7[%c0_67, %c0_68, %c0_69] : memref<1x128x128xbf16, #tpu.memory_space<vmem>>, vector<1x128x128xbf16>
    %181 = vector.shape_cast %180 : vector<1x128x128xbf16> to vector<128x128xbf16>
    %cst_70 = arith.constant dense<0.000000e+00> : vector<16x128xf32>
    %182 = tpu.matmul %179, %181, %cst_70 {dimension_numbers = #tpu.dot_dimension_numbers<[1], [0], [0], [1], [0, 0, 1, 1], [], []>} : vector<16x128xbf16>, vector<128x128xbf16>, vector<16x128xf32> -> vector<16x128xf32>
    %c0_71 = arith.constant 0 : index
    %c0_72 = arith.constant 0 : index
    %c0_73 = arith.constant 0 : index
    %183 = vector.load %arg8[%c0_71, %c0_72, %c0_73] : memref<1x1x128xf32, #tpu.memory_space<vmem>>, vector<1x1x128xf32>
    %184 = vector.shape_cast %183 : vector<1x1x128xf32> to vector<1x128xf32>
    %185 = vector.broadcast %184 : vector<1x128xf32> to vector<16x128xf32>
    %186 = arith.addf %182, %185 : vector<16x128xf32>
    %187 = arith.addf %3, %186 : vector<16x128xf32>
    %c0_74 = arith.constant 0 : index
    %c0_75 = arith.constant 0 : index
    %c0_76 = arith.constant 0 : index
    %188 = vector.load %arg9[%c0_74, %c0_75, %c0_76] : memref<1x1x128xf32, #tpu.memory_space<vmem>>, vector<1x1x128xf32>
    %189 = vector.shape_cast %188 : vector<1x1x128xf32> to vector<1x128xf32>
    %c0_77 = arith.constant 0 : index
    %c0_78 = arith.constant 0 : index
    %c0_79 = arith.constant 0 : index
    %190 = vector.load %arg10[%c0_77, %c0_78, %c0_79] : memref<1x1x128xf32, #tpu.memory_space<vmem>>, vector<1x1x128xf32>
    %191 = vector.shape_cast %190 : vector<1x1x128xf32> to vector<1x128xf32>
    %cst_80 = arith.constant dense<0.000000e+00> : vector<16xf32>
    %192 = vector.multi_reduction <add>, %187, %cst_80 [1] : vector<16x128xf32> to vector<16xf32>
    %193 = vector.shape_cast %192 : vector<16xf32> to vector<16x1xf32>
    %cst_81 = arith.constant 1.280000e+02 : f32
    %194 = vector.broadcast %cst_81 : f32 to vector<16x1xf32>
    %195 = arith.divf %193, %194 : vector<16x1xf32>
    %196 = vector.broadcast %195 : vector<16x1xf32> to vector<16x128xf32>
    %197 = arith.subf %187, %196 : vector<16x128xf32>
    %198 = arith.mulf %197, %197 : vector<16x128xf32>
    %cst_82 = arith.constant dense<0.000000e+00> : vector<16xf32>
    %199 = vector.multi_reduction <add>, %198, %cst_82 [1] : vector<16x128xf32> to vector<16xf32>
    %200 = vector.shape_cast %199 : vector<16xf32> to vector<16x1xf32>
    %cst_83 = arith.constant 1.280000e+02 : f32
    %201 = vector.broadcast %cst_83 : f32 to vector<16x1xf32>
    %202 = arith.divf %200, %201 : vector<16x1xf32>
    %203 = vector.broadcast %195 : vector<16x1xf32> to vector<16x128xf32>
    %204 = arith.subf %187, %203 : vector<16x128xf32>
    %cst_84 = arith.constant 9.99999974E-6 : f32
    %205 = vector.broadcast %cst_84 : f32 to vector<16x1xf32>
    %206 = arith.addf %202, %205 : vector<16x1xf32>
    %207 = math.rsqrt %206 : vector<16x1xf32>
    %208 = vector.broadcast %207 : vector<16x1xf32> to vector<16x128xf32>
    %209 = arith.mulf %204, %208 : vector<16x128xf32>
    %210 = vector.broadcast %189 : vector<1x128xf32> to vector<16x128xf32>
    %211 = arith.mulf %209, %210 : vector<16x128xf32>
    %212 = vector.broadcast %191 : vector<1x128xf32> to vector<16x128xf32>
    %213 = arith.addf %211, %212 : vector<16x128xf32>
    %214 = arith.truncf %213 : vector<16x128xf32> to vector<16x128xbf16>
    %c0_85 = arith.constant 0 : index
    %c0_86 = arith.constant 0 : index
    %c0_87 = arith.constant 0 : index
    %215 = vector.load %arg11[%c0_85, %c0_86, %c0_87] : memref<1x128x512xbf16, #tpu.memory_space<vmem>>, vector<1x128x512xbf16>
    %216 = vector.shape_cast %215 : vector<1x128x512xbf16> to vector<128x512xbf16>
    %cst_88 = arith.constant dense<0.000000e+00> : vector<16x512xf32>
    %217 = tpu.matmul %214, %216, %cst_88 {dimension_numbers = #tpu.dot_dimension_numbers<[1], [0], [0], [1], [0, 0, 1, 1], [], []>} : vector<16x128xbf16>, vector<128x512xbf16>, vector<16x512xf32> -> vector<16x512xf32>
    %c0_89 = arith.constant 0 : index
    %c0_90 = arith.constant 0 : index
    %c0_91 = arith.constant 0 : index
    %218 = vector.load %arg12[%c0_89, %c0_90, %c0_91] : memref<1x1x512xf32, #tpu.memory_space<vmem>>, vector<1x1x512xf32>
    %219 = vector.shape_cast %218 : vector<1x1x512xf32> to vector<1x512xf32>
    %220 = vector.broadcast %219 : vector<1x512xf32> to vector<16x512xf32>
    %221 = arith.addf %217, %220 : vector<16x512xf32>
    %cst_92 = arith.constant 1.702000e+00 : f32
    %222 = vector.broadcast %cst_92 : f32 to vector<16x512xf32>
    %223 = arith.mulf %222, %221 : vector<16x512xf32>
    %224 = arith.negf %223 : vector<16x512xf32>
    %225 = math.exp %224 : vector<16x512xf32>
    %cst_93 = arith.constant 1.000000e+00 : f32
    %226 = vector.broadcast %cst_93 : f32 to vector<16x512xf32>
    %227 = arith.addf %226, %225 : vector<16x512xf32>
    %228 = arith.divf %226, %227 : vector<16x512xf32>
    %229 = arith.mulf %221, %228 : vector<16x512xf32>
    %230 = arith.truncf %229 : vector<16x512xf32> to vector<16x512xbf16>
    %c0_94 = arith.constant 0 : index
    %c0_95 = arith.constant 0 : index
    %c0_96 = arith.constant 0 : index
    %231 = vector.load %arg13[%c0_94, %c0_95, %c0_96] : memref<1x512x128xbf16, #tpu.memory_space<vmem>>, vector<1x512x128xbf16>
    %232 = vector.shape_cast %231 : vector<1x512x128xbf16> to vector<512x128xbf16>
    %cst_97 = arith.constant dense<0.000000e+00> : vector<16x128xf32>
    %233 = tpu.matmul %230, %232, %cst_97 {dimension_numbers = #tpu.dot_dimension_numbers<[1], [0], [0], [1], [0, 0, 1, 1], [], []>} : vector<16x512xbf16>, vector<512x128xbf16>, vector<16x128xf32> -> vector<16x128xf32>
    %c0_98 = arith.constant 0 : index
    %c0_99 = arith.constant 0 : index
    %c0_100 = arith.constant 0 : index
    %234 = vector.load %arg14[%c0_98, %c0_99, %c0_100] : memref<1x1x128xf32, #tpu.memory_space<vmem>>, vector<1x1x128xf32>
    %235 = vector.shape_cast %234 : vector<1x1x128xf32> to vector<1x128xf32>
    %236 = vector.broadcast %235 : vector<1x128xf32> to vector<16x128xf32>
    %237 = arith.addf %233, %236 : vector<16x128xf32>
    %238 = arith.addf %187, %237 : vector<16x128xf32>
    %c1_i32 = arith.constant 1 : i32
    %239 = arith.cmpi ne, %arg0, %c1_i32 : i32
    %240 = arith.extui %239 : i1 to i32
    %c0_i32_101 = arith.constant 0 : i32
    %241 = arith.cmpi ne, %240, %c0_i32_101 : i32
    scf.if %241 {
      %c0_104 = arith.constant 0 : index
      %c0_105 = arith.constant 0 : index
      %245 = vector.load %arg17[%c0_104, %c0_105] : memref<16x128xf32, #tpu.memory_space<vmem>>, vector<16x128xf32>
      tpu.vector_store %arg17[%c0_104, %c0_105], %238 {strides = array<i32>} : memref<16x128xf32, #tpu.memory_space<vmem>>, vector<16x128xf32>,
    } else {
    }
    %c1_i32_102 = arith.constant 1 : i32
    %242 = arith.cmpi eq, %arg0, %c1_i32_102 : i32
    %243 = arith.extui %242 : i1 to i32
    %c0_i32_103 = arith.constant 0 : i32
    %244 = arith.cmpi ne, %243, %c0_i32_103 : i32
    scf.if %244 {
      %c0_104 = arith.constant 0 : index
      %c0_105 = arith.constant 0 : index
      %245 = vector.load %arg15[%c0_104, %c0_105] : memref<1x128xf32, #tpu.memory_space<vmem>>, vector<1x128xf32>
      %c0_106 = arith.constant 0 : index
      %c0_107 = arith.constant 0 : index
      %246 = vector.load %arg16[%c0_106, %c0_107] : memref<1x128xf32, #tpu.memory_space<vmem>>, vector<1x128xf32>
      %cst_108 = arith.constant dense<0.000000e+00> : vector<16xf32>
      %247 = vector.multi_reduction <add>, %238, %cst_108 [1] : vector<16x128xf32> to vector<16xf32>
      %248 = vector.shape_cast %247 : vector<16xf32> to vector<16x1xf32>
      %cst_109 = arith.constant 1.280000e+02 : f32
      %249 = vector.broadcast %cst_109 : f32 to vector<16x1xf32>
      %250 = arith.divf %248, %249 : vector<16x1xf32>
      %251 = vector.broadcast %250 : vector<16x1xf32> to vector<16x128xf32>
      %252 = arith.subf %238, %251 : vector<16x128xf32>
      %253 = arith.mulf %252, %252 : vector<16x128xf32>
      %cst_110 = arith.constant dense<0.000000e+00> : vector<16xf32>
      %254 = vector.multi_reduction <add>, %253, %cst_110 [1] : vector<16x128xf32> to vector<16xf32>
      %255 = vector.shape_cast %254 : vector<16xf32> to vector<16x1xf32>
      %cst_111 = arith.constant 1.280000e+02 : f32
      %256 = vector.broadcast %cst_111 : f32 to vector<16x1xf32>
      %257 = arith.divf %255, %256 : vector<16x1xf32>
      %258 = vector.broadcast %250 : vector<16x1xf32> to vector<16x128xf32>
      %259 = arith.subf %238, %258 : vector<16x128xf32>
      %cst_112 = arith.constant 9.99999974E-6 : f32
      %260 = vector.broadcast %cst_112 : f32 to vector<16x1xf32>
      %261 = arith.addf %257, %260 : vector<16x1xf32>
      %262 = math.rsqrt %261 : vector<16x1xf32>
      %263 = vector.broadcast %262 : vector<16x1xf32> to vector<16x128xf32>
      %264 = arith.mulf %259, %263 : vector<16x128xf32>
      %265 = vector.broadcast %245 : vector<1x128xf32> to vector<16x128xf32>
      %266 = arith.mulf %264, %265 : vector<16x128xf32>
      %267 = vector.broadcast %246 : vector<1x128xf32> to vector<16x128xf32>
      %268 = arith.addf %266, %267 : vector<16x128xf32>
      %c0_113 = arith.constant 0 : index
      %c0_114 = arith.constant 0 : index
      %269 = vector.load %arg17[%c0_113, %c0_114] : memref<16x128xf32, #tpu.memory_space<vmem>>, vector<16x128xf32>
      tpu.vector_store %arg17[%c0_113, %c0_114], %268 {strides = array<i32>} : memref<16x128xf32, #tpu.memory_space<vmem>>, vector<16x128xf32>,
    } else {
    }
    return
  }
  func.func @transform_0(%arg0: i32) -> (i32, i32) {
    %c0_i32 = arith.constant 0 : i32
    %c0_i32_0 = arith.constant 0 : i32
    %c0_i32_1 = arith.constant 0 : i32
    return %c0_i32, %c0_i32_0 : i32, i32
  }
  func.func @transform_1(%arg0: i32) -> (i32, i32) {
    %c0_i32 = arith.constant 0 : i32
    %c0_i32_0 = arith.constant 0 : i32
    %c0_i32_1 = arith.constant 0 : i32
    return %c0_i32, %c0_i32_0 : i32, i32
  }
  func.func @transform_2(%arg0: i32) -> (i32, i32, i32) {
    %c0_i32 = arith.constant 0 : i32
    %c0_i32_0 = arith.constant 0 : i32
    %c0_i32_1 = arith.constant 0 : i32
    return %arg0, %c0_i32, %c0_i32_0 : i32, i32, i32
  }
  func.func @transform_3(%arg0: i32) -> (i32, i32, i32) {
    %c0_i32 = arith.constant 0 : i32
    %c0_i32_0 = arith.constant 0 : i32
    %c0_i32_1 = arith.constant 0 : i32
    return %arg0, %c0_i32, %c0_i32_0 : i32, i32, i32
  }
  func.func @transform_4(%arg0: i32) -> (i32, i32, i32) {
    %c0_i32 = arith.constant 0 : i32
    %c0_i32_0 = arith.constant 0 : i32
    %c0_i32_1 = arith.constant 0 : i32
    return %arg0, %c0_i32, %c0_i32_0 : i32, i32, i32
  }
  func.func @transform_5(%arg0: i32) -> (i32, i32, i32) {
    %c0_i32 = arith.constant 0 : i32
    %c0_i32_0 = arith.constant 0 : i32
    %c0_i32_1 = arith.constant 0 : i32
    return %arg0, %c0_i32, %c0_i32_0 : i32, i32, i32
  }
  func.func @transform_6(%arg0: i32) -> (i32, i32, i32) {
    %c0_i32 = arith.constant 0 : i32
    %c0_i32_0 = arith.constant 0 : i32
    %c0_i32_1 = arith.constant 0 : i32
    return %arg0, %c0_i32, %c0_i32_0 : i32, i32, i32
  }
  func.func @transform_7(%arg0: i32) -> (i32, i32, i32) {
    %c0_i32 = arith.constant 0 : i32
    %c0_i32_0 = arith.constant 0 : i32
    %c0_i32_1 = arith.constant 0 : i32
    return %arg0, %c0_i32, %c0_i32_0 : i32, i32, i32
  }
  func.func @transform_8(%arg0: i32) -> (i32, i32, i32) {
    %c0_i32 = arith.constant 0 : i32
    %c0_i32_0 = arith.constant 0 : i32
    %c0_i32_1 = arith.constant 0 : i32
    return %arg0, %c0_i32, %c0_i32_0 : i32, i32, i32
  }
  func.func @transform_9(%arg0: i32) -> (i32, i32, i32) {
    %c0_i32 = arith.constant 0 : i32
    %c0_i32_0 = arith.constant 0 : i32
    %c0_i32_1 = arith.constant 0 : i32
    return %arg0, %c0_i32, %c0_i32_0 : i32, i32, i32
  }
  func.func @transform_10(%arg0: i32) -> (i32, i32, i32) {
    %c0_i32 = arith.constant 0 : i32
    %c0_i32_0 = arith.constant 0 : i32
    %c0_i32_1 = arith.constant 0 : i32
    return %arg0, %c0_i32, %c0_i32_0 : i32, i32, i32
  }
  func.func @transform_11(%arg0: i32) -> (i32, i32, i32) {
    %c0_i32 = arith.constant 0 : i32
    %c0_i32_0 = arith.constant 0 : i32
    %c0_i32_1 = arith.constant 0 : i32
    return %arg0, %c0_i32, %c0_i32_0 : i32, i32, i32
  }
  func.func @transform_12(%arg0: i32) -> (i32, i32, i32) {
    %c0_i32 = arith.constant 0 : i32
    %c0_i32_0 = arith.constant 0 : i32
    %c0_i32_1 = arith.constant 0 : i32
    return %arg0, %c0_i32, %c0_i32_0 : i32, i32, i32
  }
  func.func @transform_13(%arg0: i32) -> (i32, i32, i32) {
    %c0_i32 = arith.constant 0 : i32
    %c0_i32_0 = arith.constant 0 : i32
    %c0_i32_1 = arith.constant 0 : i32
    return %arg0, %c0_i32, %c0_i32_0 : i32, i32, i32
  }
  func.func @transform_14(%arg0: i32) -> (i32, i32) {
    %c0_i32 = arith.constant 0 : i32
    %c0_i32_0 = arith.constant 0 : i32
    %c0_i32_1 = arith.constant 0 : i32
    return %c0_i32, %c0_i32_0 : i32, i32
  }
  func.func @transform_15(%arg0: i32) -> (i32, i32) {
    %c0_i32 = arith.constant 0 : i32
    %c0_i32_0 = arith.constant 0 : i32
    %c0_i32_1 = arith.constant 0 : i32
    return %c0_i32, %c0_i32_0 : i32, i32
  }
  func.func @transform_16(%arg0: i32) -> (i32, i32) {
    %c0_i32 = arith.constant 0 : i32
    %c0_i32_0 = arith.constant 0 : i32
    %c0_i32_1 = arith.constant 0 : i32
    return %c0_i32, %c0_i32_0 : i32, i32
  }
}

</mosaic_0001>

<llo_original>
// kernel: tpu_custom_call.1
$region0: #{tpu_custom_call.1}
  #allocation0 [shape = 'u32[]', space=smem, size = 0x4, offset = 0x4, fixed_abs, tag = 'smem constant byte address 0x4 - core index']
  #allocation1 [shape = 'u32[144,128]{1,0:T(1,128)}', space=vmem, size = 0x12000, scoped, tag = 'internal scratch']
  #allocation2 [shape = 'f32[16,128]{1,0:T(8,128)}', space=vmem, size = 0x2000, scoped, tag = 'scratch operand']
  %s0 = inlined_call_operand.hbm [shape: f32[16,128], index: 0, kind: input, shape index: {}]
  %s1 = inlined_call_operand.hbm [shape: f32[8,8], index: 1, kind: input, shape index: {}]
  %s2 = inlined_call_operand.vmem [shape: f32[2,1,128], index: 2, kind: input, shape index: {}]
  %s3 = inlined_call_operand.hbm [shape: f32[2,1,128], index: 3, kind: input, shape index: {}]
  %s4 = inlined_call_operand.hbm [shape: bf16[2,128,384], index: 4, kind: input, shape index: {}]
  %s5 = inlined_call_operand.vmem [shape: f32[2,1,384], index: 5, kind: input, shape index: {}]
  %s6 = inlined_call_operand.hbm [shape: bf16[2,128,128], index: 6, kind: input, shape index: {}]
  %s7 = inlined_call_operand.hbm [shape: f32[2,1,128], index: 7, kind: input, shape index: {}]
  %s8 = inlined_call_operand.hbm [shape: f32[2,1,128], index: 8, kind: input, shape index: {}]
  %s9 = inlined_call_operand.hbm [shape: f32[2,1,128], index: 9, kind: input, shape index: {}]
  %s10 = inlined_call_operand.hbm [shape: bf16[2,128,512], index: 10, kind: input, shape index: {}]
  %s11 = inlined_call_operand.vmem [shape: f32[2,1,512], index: 11, kind: input, shape index: {}]
  %s12 = inlined_call_operand.hbm [shape: bf16[2,512,128], index: 12, kind: input, shape index: {}]
  %s13 = inlined_call_operand.vmem [shape: f32[2,1,128], index: 13, kind: input, shape index: {}]
  %s14 = inlined_call_operand.vmem [shape: f32[1,128], index: 14, kind: input, shape index: {}]
  %s15 = inlined_call_operand.vmem [shape: f32[1,128], index: 15, kind: input, shape index: {}]
  %s16 = inlined_call_operand.hbm [shape: f32[16,128], index: 16, kind: output, shape index: {}]
  %s17 = sld [smem:[#allocation0]]
  $region149: #{tpu_custom_call.1} parent=0
    _
  %s19 = ssub.s32 1, %s17
  %s20 = scalar_select 0, %s19, %s17
  $region1: #{tpu_custom_call.1} parent=0
    #allocation3 [shape = 'u8[8192]{0}', space=vmem, size = 0x2000, scoped, tag = 'input window, operand 0, single buffered']
    #allocation4 [shape = 's32[2]{0}', space=sflag, size = 0x8, scoped, tag = 'scoped memory for tpu_custom_call.1']
    #allocation5 [shape = 's32[2]{0}', space=sflag, size = 0x8, scoped, tag = 'scoped memory for tpu_custom_call.1']
    #allocation6 [shape = 'u8[4096]{0}', space=vmem, size = 0x1000, scoped, tag = 'input window, operand 1, single buffered']
    #allocation7 [shape = 's32[1]{0}', space=sflag, size = 0x4, scoped, tag = 'scoped memory for tpu_custom_call.1']
    #allocation8 [shape = 'u8[1024]{0}', space=vmem, size = 0x400, scoped, tag = 'input window, operand 3']
    #allocation9 [shape = 'u8[196608]{0}', space=vmem, size = 0x30000, scoped, tag = 'input window, operand 4']
    #allocation10 [shape = 'u8[65536]{0}', space=vmem, size = 0x10000, scoped, tag = 'input window, operand 6']
    #allocation11 [shape = 'u8[1024]{0}', space=vmem, size = 0x400, scoped, tag = 'input window, operand 7']
    #allocation12 [shape = 'u8[1024]{0}', space=vmem, size = 0x400, scoped, tag = 'input window, operand 8']
    #allocation13 [shape = 'u8[1024]{0}', space=vmem, size = 0x400, scoped, tag = 'input window, operand 9']
    #allocation14 [shape = 'u8[262144]{0}', space=vmem, size = 0x40000, scoped, tag = 'input window, operand 10']
    #allocation15 [shape = 'u8[262144]{0}', space=vmem, size = 0x40000, scoped, tag = 'input window, operand 12']
    #allocation16 [shape = 'u8[8192]{0}', space=vmem, size = 0x2000, scoped, tag = 'output window, operand 0, single buffered']
    %21 = vsyncpa [#allocation4], 0
    %22 = vsyncpa [#allocation7], 0
    %23 = vsyncpa [#allocation5], 0
    loop: start=0, step=1, limit=4
    $region2: #{tpu_custom_call.1} parent=1 // loop_pre_header
      _
    $region3: #{tpu_custom_call.1} parent=1 // loop_header
      %s25 = sphi 0, %s29
      %p26 = scmp.ge.s32.totalorder %s25, 4
      %s33 = sphi 0, %s33
      %s35 = sphi 0, %s33
      %s36 = sphi 0, %s35
      %s50 = sphi 0, %s36
      %s54 = sphi 0, %s54
      %s56 = sphi 0, %s54
      %s57 = sphi 0, %s56
      %s71 = sphi 0, %s57
      %s77 = sphi 0, %s79
      %s80 = sphi 0, %s77
      %s81 = sphi 0, %s80
      %s97 = sphi 0, %s81
      %s103 = sphi 0, %s105
      %s106 = sphi 0, %s103
      %s107 = sphi 0, %s106
      %s123 = sphi 0, %s107
      %s129 = sphi 0, %s131
      %s132 = sphi 0, %s129
      %s133 = sphi 0, %s132
      %s149 = sphi 0, %s133
      %s155 = sphi 0, %s157
      %s158 = sphi 0, %s155
      %s159 = sphi 0, %s158
      %s175 = sphi 0, %s159
      %s181 = sphi 0, %s183
      %s184 = sphi 0, %s181
      %s185 = sphi 0, %s184
      %s201 = sphi 0, %s185
      %s207 = sphi 0, %s209
      %s210 = sphi 0, %s207
      %s211 = sphi 0, %s210
      %s227 = sphi 0, %s211
      %s233 = sphi 0, %s235
      %s236 = sphi 0, %s233
      %s237 = sphi 0, %s236
      %s253 = sphi 0, %s237
      %s259 = sphi 0, %s261
      %s262 = sphi 0, %s259
      %s263 = sphi 0, %s262
      %s279 = sphi 0, %s263
      %s285 = sphi 0, %s287
      %s288 = sphi 0, %s285
      %s289 = sphi 0, %s288
      %s305 = sphi 0, %s289
      %s311 = sphi 0, %s313
      %s314 = sphi 0, %s311
      %s315 = sphi 0, %s314
      %s331 = sphi 0, %s315
      %s337 = sphi 0, %s339
      %s340 = sphi 0, %s337
      %s341 = sphi 0, %s340
      %s357 = sphi 0, %s341
      %s363 = sphi 0, %s365
      %s366 = sphi 0, %s363
      %s367 = sphi 0, %s366
      %s383 = sphi 0, %s367
      %s387 = sphi 0, %s387
      %s389 = sphi 0, %s387
      %s390 = sphi 0, %s389
      %s404 = sphi 0, %s390
      %s408 = sphi 0, %s408
      %s410 = sphi 0, %s408
      %s411 = sphi 0, %s410
      %s425 = sphi 0, %s411
      %s429 = sphi 0, %s429
      %s431 = sphi 0, %s429
      %s432 = sphi 0, %s431
      %s446 = sphi 0, %s432
    $region4: #{tpu_custom_call.1} parent=1 // loop_header_branch
      %28 = sbr.rel (%p26) target = $region8
    $region5: #{tpu_custom_call.1} parent=1 // loop_body
      %s30 = ssub.s32 %s25, 1
      %s31 = ssub.s32 %s25, 2
      %s32 = sadd.s32 %s25, 1
      %s34 = sadd.s32 %s33, 1
      %p37 = scmp.eq.s32.totalorder %s25, 1
      %p38 = scmp.ne.s32.totalorder %s33, %s35
      %p39 = scmp.eq.s32.totalorder %s25, 0
      %p40 = por %p38, %p39
      %p41 = scmp.ne.s32.totalorder %s33, %s35
      %p42 = scmp.eq.s32.totalorder %s30, 1
      %p43 = por %p41, %p42
      %p44 = scmp.ne.s32.totalorder %s35, %s36
      %p45 = scmp.eq.s32.totalorder %s30, 0
      %p46 = por %p44, %p45
      %p47 = scmp.ne.s32.totalorder %s35, %s36
      %p48 = scmp.eq.s32.totalorder %s31, 1
      %p49 = por %p47, %p48
      %p51 = scmp.ne.s32.totalorder %s36, %s50
      %p52 = scmp.eq.s32.totalorder %s31, 0
      %p53 = por %p51, %p52
      %s55 = sadd.s32 %s54, 1
      %p58 = scmp.eq.s32.totalorder %s25, 1
      %p59 = scmp.ne.s32.totalorder %s54, %s56
      %p60 = scmp.eq.s32.totalorder %s25, 0
      %p61 = por %p59, %p60
      %p62 = scmp.ne.s32.totalorder %s54, %s56
      %p63 = scmp.eq.s32.totalorder %s30, 1
      %p64 = por %p62, %p63
      %p65 = scmp.ne.s32.totalorder %s56, %s57
      %p66 = scmp.eq.s32.totalorder %s30, 0
      %p67 = por %p65, %p66
      %p68 = scmp.ne.s32.totalorder %s56, %s57
      %p69 = scmp.eq.s32.totalorder %s31, 1
      %p70 = por %p68, %p69
      %p72 = scmp.ne.s32.totalorder %s57, %s71
      %p73 = scmp.eq.s32.totalorder %s31, 0
      %p74 = por %p72, %p73
      %s75 = ssub.s32 %s25, %s32
      %p76 = scmp.eq.s32.totalorder %s75, 0
      %s78 = sadd.s32 %s77, 1
      %s79 = scalar_select %p76, %s77, %s78
      %p82 = pneg %p76
      %p83 = scmp.eq.s32.totalorder %s25, 1
      %p84 = por %p82, %p83
      %p85 = scmp.ne.s32.totalorder %s77, %s80
      %p86 = scmp.eq.s32.totalorder %s25, 0
      %p87 = por %p85, %p86
      %p88 = scmp.ne.s32.totalorder %s77, %s80
      %p89 = scmp.eq.s32.totalorder %s30, 1
      %p90 = por %p88, %p89
      %p91 = scmp.ne.s32.totalorder %s80, %s81
      %p92 = scmp.eq.s32.totalorder %s30, 0
      %p93 = por %p91, %p92
      %p94 = scmp.ne.s32.totalorder %s80, %s81
      %p95 = scmp.eq.s32.totalorder %s31, 1
      %p96 = por %p94, %p95
      %p98 = scmp.ne.s32.totalorder %s81, %s97
      %p99 = scmp.eq.s32.totalorder %s31, 0
      %p100 = por %p98, %p99
      %s101 = ssub.s32 %s25, %s32
      %p102 = scmp.eq.s32.totalorder %s101, 0
      %s104 = sadd.s32 %s103, 1
      %s105 = scalar_select %p102, %s103, %s104
      %p108 = pneg %p102
      %p109 = scmp.eq.s32.totalorder %s25, 1
      %p110 = por %p108, %p109
      %p111 = scmp.ne.s32.totalorder %s103, %s106
      %p112 = scmp.eq.s32.totalorder %s25, 0
      %p113 = por %p111, %p112
      %p114 = scmp.ne.s32.totalorder %s103, %s106
      %p115 = scmp.eq.s32.totalorder %s30, 1
      %p116 = por %p114, %p115
      %p117 = scmp.ne.s32.totalorder %s106, %s107
      %p118 = scmp.eq.s32.totalorder %s30, 0
      %p119 = por %p117, %p118
      %p120 = scmp.ne.s32.totalorder %s106, %s107
      %p121 = scmp.eq.s32.totalorder %s31, 1
      %p122 = por %p120, %p121
      %p124 = scmp.ne.s32.totalorder %s107, %s123
      %p125 = scmp.eq.s32.totalorder %s31, 0
      %p126 = por %p124, %p125
      %s127 = ssub.s32 %s25, %s32
      %p128 = scmp.eq.s32.totalorder %s127, 0
      %s130 = sadd.s32 %s129, 1
      %s131 = scalar_select %p128, %s129, %s130
      %p134 = pneg %p128
      %p135 = scmp.eq.s32.totalorder %s25, 1
      %p136 = por %p134, %p135
      %p137 = scmp.ne.s32.totalorder %s129, %s132
      %p138 = scmp.eq.s32.totalorder %s25, 0
      %p139 = por %p137, %p138
      %p140 = scmp.ne.s32.totalorder %s129, %s132
      %p141 = scmp.eq.s32.totalorder %s30, 1
      %p142 = por %p140, %p141
      %p143 = scmp.ne.s32.totalorder %s132, %s133
      %p144 = scmp.eq.s32.totalorder %s30, 0
      %p145 = por %p143, %p144
      %p146 = scmp.ne.s32.totalorder %s132, %s133
      %p147 = scmp.eq.s32.totalorder %s31, 1
      %p148 = por %p146, %p147
      %p150 = scmp.ne.s32.totalorder %s133, %s149
      %p151 = scmp.eq.s32.totalorder %s31, 0
      %p152 = por %p150, %p151
      %s153 = ssub.s32 %s25, %s32
      %p154 = scmp.eq.s32.totalorder %s153, 0
      %s156 = sadd.s32 %s155, 1
      %s157 = scalar_select %p154, %s155, %s156
      %p160 = pneg %p154
      %p161 = scmp.eq.s32.totalorder %s25, 1
      %p162 = por %p160, %p161
      %p163 = scmp.ne.s32.totalorder %s155, %s158
      %p164 = scmp.eq.s32.totalorder %s25, 0
      %p165 = por %p163, %p164
      %p166 = scmp.ne.s32.totalorder %s155, %s158
      %p167 = scmp.eq.s32.totalorder %s30, 1
      %p168 = por %p166, %p167
      %p169 = scmp.ne.s32.totalorder %s158, %s159
      %p170 = scmp.eq.s32.totalorder %s30, 0
      %p171 = por %p169, %p170
      %p172 = scmp.ne.s32.totalorder %s158, %s159
      %p173 = scmp.eq.s32.totalorder %s31, 1
      %p174 = por %p172, %p173
      %p176 = scmp.ne.s32.totalorder %s159, %s175
      %p177 = scmp.eq.s32.totalorder %s31, 0
      %p178 = por %p176, %p177
      %s179 = ssub.s32 %s25, %s32
      %p180 = scmp.eq.s32.totalorder %s179, 0
      %s182 = sadd.s32 %s181, 1
      %s183 = scalar_select %p180, %s181, %s182
      %p186 = pneg %p180
      %p187 = scmp.eq.s32.totalorder %s25, 1
      %p188 = por %p186, %p187
      %p189 = scmp.ne.s32.totalorder %s181, %s184
      %p190 = scmp.eq.s32.totalorder %s25, 0
      %p191 = por %p189, %p190
      %p192 = scmp.ne.s32.totalorder %s181, %s184
      %p193 = scmp.eq.s32.totalorder %s30, 1
      %p194 = por %p192, %p193
      %p195 = scmp.ne.s32.totalorder %s184, %s185
      %p196 = scmp.eq.s32.totalorder %s30, 0
      %p197 = por %p195, %p196
      %p198 = scmp.ne.s32.totalorder %s184, %s185
      %p199 = scmp.eq.s32.totalorder %s31, 1
      %p200 = por %p198, %p199
      %p202 = scmp.ne.s32.totalorder %s185, %s201
      %p203 = scmp.eq.s32.totalorder %s31, 0
      %p204 = por %p202, %p203
      %s205 = ssub.s32 %s25, %s32
      %p206 = scmp.eq.s32.totalorder %s205, 0
      %s208 = sadd.s32 %s207, 1
      %s209 = scalar_select %p206, %s207, %s208
      %p212 = pneg %p206
      %p213 = scmp.eq.s32.totalorder %s25, 1
      %p214 = por %p212, %p213
      %p215 = scmp.ne.s32.totalorder %s207, %s210
      %p216 = scmp.eq.s32.totalorder %s25, 0
      %p217 = por %p215, %p216
      %p218 = scmp.ne.s32.totalorder %s207, %s210
      %p219 = scmp.eq.s32.totalorder %s30, 1
      %p220 = por %p218, %p219
      %p221 = scmp.ne.s32.totalorder %s210, %s211
      %p222 = scmp.eq.s32.totalorder %s30, 0
      %p223 = por %p221, %p222
      %p224 = scmp.ne.s32.totalorder %s210, %s211
      %p225 = scmp.eq.s32.totalorder %s31, 1
      %p226 = por %p224, %p225
      %p228 = scmp.ne.s32.totalorder %s211, %s227
      %p229 = scmp.eq.s32.totalorder %s31, 0
      %p230 = por %p228, %p229
      %s231 = ssub.s32 %s25, %s32
      %p232 = scmp.eq.s32.totalorder %s231, 0
      %s234 = sadd.s32 %s233, 1
      %s235 = scalar_select %p232, %s233, %s234
      %p238 = pneg %p232
      %p239 = scmp.eq.s32.totalorder %s25, 1
      %p240 = por %p238, %p239
      %p241 = scmp.ne.s32.totalorder %s233, %s236
      %p242 = scmp.eq.s32.totalorder %s25, 0
      %p243 = por %p241, %p242
      %p244 = scmp.ne.s32.totalorder %s233, %s236
      %p245 = scmp.eq.s32.totalorder %s30, 1
      %p246 = por %p244, %p245
      %p247 = scmp.ne.s32.totalorder %s236, %s237
      %p248 = scmp.eq.s32.totalorder %s30, 0
      %p249 = por %p247, %p248
      %p250 = scmp.ne.s32.totalorder %s236, %s237
      %p251 = scmp.eq.s32.totalorder %s31, 1
      %p252 = por %p250, %p251
      %p254 = scmp.ne.s32.totalorder %s237, %s253
      %p255 = scmp.eq.s32.totalorder %s31, 0
      %p256 = por %p254, %p255
      %s257 = ssub.s32 %s25, %s32
      %p258 = scmp.eq.s32.totalorder %s257, 0
      %s260 = sadd.s32 %s259, 1
      %s261 = scalar_select %p258, %s259, %s260
      %p264 = pneg %p258
      %p265 = scmp.eq.s32.totalorder %s25, 1
      %p266 = por %p264, %p265
      %p267 = scmp.ne.s32.totalorder %s259, %s262
      %p268 = scmp.eq.s32.totalorder %s25, 0
      %p269 = por %p267, %p268
      %p270 = scmp.ne.s32.totalorder %s259, %s262
      %p271 = scmp.eq.s32.totalorder %s30, 1
      %p272 = por %p270, %p271
      %p273 = scmp.ne.s32.totalorder %s262, %s263
      %p274 = scmp.eq.s32.totalorder %s30, 0
      %p275 = por %p273, %p274
      %p276 = scmp.ne.s32.totalorder %s262, %s263
      %p277 = scmp.eq.s32.totalorder %s31, 1
      %p278 = por %p276, %p277
      %p280 = scmp.ne.s32.totalorder %s263, %s279
      %p281 = scmp.eq.s32.totalorder %s31, 0
      %p282 = por %p280, %p281
      %s283 = ssub.s32 %s25, %s32
      %p284 = scmp.eq.s32.totalorder %s283, 0
      %s286 = sadd.s32 %s285, 1
      %s287 = scalar_select %p284, %s285, %s286
      %p290 = pneg %p284
      %p291 = scmp.eq.s32.totalorder %s25, 1
      %p292 = por %p290, %p291
      %p293 = scmp.ne.s32.totalorder %s285, %s288
      %p294 = scmp.eq.s32.totalorder %s25, 0
      %p295 = por %p293, %p294
      %p296 = scmp.ne.s32.totalorder %s285, %s288
      %p297 = scmp.eq.s32.totalorder %s30, 1
      %p298 = por %p296, %p297
      %p299 = scmp.ne.s32.totalorder %s288, %s289
      %p300 = scmp.eq.s32.totalorder %s30, 0
      %p301 = por %p299, %p300
      %p302 = scmp.ne.s32.totalorder %s288, %s289
      %p303 = scmp.eq.s32.totalorder %s31, 1
      %p304 = por %p302, %p303
      %p306 = scmp.ne.s32.totalorder %s289, %s305
      %p307 = scmp.eq.s32.totalorder %s31, 0
      %p308 = por %p306, %p307
      %s309 = ssub.s32 %s25, %s32
      %p310 = scmp.eq.s32.totalorder %s309, 0
      %s312 = sadd.s32 %s311, 1
      %s313 = scalar_select %p310, %s311, %s312
      %p316 = pneg %p310
      %p317 = scmp.eq.s32.totalorder %s25, 1
      %p318 = por %p316, %p317
      %p319 = scmp.ne.s32.totalorder %s311, %s314
      %p320 = scmp.eq.s32.totalorder %s25, 0
      %p321 = por %p319, %p320
      %p322 = scmp.ne.s32.totalorder %s311, %s314
      %p323 = scmp.eq.s32.totalorder %s30, 1
      %p324 = por %p322, %p323
      %p325 = scmp.ne.s32.totalorder %s314, %s315
      %p326 = scmp.eq.s32.totalorder %s30, 0
      %p327 = por %p325, %p326
      %p328 = scmp.ne.s32.totalorder %s314, %s315
      %p329 = scmp.eq.s32.totalorder %s31, 1
      %p330 = por %p328, %p329
      %p332 = scmp.ne.s32.totalorder %s315, %s331
      %p333 = scmp.eq.s32.totalorder %s31, 0
      %p334 = por %p332, %p333
      %s335 = ssub.s32 %s25, %s32
      %p336 = scmp.eq.s32.totalorder %s335, 0
      %s338 = sadd.s32 %s337, 1
      %s339 = scalar_select %p336, %s337, %s338
      %p342 = pneg %p336
      %p343 = scmp.eq.s32.totalorder %s25, 1
      %p344 = por %p342, %p343
      %p345 = scmp.ne.s32.totalorder %s337, %s340
      %p346 = scmp.eq.s32.totalorder %s25, 0
      %p347 = por %p345, %p346
      %p348 = scmp.ne.s32.totalorder %s337, %s340
      %p349 = scmp.eq.s32.totalorder %s30, 1
      %p350 = por %p348, %p349
      %p351 = scmp.ne.s32.totalorder %s340, %s341
      %p352 = scmp.eq.s32.totalorder %s30, 0
      %p353 = por %p351, %p352
      %p354 = scmp.ne.s32.totalorder %s340, %s341
      %p355 = scmp.eq.s32.totalorder %s31, 1
      %p356 = por %p354, %p355
      %p358 = scmp.ne.s32.totalorder %s341, %s357
      %p359 = scmp.eq.s32.totalorder %s31, 0
      %p360 = por %p358, %p359
      %s361 = ssub.s32 %s25, %s32
      %p362 = scmp.eq.s32.totalorder %s361, 0
      %s364 = sadd.s32 %s363, 1
      %s365 = scalar_select %p362, %s363, %s364
      %p368 = pneg %p362
      %p369 = scmp.eq.s32.totalorder %s25, 1
      %p370 = por %p368, %p369
      %p371 = scmp.ne.s32.totalorder %s363, %s366
      %p372 = scmp.eq.s32.totalorder %s25, 0
      %p373 = por %p371, %p372
      %p374 = scmp.ne.s32.totalorder %s363, %s366
      %p375 = scmp.eq.s32.totalorder %s30, 1
      %p376 = por %p374, %p375
      %p377 = scmp.ne.s32.totalorder %s366, %s367
      %p378 = scmp.eq.s32.totalorder %s30, 0
      %p379 = por %p377, %p378
      %p380 = scmp.ne.s32.totalorder %s366, %s367
      %p381 = scmp.eq.s32.totalorder %s31, 1
      %p382 = por %p380, %p381
      %p384 = scmp.ne.s32.totalorder %s367, %s383
      %p385 = scmp.eq.s32.totalorder %s31, 0
      %p386 = por %p384, %p385
      %s388 = sadd.s32 %s387, 1
      %p391 = scmp.eq.s32.totalorder %s25, 1
      %p392 = scmp.ne.s32.totalorder %s387, %s389
      %p393 = scmp.eq.s32.totalorder %s25, 0
      %p394 = por %p392, %p393
      %p395 = scmp.ne.s32.totalorder %s387, %s389
      %p396 = scmp.eq.s32.totalorder %s30, 1
      %p397 = por %p395, %p396
      %p398 = scmp.ne.s32.totalorder %s389, %s390
      %p399 = scmp.eq.s32.totalorder %s30, 0
      %p400 = por %p398, %p399
      %p401 = scmp.ne.s32.totalorder %s389, %s390
      %p402 = scmp.eq.s32.totalorder %s31, 1
      %p403 = por %p401, %p402
      %p405 = scmp.ne.s32.totalorder %s390, %s404
      %p406 = scmp.eq.s32.totalorder %s31, 0
      %p407 = por %p405, %p406
      %s409 = sadd.s32 %s408, 1
      %p412 = scmp.eq.s32.totalorder %s25, 1
      %p413 = scmp.ne.s32.totalorder %s408, %s410
      %p414 = scmp.eq.s32.totalorder %s25, 0
      %p415 = por %p413, %p414
      %p416 = scmp.ne.s32.totalorder %s408, %s410
      %p417 = scmp.eq.s32.totalorder %s30, 1
      %p418 = por %p416, %p417
      %p419 = scmp.ne.s32.totalorder %s410, %s411
      %p420 = scmp.eq.s32.totalorder %s30, 0
      %p421 = por %p419, %p420
      %p422 = scmp.ne.s32.totalorder %s410, %s411
      %p423 = scmp.eq.s32.totalorder %s31, 1
      %p424 = por %p422, %p423
      %p426 = scmp.ne.s32.totalorder %s411, %s425
      %p427 = scmp.eq.s32.totalorder %s31, 0
      %p428 = por %p426, %p427
      %s430 = sadd.s32 %s429, 1
      %p433 = scmp.eq.s32.totalorder %s25, 1
      %p434 = scmp.ne.s32.totalorder %s429, %s431
      %p435 = scmp.eq.s32.totalorder %s25, 0
      %p436 = por %p434, %p435
      %p437 = scmp.ne.s32.totalorder %s429, %s431
      %p438 = scmp.eq.s32.totalorder %s30, 1
      %p439 = por %p437, %p438
      %p440 = scmp.ne.s32.totalorder %s431, %s432
      %p441 = scmp.eq.s32.totalorder %s30, 0
      %p442 = por %p440, %p441
      %p443 = scmp.ne.s32.totalorder %s431, %s432
      %p444 = scmp.eq.s32.totalorder %s31, 1
      %p445 = por %p443, %p444
      %p447 = scmp.ne.s32.totalorder %s432, %s446
      %p448 = scmp.eq.s32.totalorder %s31, 0
      %p449 = por %p447, %p448
      %p450 = scmp.le.s32.totalorder 1, %s25
      %p451 = scmp.lt.s32.totalorder %s25, 3
      %p452 = pnand %p450, %p451
      %p453 = pneg %p452
      // Predicated region
      $region9: #{tpu_custom_call.1} parent=5 // pred_check
        _
      $region10: #{tpu_custom_call.1} parent=5 // pred_check_branch
        %455 = sbr.rel (%p452) target = $region12
      $region11: #{tpu_custom_call.1} parent=5 // pred_region
        %s456 = ssub.s32 %s25, 1
        // Predicated region
        $region13: #{tpu_custom_call.1} parent=11 // pred_check
          %p457 = pneg %p46
        $region14: #{tpu_custom_call.1} parent=11 // pred_check_branch
          %459 = sbr.rel (%p457) target = $region16
        $region15: #{tpu_custom_call.1} parent=11 // pred_region
          %s461 = ssub.s32 256, 256
          %462 = vsyncadd [#allocation4], %s461
          %s463 = sshll.u32 [#allocation3], 4
          %s464 = int_to_ptr.vmem [resolvable:$true] %s463
          %469 = dma.hbm_to_vmem [thread:$0]  %s0, 256, %s464, [#allocation4], 128, 128, 8
        $region16: #{tpu_custom_call.1} parent=11 // pred_fallthru
          _
        // Predicated region
        $region17: #{tpu_custom_call.1} parent=11 // pred_check
          %p470 = pneg %p67
        $region18: #{tpu_custom_call.1} parent=11 // pred_check_branch
          %472 = sbr.rel (%p470) target = $region20
        $region19: #{tpu_custom_call.1} parent=11 // pred_region
          %s474 = ssub.s32 128, 128
          %475 = vsyncadd [#allocation7], %s474
          %s477 = sshll.u32 [#allocation6], 4
          %s478 = int_to_ptr.vmem [resolvable:$true] %s477
          %480 = dma.hbm_to_vmem [thread:$0]  %s1, 128, %s478, [#allocation7]
        $region20: #{tpu_custom_call.1} parent=11 // pred_fallthru
          _
        // Predicated region
        $region21: #{tpu_custom_call.1} parent=11 // pred_check
          %p481 = pneg %p400
        $region22: #{tpu_custom_call.1} parent=11 // pred_check_branch
          %483 = sbr.rel (%p481) target = $region24
        $region23: #{tpu_custom_call.1} parent=11 // pred_region
          _
        $region24: #{tpu_custom_call.1} parent=11 // pred_fallthru
          _
        // Predicated region
        $region25: #{tpu_custom_call.1} parent=11 // pred_check
          %p484 = pneg %p421
        $region26: #{tpu_custom_call.1} parent=11 // pred_check_branch
          %486 = sbr.rel (%p484) target = $region28
        $region27: #{tpu_custom_call.1} parent=11 // pred_region
          _
        $region28: #{tpu_custom_call.1} parent=11 // pred_fallthru
          _
      $region12: #{tpu_custom_call.1} parent=5 // pred_fallthru
        _
      %p487 = scmp.lt.s32.totalorder %s25, 2
      // Predicated region
      $region29: #{tpu_custom_call.1} parent=5 // pred_check
        %p488 = pneg %p487
      $region30: #{tpu_custom_call.1} parent=5 // pred_check_branch
        %490 = sbr.rel (%p488) target = $region32
      $region31: #{tpu_custom_call.1} parent=5 // pred_region
        // Predicated region
        $region33: #{tpu_custom_call.1} parent=31 // pred_check
          %p491 = pneg %p87
        $region34: #{tpu_custom_call.1} parent=31 // pred_check_branch
          %493 = sbr.rel (%p491) target = $region36
        $region35: #{tpu_custom_call.1} parent=31 // pred_region
          %p494 = scmp.lt.s32.totalorder %s25, 1
          %s495 = scalar_select %p494, %s25, 1
          %s496 = scalar_lea.vmem %s2, %s495
        $region36: #{tpu_custom_call.1} parent=31 // pred_fallthru
          _
        // Predicated region
        $region37: #{tpu_custom_call.1} parent=31 // pred_check
          %p497 = pneg %p113
        $region38: #{tpu_custom_call.1} parent=31 // pred_check_branch
          %499 = sbr.rel (%p497) target = $region40
        $region39: #{tpu_custom_call.1} parent=31 // pred_region
          %s500 = sand.u32 %s25, 1
          %s501 = scalar_lea.sflag [#allocation4], %s500
          %s502 = sand.u32 %s103, 1
          %s503 = scalar_lea.vmem [#allocation8], %s502
          %s505 = ssub.s32 16, 16
          %506 = vsyncadd %s501, %s505
          %s507 = smul.addr %s25, 16
          %s508 = scalar_lea.hbm %s3, %s507
          %s510 = sshll.u32 %s503, 4
          %s511 = int_to_ptr.vmem [resolvable:$true] %s510
          %513 = dma.hbm_to_vmem [thread:$0]  %s508, 16, %s511, %s501
        $region40: #{tpu_custom_call.1} parent=31 // pred_fallthru
          _
        // Predicated region
        $region41: #{tpu_custom_call.1} parent=31 // pred_check
          %p514 = pneg %p139
        $region42: #{tpu_custom_call.1} parent=31 // pred_check_branch
          %516 = sbr.rel (%p514) target = $region44
        $region43: #{tpu_custom_call.1} parent=31 // pred_region
          %s517 = sand.u32 %s25, 1
          %s518 = scalar_lea.sflag [#allocation4], %s517
          %s519 = sand.u32 %s129, 1
          %s520 = smul.addr %s519, 192
          %s521 = scalar_lea.vmem [#allocation9], %s520
          %s523 = ssub.s32 3072, 3072
          %524 = vsyncadd %s518, %s523
          %s525 = smul.addr %s25, 48
          %s526 = smul.addr %s525, 64
          %s527 = scalar_lea.hbm %s4, %s526
          %s528 = sshll.u32 %s521, 4
          %s529 = int_to_ptr.vmem [resolvable:$true] %s528
          %534 = dma.hbm_to_vmem [thread:$0]  %s527, 3072, %s529, %s518, 192, 192, 12
        $region44: #{tpu_custom_call.1} parent=31 // pred_fallthru
          _
        // Predicated region
        $region45: #{tpu_custom_call.1} parent=31 // pred_check
          %p535 = pneg %p165
        $region46: #{tpu_custom_call.1} parent=31 // pred_check_branch
          %537 = sbr.rel (%p535) target = $region48
        $region47: #{tpu_custom_call.1} parent=31 // pred_region
          %p538 = scmp.lt.s32.totalorder %s25, 1
          %s539 = scalar_select %p538, %s25, 1
          %s540 = smul.addr %s539, 3
          %s541 = scalar_lea.vmem %s5, %s540
        $region48: #{tpu_custom_call.1} parent=31 // pred_fallthru
          _
        // Predicated region
        $region49: #{tpu_custom_call.1} parent=31 // pred_check
          %p542 = pneg %p191
        $region50: #{tpu_custom_call.1} parent=31 // pred_check_branch
          %544 = sbr.rel (%p542) target = $region52
        $region51: #{tpu_custom_call.1} parent=31 // pred_region
          %s545 = sand.u32 %s25, 1
          %s546 = scalar_lea.sflag [#allocation4], %s545
          %s547 = sand.u32 %s181, 1
          %s548 = smul.addr %s547, 64
          %s549 = scalar_lea.vmem [#allocation10], %s548
          %s551 = ssub.s32 1024, 1024
          %552 = vsyncadd %s546, %s551
          %s553 = smul.addr %s25, 16
          %s554 = smul.addr %s553, 64
          %s555 = scalar_lea.hbm %s6, %s554
          %s556 = sshll.u32 %s549, 4
          %s557 = int_to_ptr.vmem [resolvable:$true] %s556
          %562 = dma.hbm_to_vmem [thread:$0]  %s555, 1024, %s557, %s546, 64, 64, 4
        $region52: #{tpu_custom_call.1} parent=31 // pred_fallthru
          _
        // Predicated region
        $region53: #{tpu_custom_call.1} parent=31 // pred_check
          %p563 = pneg %p217
        $region54: #{tpu_custom_call.1} parent=31 // pred_check_branch
          %565 = sbr.rel (%p563) target = $region56
        $region55: #{tpu_custom_call.1} parent=31 // pred_region
          %s566 = sand.u32 %s25, 1
          %s567 = scalar_lea.sflag [#allocation4], %s566
          %s568 = sand.u32 %s207, 1
          %s569 = scalar_lea.vmem [#allocation11], %s568
          %s571 = ssub.s32 16, 16
          %572 = vsyncadd %s567, %s571
          %s573 = smul.addr %s25, 16
          %s574 = scalar_lea.hbm %s7, %s573
          %s576 = sshll.u32 %s569, 4
          %s577 = int_to_ptr.vmem [resolvable:$true] %s576
          %579 = dma.hbm_to_vmem [thread:$0]  %s574, 16, %s577, %s567
        $region56: #{tpu_custom_call.1} parent=31 // pred_fallthru
          _
        // Predicated region
        $region57: #{tpu_custom_call.1} parent=31 // pred_check
          %p580 = pneg %p243
        $region58: #{tpu_custom_call.1} parent=31 // pred_check_branch
          %582 = sbr.rel (%p580) target = $region60
        $region59: #{tpu_custom_call.1} parent=31 // pred_region
          %s583 = sand.u32 %s25, 1
          %s584 = scalar_lea.sflag [#allocation4], %s583
          %s585 = sand.u32 %s233, 1
          %s586 = scalar_lea.vmem [#allocation12], %s585
          %s588 = ssub.s32 16, 16
          %589 = vsyncadd %s584, %s588
          %s590 = smul.addr %s25, 16
          %s591 = scalar_lea.hbm %s8, %s590
          %s593 = sshll.u32 %s586, 4
          %s594 = int_to_ptr.vmem [resolvable:$true] %s593
          %596 = dma.hbm_to_vmem [thread:$0]  %s591, 16, %s594, %s584
        $region60: #{tpu_custom_call.1} parent=31 // pred_fallthru
          _
        // Predicated region
        $region61: #{tpu_custom_call.1} parent=31 // pred_check
          %p597 = pneg %p269
        $region62: #{tpu_custom_call.1} parent=31 // pred_check_branch
          %599 = sbr.rel (%p597) target = $region64
        $region63: #{tpu_custom_call.1} parent=31 // pred_region
          %s600 = sand.u32 %s25, 1
          %s601 = scalar_lea.sflag [#allocation4], %s600
          %s602 = sand.u32 %s259, 1
          %s603 = scalar_lea.vmem [#allocation13], %s602
          %s605 = ssub.s32 16, 16
          %606 = vsyncadd %s601, %s605
          %s607 = smul.addr %s25, 16
          %s608 = scalar_lea.hbm %s9, %s607
          %s610 = sshll.u32 %s603, 4
          %s611 = int_to_ptr.vmem [resolvable:$true] %s610
          %613 = dma.hbm_to_vmem [thread:$0]  %s608, 16, %s611, %s601
        $region64: #{tpu_custom_call.1} parent=31 // pred_fallthru
          _
        // Predicated region
        $region65: #{tpu_custom_call.1} parent=31 // pred_check
          %p614 = pneg %p295
        $region66: #{tpu_custom_call.1} parent=31 // pred_check_branch
          %616 = sbr.rel (%p614) target = $region68
        $region67: #{tpu_custom_call.1} parent=31 // pred_region
          %s617 = sand.u32 %s25, 1
          %s618 = scalar_lea.sflag [#allocation4], %s617
          %s619 = sand.u32 %s285, 1
          %s620 = smul.addr %s619, 256
          %s621 = scalar_lea.vmem [#allocation14], %s620
          %s623 = ssub.s32 4096, 4096
          %624 = vsyncadd %s618, %s623
          %s625 = smul.addr %s25, 64
          %s626 = smul.addr %s625, 64
          %s627 = scalar_lea.hbm %s10, %s626
          %s628 = sshll.u32 %s621, 4
          %s629 = int_to_ptr.vmem [resolvable:$true] %s628
          %634 = dma.hbm_to_vmem [thread:$0]  %s627, 4096, %s629, %s618, 256, 256, 16
        $region68: #{tpu_custom_call.1} parent=31 // pred_fallthru
          _
        // Predicated region
        $region69: #{tpu_custom_call.1} parent=31 // pred_check
          %p635 = pneg %p321
        $region70: #{tpu_custom_call.1} parent=31 // pred_check_branch
          %637 = sbr.rel (%p635) target = $region72
        $region71: #{tpu_custom_call.1} parent=31 // pred_region
          %p638 = scmp.lt.s32.totalorder %s25, 1
          %s639 = scalar_select %p638, %s25, 1
          %s640 = smul.addr %s639, 4
          %s641 = scalar_lea.vmem %s11, %s640
        $region72: #{tpu_custom_call.1} parent=31 // pred_fallthru
          _
        // Predicated region
        $region73: #{tpu_custom_call.1} parent=31 // pred_check
          %p642 = pneg %p347
        $region74: #{tpu_custom_call.1} parent=31 // pred_check_branch
          %644 = sbr.rel (%p642) target = $region76
        $region75: #{tpu_custom_call.1} parent=31 // pred_region
          %s645 = sand.u32 %s25, 1
          %s646 = scalar_lea.sflag [#allocation4], %s645
          %s647 = sand.u32 %s337, 1
          %s648 = smul.addr %s647, 256
          %s649 = scalar_lea.vmem [#allocation15], %s648
          %s651 = ssub.s32 4096, 4096
          %652 = vsyncadd %s646, %s651
          %s653 = smul.addr %s25, 64
          %s654 = smul.addr %s653, 64
          %s655 = scalar_lea.hbm %s12, %s654
          %s656 = sshll.u32 %s649, 4
          %s657 = int_to_ptr.vmem [resolvable:$true] %s656
          %662 = dma.hbm_to_vmem [thread:$0]  %s655, 4096, %s657, %s646, 64, 64, 4
        $region76: #{tpu_custom_call.1} parent=31 // pred_fallthru
          _
        // Predicated region
        $region77: #{tpu_custom_call.1} parent=31 // pred_check
          %p663 = pneg %p373
        $region78: #{tpu_custom_call.1} parent=31 // pred_check_branch
          %665 = sbr.rel (%p663) target = $region80
        $region79: #{tpu_custom_call.1} parent=31 // pred_region
          %p666 = scmp.lt.s32.totalorder %s25, 1
          %s667 = scalar_select %p666, %s25, 1
          %s668 = scalar_lea.vmem %s13, %s667
        $region80: #{tpu_custom_call.1} parent=31 // pred_fallthru
          _
      $region32: #{tpu_custom_call.1} parent=5 // pred_fallthru
        _
      %p669 = scmp.le.s32.totalorder 1, %s25
      %p670 = scmp.lt.s32.totalorder %s25, 3
      %p671 = pnand %p669, %p670
      %p672 = pneg %p671
      // Predicated region
      $region81: #{tpu_custom_call.1} parent=5 // pred_check
        _
      $region82: #{tpu_custom_call.1} parent=5 // pred_check_branch
        %674 = sbr.rel (%p671) target = $region84
      $region83: #{tpu_custom_call.1} parent=5 // pred_region
        %s675 = ssub.s32 %s25, 1
        // Predicated region
        $region85: #{tpu_custom_call.1} parent=83 // pred_check
          %p676 = pneg %p46
        $region86: #{tpu_custom_call.1} parent=83 // pred_check_branch
          %678 = sbr.rel (%p676) target = $region88
        $region87: #{tpu_custom_call.1} parent=83 // pred_region
          %679 = dma.done [#allocation4], 256
        $region88: #{tpu_custom_call.1} parent=83 // pred_fallthru
          _
        // Predicated region
        $region89: #{tpu_custom_call.1} parent=83 // pred_check
          %p680 = pneg %p67
        $region90: #{tpu_custom_call.1} parent=83 // pred_check_branch
          %682 = sbr.rel (%p680) target = $region92
        $region91: #{tpu_custom_call.1} parent=83 // pred_region
          %683 = dma.done [#allocation7], 128
        $region92: #{tpu_custom_call.1} parent=83 // pred_fallthru
          _
        %s684 = sand.u32 %s30, 1
        %s685 = scalar_lea.sflag [#allocation4], %s684
        %s686 = sand.u32 %s106, 1
        %s687 = scalar_lea.vmem [#allocation8], %s686
        // Predicated region
        $region93: #{tpu_custom_call.1} parent=83 // pred_check
          %p688 = pneg %p119
        $region94: #{tpu_custom_call.1} parent=83 // pred_check_branch
          %690 = sbr.rel (%p688) target = $region96
        $region95: #{tpu_custom_call.1} parent=83 // pred_region
          %691 = dma.done %s685, 16
        $region96: #{tpu_custom_call.1} parent=83 // pred_fallthru
          _
        %s692 = sand.u32 %s30, 1
        %s693 = scalar_lea.sflag [#allocation4], %s692
        %s694 = sand.u32 %s132, 1
        %s695 = smul.addr %s694, 192
        %s696 = scalar_lea.vmem [#allocation9], %s695
        // Predicated region
        $region97: #{tpu_custom_call.1} parent=83 // pred_check
          %p697 = pneg %p145
        $region98: #{tpu_custom_call.1} parent=83 // pred_check_branch
          %699 = sbr.rel (%p697) target = $region100
        $region99: #{tpu_custom_call.1} parent=83 // pred_region
          %700 = dma.done %s693, 3072
        $region100: #{tpu_custom_call.1} parent=83 // pred_fallthru
          _
        %s701 = sand.u32 %s30, 1
        %s702 = scalar_lea.sflag [#allocation4], %s701
        %s703 = sand.u32 %s184, 1
        %s704 = smul.addr %s703, 64
        %s705 = scalar_lea.vmem [#allocation10], %s704
        // Predicated region
        $region101: #{tpu_custom_call.1} parent=83 // pred_check
          %p706 = pneg %p197
        $region102: #{tpu_custom_call.1} parent=83 // pred_check_branch
          %708 = sbr.rel (%p706) target = $region104
        $region103: #{tpu_custom_call.1} parent=83 // pred_region
          %709 = dma.done %s702, 1024
        $region104: #{tpu_custom_call.1} parent=83 // pred_fallthru
          _
        %s710 = sand.u32 %s30, 1
        %s711 = scalar_lea.sflag [#allocation4], %s710
        %s712 = sand.u32 %s210, 1
        %s713 = scalar_lea.vmem [#allocation11], %s712
        // Predicated region
        $region105: #{tpu_custom_call.1} parent=83 // pred_check
          %p714 = pneg %p223
        $region106: #{tpu_custom_call.1} parent=83 // pred_check_branch
          %716 = sbr.rel (%p714) target = $region108
        $region107: #{tpu_custom_call.1} parent=83 // pred_region
          %717 = dma.done %s711, 16
        $region108: #{tpu_custom_call.1} parent=83 // pred_fallthru
          _
        %s718 = sand.u32 %s30, 1
        %s719 = scalar_lea.sflag [#allocation4], %s718
        %s720 = sand.u32 %s236, 1
        %s721 = scalar_lea.vmem [#allocation12], %s720
        // Predicated region
        $region109: #{tpu_custom_call.1} parent=83 // pred_check
          %p722 = pneg %p249
        $region110: #{tpu_custom_call.1} parent=83 // pred_check_branch
          %724 = sbr.rel (%p722) target = $region112
        $region111: #{tpu_custom_call.1} parent=83 // pred_region
          %725 = dma.done %s719, 16
        $region112: #{tpu_custom_call.1} parent=83 // pred_fallthru
          _
        %s726 = sand.u32 %s30, 1
        %s727 = scalar_lea.sflag [#allocation4], %s726
        %s728 = sand.u32 %s262, 1
        %s729 = scalar_lea.vmem [#allocation13], %s728
        // Predicated region
        $region113: #{tpu_custom_call.1} parent=83 // pred_check
          %p730 = pneg %p275
        $region114: #{tpu_custom_call.1} parent=83 // pred_check_branch
          %732 = sbr.rel (%p730) target = $region116
        $region115: #{tpu_custom_call.1} parent=83 // pred_region
          %733 = dma.done %s727, 16
        $region116: #{tpu_custom_call.1} parent=83 // pred_fallthru
          _
        %s734 = sand.u32 %s30, 1
        %s735 = scalar_lea.sflag [#allocation4], %s734
        %s736 = sand.u32 %s288, 1
        %s737 = smul.addr %s736, 256
        %s738 = scalar_lea.vmem [#allocation14], %s737
        // Predicated region
        $region117: #{tpu_custom_call.1} parent=83 // pred_check
          %p739 = pneg %p301
        $region118: #{tpu_custom_call.1} parent=83 // pred_check_branch
          %741 = sbr.rel (%p739) target = $region120
        $region119: #{tpu_custom_call.1} parent=83 // pred_region
          %742 = dma.done %s735, 4096
        $region120: #{tpu_custom_call.1} parent=83 // pred_fallthru
          _
        %s743 = sand.u32 %s30, 1
        %s744 = scalar_lea.sflag [#allocation4], %s743
        %s745 = sand.u32 %s340, 1
        %s746 = smul.addr %s745, 256
        %s747 = scalar_lea.vmem [#allocation15], %s746
        // Predicated region
        $region121: #{tpu_custom_call.1} parent=83 // pred_check
          %p748 = pneg %p353
        $region122: #{tpu_custom_call.1} parent=83 // pred_check_branch
          %750 = sbr.rel (%p748) target = $region124
        $region123: #{tpu_custom_call.1} parent=83 // pred_region
          %751 = dma.done %s744, 4096
        $region124: #{tpu_custom_call.1} parent=83 // pred_fallthru
          _
        %p752 = pneg %p46
        %p753 = pneg %p43
        %p754 = pneg %p67
        %p755 = pneg %p64
        %p756 = scmp.lt.s32.totalorder %s30, 1
        %s757 = scalar_select %p756, %s30, 1
        %s758 = scalar_lea.vmem %s2, %s757
        %p759 = pneg %p93
        %p760 = pneg %p90
        %s761 = sand.u32 %s30, 1
        %s762 = scalar_lea.sflag [#allocation4], %s761
        %s763 = sand.u32 %s106, 1
        %s764 = scalar_lea.vmem [#allocation8], %s763
        %p765 = pneg %p119
        %p766 = pneg %p116
        %s767 = sand.u32 %s30, 1
        %s768 = scalar_lea.sflag [#allocation4], %s767
        %s769 = sand.u32 %s132, 1
        %s770 = smul.addr %s769, 192
        %s771 = scalar_lea.vmem [#allocation9], %s770
        %p772 = pneg %p145
        %p773 = pneg %p142
        %p774 = scmp.lt.s32.totalorder %s30, 1
        %s775 = scalar_select %p774, %s30, 1
        %s776 = smul.addr %s775, 3
        %s777 = scalar_lea.vmem %s5, %s776
        %p778 = pneg %p171
        %p779 = pneg %p168
        %s780 = sand.u32 %s30, 1
        %s781 = scalar_lea.sflag [#allocation4], %s780
        %s782 = sand.u32 %s184, 1
        %s783 = smul.addr %s782, 64
        %s784 = scalar_lea.vmem [#allocation10], %s783
        %p785 = pneg %p197
        %p786 = pneg %p194
        %s787 = sand.u32 %s30, 1
        %s788 = scalar_lea.sflag [#allocation4], %s787
        %s789 = sand.u32 %s210, 1
        %s790 = scalar_lea.vmem [#allocation11], %s789
        %p791 = pneg %p223
        %p792 = pneg %p220
        %s793 = sand.u32 %s30, 1
        %s794 = scalar_lea.sflag [#allocation4], %s793
        %s795 = sand.u32 %s236, 1
        %s796 = scalar_lea.vmem [#allocation12], %s795
        %p797 = pneg %p249
        %p798 = pneg %p246
        %s799 = sand.u32 %s30, 1
        %s800 = scalar_lea.sflag [#allocation4], %s799
        %s801 = sand.u32 %s262, 1
        %s802 = scalar_lea.vmem [#allocation13], %s801
        %p803 = pneg %p275
        %p804 = pneg %p272
        %s805 = sand.u32 %s30, 1
        %s806 = scalar_lea.sflag [#allocation4], %s805
        %s807 = sand.u32 %s288, 1
        %s808 = smul.addr %s807, 256
        %s809 = scalar_lea.vmem [#allocation14], %s808
        %p810 = pneg %p301
        %p811 = pneg %p298
        %p812 = scmp.lt.s32.totalorder %s30, 1
        %s813 = scalar_select %p812, %s30, 1
        %s814 = smul.addr %s813, 4
        %s815 = scalar_lea.vmem %s11, %s814
        %p816 = pneg %p327
        %p817 = pneg %p324
        %s818 = sand.u32 %s30, 1
        %s819 = scalar_lea.sflag [#allocation4], %s818
        %s820 = sand.u32 %s340, 1
        %s821 = smul.addr %s820, 256
        %s822 = scalar_lea.vmem [#allocation15], %s821
        %p823 = pneg %p353
        %p824 = pneg %p350
        %p825 = scmp.lt.s32.totalorder %s30, 1
        %s826 = scalar_select %p825, %s30, 1
        %s827 = scalar_lea.vmem %s13, %s826
        %p828 = pneg %p379
        %p829 = pneg %p376
        %p830 = pneg %p400
        %p831 = pneg %p397
        %p832 = pneg %p421
        %p833 = pneg %p418
        %p834 = pneg %p442
        %p835 = pneg %p439
        %p836 = scmp.lt.s32.totalorder %s30, 1
        %s837 = scalar_select %p836, %s30, 1
        %s838 = scalar_lea.vmem %s2, %s837
        %p839 = scmp.lt.s32.totalorder %s30, 1
        %s840 = scalar_select %p839, %s30, 1
        %s841 = smul.addr %s840, 3
        %s842 = scalar_lea.vmem %s5, %s841
        %p843 = scmp.lt.s32.totalorder %s30, 1
        %s844 = scalar_select %p843, %s30, 1
        %s845 = smul.addr %s844, 4
        %s846 = scalar_lea.vmem %s11, %s845
        %p847 = scmp.lt.s32.totalorder %s30, 1
        %s848 = scalar_select %p847, %s30, 1
        %s849 = scalar_lea.vmem %s13, %s848
        %p851 = scmp.eq.s32.totalorder %s30, 0
        // Predicated region
        $region125: #{tpu_custom_call.1} parent=83 // pred_check
          %p852 = pneg %p851
        $region126: #{tpu_custom_call.1} parent=83 // pred_check_branch
          %854 = sbr.rel (%p852) target = $region128
        $region127: #{tpu_custom_call.1} parent=83 // pred_region
          %v855 = vld [vmem:[#allocation3] sm:$0xff]
          %v856 = vld [vmem:[#allocation3 + $0x8] sm:$0xff]
          %857 = vst [vmem:[#allocation16] sm:$0xff] %v855
          %858 = vst [vmem:[#allocation16 + $0x8] sm:$0xff] %v856
        $region128: #{tpu_custom_call.1} parent=83 // pred_fallthru
          _
        %v859 = vld [vmem:[#allocation16] sm:$0xff]
        %v860 = vld [vmem:[#allocation16 + $0x8] sm:$0xff]
        %v861 = vld [vmem:[%s838] sm:$0x1]
        %v862 = vld [vmem:[%s687] sm:$0x1]
        %863 = vadd.xlane.f32.xlu0 %v859
        %v864 = vpop.xlane.xlu0 %863
        %865 = vadd.xlane.f32.xlu0 %v860
        %v866 = vpop.xlane.xlu0 %865
        %v867 = vrcp.pop 128.0
        %v868 = vmul.f32 %v864, %v867
        %v869 = vmul.f32 %v866, %v867
        %v870 = vsub.f32 %v859, %v868
        %v871 = vsub.f32 %v860, %v869
        %v872 = vmul.f32 %v870, %v870
        %v873 = vmul.f32 %v871, %v871
        %874 = vadd.xlane.f32.xlu0 %v872
        %v875 = vpop.xlane.xlu0 %874
        %876 = vadd.xlane.f32.xlu0 %v873
        %v877 = vpop.xlane.xlu0 %876
        %v878 = vmul.f32 %v875, %v867
        %v879 = vmul.f32 %v877, %v867
        %v880 = vadd.f32 %v878, 1e-05
        %v881 = vadd.f32 %v879, 1e-05
        %v882 = vrsqrt.pop %v880
        %v883 = vrsqrt.pop %v881
        %v884 = vmul.f32 %v870, %v882
        %v885 = vmul.f32 %v871, %v883
        %v887 = vlaneseq
        %v888 = vshrl.u32 %v887, 7
        %v889 = vsub.s32 0, %v888
        %v890 = vrot.slane %v861, %v889
        %v892 = vmul.f32 %v884, %v890
        %v893 = vmul.f32 %v885, %v890
        %v895 = vlaneseq
        %v896 = vshrl.u32 %v895, 7
        %v897 = vsub.s32 0, %v896
        %v898 = vrot.slane %v862, %v897
        %v900 = vadd.f32 %v892, %v898
        %v901 = vadd.f32 %v893, %v898
        %v902 = vpack.c.bf16 %v901, %v900
        %v903 = vld [vmem:[%s696] sm:$0xff]
        %v904 = vld [vmem:[%s696 + $0x8] sm:$0xf]
        %v905 = vld [vmem:[%s696 + $0xc] sm:$0xff]
        %v906 = vld [vmem:[%s696 + $0x14] sm:$0xf]
        %v907 = vld [vmem:[%s696 + $0x18] sm:$0xff]
        %v908 = vld [vmem:[%s696 + $0x20] sm:$0xf]
        %v909 = vld [vmem:[%s696 + $0x24] sm:$0xff]
        %v910 = vld [vmem:[%s696 + $0x2c] sm:$0xf]
        %v911 = vld [vmem:[%s696 + $0x30] sm:$0xff]
        %v912 = vld [vmem:[%s696 + $0x38] sm:$0xf]
        %v913 = vld [vmem:[%s696 + $0x3c] sm:$0xff]
        %v914 = vld [vmem:[%s696 + $0x44] sm:$0xf]
        %v915 = vld [vmem:[%s696 + $0x48] sm:$0xff]
        %v916 = vld [vmem:[%s696 + $0x50] sm:$0xf]
        %v917 = vld [vmem:[%s696 + $0x54] sm:$0xff]
        %v918 = vld [vmem:[%s696 + $0x5c] sm:$0xf]
        %v919 = vld [vmem:[%s696 + $0x60] sm:$0xff]
        %v920 = vld [vmem:[%s696 + $0x68] sm:$0xf]
        %v921 = vld [vmem:[%s696 + $0x6c] sm:$0xff]
        %v922 = vld [vmem:[%s696 + $0x74] sm:$0xf]
        %v923 = vld [vmem:[%s696 + $0x78] sm:$0xff]
        %v924 = vld [vmem:[%s696 + $0x80] sm:$0xf]
        %v925 = vld [vmem:[%s696 + $0x84] sm:$0xff]
        %v926 = vld [vmem:[%s696 + $0x8c] sm:$0xf]
        %v927 = vld [vmem:[%s696 + $0x90] sm:$0xff]
        %v928 = vld [vmem:[%s696 + $0x98] sm:$0xf]
        %v929 = vld [vmem:[%s696 + $0x9c] sm:$0xff]
        %v930 = vld [vmem:[%s696 + $0xa4] sm:$0xf]
        %v931 = vld [vmem:[%s696 + $0xa8] sm:$0xff]
        %v932 = vld [vmem:[%s696 + $0xb0] sm:$0xf]
        %v933 = vld [vmem:[%s696 + $0xb4] sm:$0xff]
        %v934 = vld [vmem:[%s696 + $0xbc] sm:$0xf]
        %v935 = vld [vmem:[%s842] sm:$0x7]
        %v937 = vlaneseq
        %v938 = vshrl.u32 %v937, 7
        %v939 = vsub.s32 0, %v938
        %v940 = vrot.slane %v935, %v939
        %v941 = vlaneseq
        %v942 = vshrl.u32 %v941, 7
        %v943 = vsub.s32 1, %v942
        %v944 = vrot.slane %v935, %v943
        %v945 = vlaneseq
        %v946 = vshrl.u32 %v945, 7
        %v947 = vsub.s32 2, %v946
        %v948 = vrot.slane %v935, %v947
        %v984 = vunpack.c.l.b16 %v903
        %v985 = vunpack.c.h.b16 %v903
        %v986 = vunpack.c.l.b16 %v904
        %v987 = vunpack.c.l.b16 %v905
        %v988 = vunpack.c.h.b16 %v905
        %v989 = vunpack.c.l.b16 %v906
        %v990 = vunpack.c.l.b16 %v907
        %v991 = vunpack.c.h.b16 %v907
        %v992 = vunpack.c.l.b16 %v908
        %v993 = vunpack.c.l.b16 %v909
        %v994 = vunpack.c.h.b16 %v909
        %v995 = vunpack.c.l.b16 %v910
        %v996 = vunpack.c.l.b16 %v911
        %v997 = vunpack.c.h.b16 %v911
        %v998 = vunpack.c.l.b16 %v912
        %v999 = vunpack.c.l.b16 %v913
        %v1000 = vunpack.c.h.b16 %v913
        %v1001 = vunpack.c.l.b16 %v914
        %v1002 = vunpack.c.l.b16 %v915
        %v1003 = vunpack.c.h.b16 %v915
        %v1004 = vunpack.c.l.b16 %v916
        %v1005 = vunpack.c.l.b16 %v917
        %v1006 = vunpack.c.h.b16 %v917
        %v1007 = vunpack.c.l.b16 %v918
        %v1008 = vunpack.c.l.b16 %v919
        %v1009 = vunpack.c.h.b16 %v919
        %v1010 = vunpack.c.l.b16 %v920
        %v1011 = vunpack.c.l.b16 %v921
        %v1012 = vunpack.c.h.b16 %v921
        %v1013 = vunpack.c.l.b16 %v922
        %v1014 = vunpack.c.l.b16 %v923
        %v1015 = vunpack.c.h.b16 %v923
        %v1016 = vunpack.c.l.b16 %v924
        %v1017 = vunpack.c.l.b16 %v925
        %v1018 = vunpack.c.h.b16 %v925
        %v1019 = vunpack.c.l.b16 %v926
        %v1020 = vunpack.c.l.b16 %v927
        %v1021 = vunpack.c.h.b16 %v927
        %v1022 = vunpack.c.l.b16 %v928
        %v1023 = vunpack.c.l.b16 %v929
        %v1024 = vunpack.c.h.b16 %v929
        %v1025 = vunpack.c.l.b16 %v930
        %v1026 = vunpack.c.l.b16 %v931
        %v1027 = vunpack.c.h.b16 %v931
        %v1028 = vunpack.c.l.b16 %v932
        %v1029 = vunpack.c.l.b16 %v933
        %v1030 = vunpack.c.h.b16 %v933
        %v1031 = vunpack.c.l.b16 %v934
        %v1032 = vpack.c.b16 %v987, %v984
        %v1033 = vpack.c.b16 %v988, %v985
        %v1034 = vpack.c.b16 %v989, %v986
        %v1035 = vpack.c.b16 %v993, %v990
        %v1036 = vpack.c.b16 %v994, %v991
        %v1037 = vpack.c.b16 %v995, %v992
        %v1038 = vpack.c.b16 %v999, %v996
        %v1039 = vpack.c.b16 %v1000, %v997
        %v1040 = vpack.c.b16 %v1001, %v998
        %v1041 = vpack.c.b16 %v1005, %v1002
        %v1042 = vpack.c.b16 %v1006, %v1003
        %v1043 = vpack.c.b16 %v1007, %v1004
        %v1044 = vpack.c.b16 %v1011, %v1008
        %v1045 = vpack.c.b16 %v1012, %v1009
        %v1046 = vpack.c.b16 %v1013, %v1010
        %v1047 = vpack.c.b16 %v1017, %v1014
        %v1048 = vpack.c.b16 %v1018, %v1015
        %v1049 = vpack.c.b16 %v1019, %v1016
        %v1050 = vpack.c.b16 %v1023, %v1020
        %v1051 = vpack.c.b16 %v1024, %v1021
        %v1052 = vpack.c.b16 %v1025, %v1022
        %v1053 = vpack.c.b16 %v1029, %v1026
        %v1054 = vpack.c.b16 %v1030, %v1027
        %v1055 = vpack.c.b16 %v1031, %v1028
        %1080 = vmatprep.subr.bf16.mxu0 %v1054
        %1081 = vmatpush1.bf16.msra.mxu0 %v1053
        %1082 = vmatprep.subr.bf16.mxu0 %v1051
        %1083 = vmatpush1.bf16.msra.mxu0 %v1050
        %1084 = vmatprep.subr.bf16.mxu0 %v1048
        %1085 = vmatpush1.bf16.msra.mxu0 %v1047
        %1086 = vmatprep.subr.bf16.mxu0 %v1045
        %1087 = vmatpush1.bf16.msra.mxu0 %v1044
        %1088 = vmatprep.subr.bf16.mxu0 %v1042
        %1089 = vmatpush1.bf16.msra.mxu0 %v1041
        %1090 = vmatprep.subr.bf16.mxu0 %v1039
        %1091 = vmatpush1.bf16.msra.mxu0 %v1038
        %1092 = vmatprep.subr.bf16.mxu0 %v1036
        %1093 = vmatpush1.bf16.msra.mxu0 %v1035
        %1094 = vmatprep.subr.bf16.mxu0 %v1033
        %1095 = vmatpush1.bf16.msra.mxu0 %v1032
        %1096 = vmatprep.subr.bf16.mxu0 0
        %1097 = vmatpush2.bf16.msra.mxu0 0
        %1098 = vmatprep.subr.bf16.mxu0 0
        %1099 = vmatpush2.bf16.msra.mxu0 0
        %1100 = vmatprep.subr.bf16.mxu0 0
        %1101 = vmatpush2.bf16.msra.mxu0 0
        %1102 = vmatprep.subr.bf16.mxu0 0
        %1103 = vmatpush2.bf16.msra.mxu0 0
        %1104 = vmatprep.subr.bf16.mxu0 0
        %1105 = vmatpush2.bf16.msra.mxu0 0
        %1106 = vmatprep.subr.bf16.mxu0 0
        %1107 = vmatpush2.bf16.msra.mxu0 0
        %1108 = vmatprep.subr.bf16.mxu0 0
        %1109 = vmatpush2.bf16.msra.mxu0 0
        %1110 = vmatprep.subr.bf16.mxu0 0
        %1111 = vmatpush2.bf16.msra.mxu0 0
        %1112 = vmatprep.mubr.bf16.mxu0 0
        %1113 = vmatmul.mubr.bf16.gmra.mxu0 %v902
        %v1114 = vpop.f32.mrf.mxu0
        %v1115 = vadd.f32 %v940, %v1114
        %v1116 = vpop.f32.mrf.mxu0
        %v1117 = vadd.f32 %v944, %v1116
        %v1118 = vpop.f32.mrf.mxu0
        %v1119 = vadd.f32 %v940, %v1118
        %v1120 = vpop.f32.mrf.mxu0
        %v1121 = vadd.f32 %v944, %v1120
        %1122 = vdwg.mxu0
        %1123 = vmatprep.subr.bf16.mxu0 0
        %1124 = vmatpush1.bf16.msra.mxu0 %v1055
        %1125 = vmatprep.subr.bf16.mxu0 0
        %1126 = vmatpush1.bf16.msra.mxu0 %v1052
        %1127 = vmatprep.subr.bf16.mxu0 0
        %1128 = vmatpush1.bf16.msra.mxu0 %v1049
        %1129 = vmatprep.subr.bf16.mxu0 0
        %1130 = vmatpush1.bf16.msra.mxu0 %v1046
        %1131 = vmatprep.subr.bf16.mxu0 0
        %1132 = vmatpush1.bf16.msra.mxu0 %v1043
        %1133 = vmatprep.subr.bf16.mxu0 0
        %1134 = vmatpush1.bf16.msra.mxu0 %v1040
        %1135 = vmatprep.subr.bf16.mxu0 0
        %1136 = vmatpush1.bf16.msra.mxu0 %v1037
        %1137 = vmatprep.subr.bf16.mxu0 0
        %1138 = vmatpush1.bf16.msra.mxu0 %v1034
        %1139 = vmatprep.subr.bf16.mxu0 0
        %1140 = vmatpush2.bf16.msra.mxu0 0
        %1141 = vmatprep.subr.bf16.mxu0 0
        %1142 = vmatpush2.bf16.msra.mxu0 0
        %1143 = vmatprep.subr.bf16.mxu0 0
        %1144 = vmatpush2.bf16.msra.mxu0 0
        %1145 = vmatprep.subr.bf16.mxu0 0
        %1146 = vmatpush2.bf16.msra.mxu0 0
        %1147 = vmatprep.subr.bf16.mxu0 0
        %1148 = vmatpush2.bf16.msra.mxu0 0
        %1149 = vmatprep.subr.bf16.mxu0 0
        %1150 = vmatpush2.bf16.msra.mxu0 0
        %1151 = vmatprep.subr.bf16.mxu0 0
        %1152 = vmatpush2.bf16.msra.mxu0 0
        %1153 = vmatprep.subr.bf16.mxu0 0
        %1154 = vmatpush2.bf16.msra.mxu0 0
        %1155 = vmatprep.mubr.bf16.mxu0 0
        %1156 = vmatmul.mubr.bf16.gmra.mxu0 %v902
        %v1157 = vpop.f32.mrf.mxu0
        %v1158 = vadd.f32 %v948, %v1157
        %v1159 = vpop.f32.mrf.mxu0
        %v1160 = vpop.f32.mrf.mxu0
        %v1161 = vadd.f32 %v948, %v1160
        %v1162 = vpop.f32.mrf.mxu0
        %1163 = vdwg.mxu0
        %v1164 = vld [vmem:[#allocation6] sm:$0xff]
        %vm1165 = vcmask 261120
        %v1167 = vsel %vm1165, %v1115, 0
        %v1170 = vsel %vm1165, %v1117, 0
        %1172 = vmatprep.subr.mxu0 0.0
        %1173 = vmatpush1.xpose.msra.mxu0 0.0
        %1174 = vmatprep.subr.mxu0 0.0
        %1175 = vmatpush1.xpose.msra.mxu0 0.0
        %1176 = vmatprep.subr.mxu0 0.0
        %1177 = vmatpush1.xpose.msra.mxu0 0.0
        %1178 = vmatprep.subr.mxu0 0.0
        %1179 = vmatpush1.xpose.msra.mxu0 0.0
        %1180 = vmatprep.subr.mxu0 0.0
        %1181 = vmatpush1.xpose.msra.mxu0 0.0
        %1182 = vmatprep.subr.mxu0 0.0
        %1183 = vmatpush1.xpose.msra.mxu0 0.0
        %1184 = vmatprep.subr.mxu0 0.0
        %1185 = vmatpush1.xpose.msra.mxu0 0.0
        %1186 = vmatprep.subr.mxu0 0.0
        %1187 = vmatpush1.xpose.msra.mxu0 0.0
        %1188 = vmatprep.subr.mxu0 0.0
        %1189 = vmatpush1.xpose.msra.mxu0 0.0
        %1190 = vmatprep.subr.mxu0 0.0
        %1191 = vmatpush1.xpose.msra.mxu0 0.0
        %1192 = vmatprep.subr.mxu0 0.0
        %1193 = vmatpush1.xpose.msra.mxu0 0.0
        %1194 = vmatprep.subr.mxu0 0.0
        %1195 = vmatpush1.xpose.msra.mxu0 0.0
        %1196 = vmatprep.subr.mxu0 0.0
        %1197 = vmatpush1.xpose.msra.mxu0 0.0
        %1198 = vmatprep.subr.mxu0 0.0
        %1199 = vmatpush1.xpose.msra.mxu0 0.0
        %1200 = vmatprep.subr.mxu0 0.0
        %1201 = vmatpush1.xpose.msra.mxu0 0.0
        %1202 = vmatprep.subr.mxu0 0.0
        %1203 = vmatpush1.xpose.msra.mxu0 %v1170
        %1204 = vmatprep.subr.mxu0 0.0
        %1205 = vmatpush2.xpose.msra.mxu0 0.0
        %1206 = vmatprep.subr.mxu0 0.0
        %1207 = vmatpush2.xpose.msra.mxu0 0.0
        %1208 = vmatprep.subr.mxu0 0.0
        %1209 = vmatpush2.xpose.msra.mxu0 0.0
        %1210 = vmatprep.subr.mxu0 0.0
        %1211 = vmatpush2.xpose.msra.mxu0 0.0
        %1212 = vmatprep.subr.mxu0 0.0
        %1213 = vmatpush2.xpose.msra.mxu0 0.0
        %1214 = vmatprep.subr.mxu0 0.0
        %1215 = vmatpush2.xpose.msra.mxu0 0.0
        %1216 = vmatprep.subr.mxu0 0.0
        %1217 = vmatpush2.xpose.msra.mxu0 0.0
        %1218 = vmatprep.subr.mxu0 0.0
        %1219 = vmatpush2.xpose.msra.mxu0 0.0
        %1220 = vmatprep.subr.mxu0 0.0
        %1221 = vmatpush2.xpose.msra.mxu0 0.0
        %1222 = vmatprep.subr.mxu0 0.0
        %1223 = vmatpush2.xpose.msra.mxu0 0.0
        %1224 = vmatprep.subr.mxu0 0.0
        %1225 = vmatpush2.xpose.msra.mxu0 0.0
        %1226 = vmatprep.subr.mxu0 0.0
        %1227 = vmatpush2.xpose.msra.mxu0 0.0
        %1228 = vmatprep.subr.mxu0 0.0
        %1229 = vmatpush2.xpose.msra.mxu0 0.0
        %1230 = vmatprep.subr.mxu0 0.0
        %1231 = vmatpush2.xpose.msra.mxu0 0.0
        %1232 = vmatprep.subr.mxu0 0.0
        %1233 = vmatpush2.xpose.msra.mxu0 0.0
        %1234 = vmatprep.subr.mxu0 0.0
        %1235 = vmatpush2.xpose.msra.mxu0 0.0
        %1236 = vmatprep.mubr.f32.mxu0 0.0
        %1237 = vmatmul.mubr.f32.gmra.mxu0 %v1167
        %v1238 = vpop.f32.mrf.mxu0
        %v1239 = vadd.f32 %v1164, %v1238
        %v1240 = vpop.f32.mrf.mxu0
        %1241 = vdwg.mxu0
        %vm1242 = vcmask 64512
        %v1243 = vsel %vm1242, %v1239, -inf
        %1244 = vmax.xlane.f32.xlu0 %v1243
        %v1245 = vpop.xlane.xlu0 %1244
        %v1246 = vsub.f32 %v1239, %v1245
        %v1247 = vmul.f32 %v1246, 1.442695
        %v1248 = vpow.pop %v1247
        %v1249 = vsel %vm1242, %v1248, 0.0
        %1250 = vadd.xlane.f32.xlu0 %v1249
        %v1251 = vpop.xlane.xlu0 %1250
        %v1252 = vrcp.pop %v1251
        %v1253 = vmul.f32 %v1248, %v1252
        %v1255 = vsel %vm1242, %v1253, 0
        %1257 = vmatprep.subr.mxu0 0.0
        %1258 = vmatpush1.msra.mxu0 0.0
        %1259 = vmatprep.subr.mxu0 0.0
        %1260 = vmatpush1.msra.mxu0 0.0
        %1261 = vmatprep.subr.mxu0 0.0
        %1262 = vmatpush1.msra.mxu0 0.0
        %1263 = vmatprep.subr.mxu0 0.0
        %1264 = vmatpush1.msra.mxu0 0.0
        %1265 = vmatprep.subr.mxu0 0.0
        %1266 = vmatpush1.msra.mxu0 0.0
        %1267 = vmatprep.subr.mxu0 0.0
        %1268 = vmatpush1.msra.mxu0 0.0
        %1269 = vmatprep.subr.mxu0 0.0
        %1270 = vmatpush1.msra.mxu0 0.0
        %1271 = vmatprep.subr.mxu0 0.0
        %1272 = vmatpush1.msra.mxu0 0.0
        %1273 = vmatprep.subr.mxu0 0.0
        %1274 = vmatpush1.msra.mxu0 0.0
        %1275 = vmatprep.subr.mxu0 0.0
        %1276 = vmatpush1.msra.mxu0 0.0
        %1277 = vmatprep.subr.mxu0 0.0
        %1278 = vmatpush1.msra.mxu0 0.0
        %1279 = vmatprep.subr.mxu0 0.0
        %1280 = vmatpush1.msra.mxu0 0.0
        %1281 = vmatprep.subr.mxu0 0.0
        %1282 = vmatpush1.msra.mxu0 0.0
        %1283 = vmatprep.subr.mxu0 0.0
        %1284 = vmatpush1.msra.mxu0 0.0
        %1285 = vmatprep.subr.mxu0 0.0
        %1286 = vmatpush1.msra.mxu0 0.0
        %1287 = vmatprep.subr.mxu0 0.0
        %1288 = vmatpush1.msra.mxu0 %v1158
        %1289 = vmatprep.subr.mxu0 0.0
        %1290 = vmatpush2.msra.mxu0 0.0
        %1291 = vmatprep.subr.mxu0 0.0
        %1292 = vmatpush2.msra.mxu0 0.0
        %1293 = vmatprep.subr.mxu0 0.0
        %1294 = vmatpush2.msra.mxu0 0.0
        %1295 = vmatprep.subr.mxu0 0.0
        %1296 = vmatpush2.msra.mxu0 0.0
        %1297 = vmatprep.subr.mxu0 0.0
        %1298 = vmatpush2.msra.mxu0 0.0
        %1299 = vmatprep.subr.mxu0 0.0
        %1300 = vmatpush2.msra.mxu0 0.0
        %1301 = vmatprep.subr.mxu0 0.0
        %1302 = vmatpush2.msra.mxu0 0.0
        %1303 = vmatprep.subr.mxu0 0.0
        %1304 = vmatpush2.msra.mxu0 0.0
        %1305 = vmatprep.subr.mxu0 0.0
        %1306 = vmatpush2.msra.mxu0 0.0
        %1307 = vmatprep.subr.mxu0 0.0
        %1308 = vmatpush2.msra.mxu0 0.0
        %1309 = vmatprep.subr.mxu0 0.0
        %1310 = vmatpush2.msra.mxu0 0.0
        %1311 = vmatprep.subr.mxu0 0.0
        %1312 = vmatpush2.msra.mxu0 0.0
        %1313 = vmatprep.subr.mxu0 0.0
        %1314 = vmatpush2.msra.mxu0 0.0
        %1315 = vmatprep.subr.mxu0 0.0
        %1316 = vmatpush2.msra.mxu0 0.0
        %1317 = vmatprep.subr.mxu0 0.0
        %1318 = vmatpush2.msra.mxu0 0.0
        %1319 = vmatprep.subr.mxu0 0.0
        %1320 = vmatpush2.msra.mxu0 0.0
        %1321 = vmatprep.mubr.f32.mxu0 0.0
        %1322 = vmatmul.mubr.f32.gmra.mxu0 %v1255
        %v1323 = vpop.f32.mrf.mxu0
        %v1324 = vadd.f32 0.0, %v1323
        %v1325 = vpop.f32.mrf.mxu0
        %1326 = vdwg.mxu0
        %1327 = vst.msk [vmem:[#allocation2] sm:$0xff] %vm1165, %v1324
        %1328 = vrot.lane.b32.xlu0 %v1115, 96
        %v1329 = vpop.permute.xlu0 %1328
        %1330 = vrot.lane.b32.xlu0 %v1117, 96
        %v1331 = vpop.permute.xlu0 %1330
        %v1332 = vsel %vm1165, %v1329, 0
        %v1334 = vsel %vm1165, %v1331, 0
        %1336 = vmatprep.subr.mxu0 0.0
        %1337 = vmatpush1.xpose.msra.mxu0 0.0
        %1338 = vmatprep.subr.mxu0 0.0
        %1339 = vmatpush1.xpose.msra.mxu0 0.0
        %1340 = vmatprep.subr.mxu0 0.0
        %1341 = vmatpush1.xpose.msra.mxu0 0.0
        %1342 = vmatprep.subr.mxu0 0.0
        %1343 = vmatpush1.xpose.msra.mxu0 0.0
        %1344 = vmatprep.subr.mxu0 0.0
        %1345 = vmatpush1.xpose.msra.mxu0 0.0
        %1346 = vmatprep.subr.mxu0 0.0
        %1347 = vmatpush1.xpose.msra.mxu0 0.0
        %1348 = vmatprep.subr.mxu0 0.0
        %1349 = vmatpush1.xpose.msra.mxu0 0.0
        %1350 = vmatprep.subr.mxu0 0.0
        %1351 = vmatpush1.xpose.msra.mxu0 0.0
        %1352 = vmatprep.subr.mxu0 0.0
        %1353 = vmatpush1.xpose.msra.mxu0 0.0
        %1354 = vmatprep.subr.mxu0 0.0
        %1355 = vmatpush1.xpose.msra.mxu0 0.0
        %1356 = vmatprep.subr.mxu0 0.0
        %1357 = vmatpush1.xpose.msra.mxu0 0.0
        %1358 = vmatprep.subr.mxu0 0.0
        %1359 = vmatpush1.xpose.msra.mxu0 0.0
        %1360 = vmatprep.subr.mxu0 0.0
        %1361 = vmatpush1.xpose.msra.mxu0 0.0
        %1362 = vmatprep.subr.mxu0 0.0
        %1363 = vmatpush1.xpose.msra.mxu0 0.0
        %1364 = vmatprep.subr.mxu0 0.0
        %1365 = vmatpush1.xpose.msra.mxu0 0.0
        %1366 = vmatprep.subr.mxu0 0.0
        %1367 = vmatpush1.xpose.msra.mxu0 %v1334
        %1368 = vmatprep.subr.mxu0 0.0
        %1369 = vmatpush2.xpose.msra.mxu0 0.0
        %1370 = vmatprep.subr.mxu0 0.0
        %1371 = vmatpush2.xpose.msra.mxu0 0.0
        %1372 = vmatprep.subr.mxu0 0.0
        %1373 = vmatpush2.xpose.msra.mxu0 0.0
        %1374 = vmatprep.subr.mxu0 0.0
        %1375 = vmatpush2.xpose.msra.mxu0 0.0
        %1376 = vmatprep.subr.mxu0 0.0
        %1377 = vmatpush2.xpose.msra.mxu0 0.0
        %1378 = vmatprep.subr.mxu0 0.0
        %1379 = vmatpush2.xpose.msra.mxu0 0.0
        %1380 = vmatprep.subr.mxu0 0.0
        %1381 = vmatpush2.xpose.msra.mxu0 0.0
        %1382 = vmatprep.subr.mxu0 0.0
        %1383 = vmatpush2.xpose.msra.mxu0 0.0
        %1384 = vmatprep.subr.mxu0 0.0
        %1385 = vmatpush2.xpose.msra.mxu0 0.0
        %1386 = vmatprep.subr.mxu0 0.0
        %1387 = vmatpush2.xpose.msra.mxu0 0.0
        %1388 = vmatprep.subr.mxu0 0.0
        %1389 = vmatpush2.xpose.msra.mxu0 0.0
        %1390 = vmatprep.subr.mxu0 0.0
        %1391 = vmatpush2.xpose.msra.mxu0 0.0
        %1392 = vmatprep.subr.mxu0 0.0
        %1393 = vmatpush2.xpose.msra.mxu0 0.0
        %1394 = vmatprep.subr.mxu0 0.0
        %1395 = vmatpush2.xpose.msra.mxu0 0.0
        %1396 = vmatprep.subr.mxu0 0.0
        %1397 = vmatpush2.xpose.msra.mxu0 0.0
        %1398 = vmatprep.subr.mxu0 0.0
        %1399 = vmatpush2.xpose.msra.mxu0 0.0
        %1400 = vmatprep.mubr.f32.mxu0 0.0
        %1401 = vmatmul.mubr.f32.gmra.mxu0 %v1332
        %v1402 = vpop.f32.mrf.mxu0
        %v1403 = vadd.f32 %v1164, %v1402
        %v1404 = vpop.f32.mrf.mxu0
        %1405 = vdwg.mxu0
        %v1406 = vsel %vm1242, %v1403, -inf
        %1407 = vmax.xlane.f32.xlu0 %v1406
        %v1408 = vpop.xlane.xlu0 %1407
        %v1409 = vsub.f32 %v1403, %v1408
        %v1410 = vmul.f32 %v1409, 1.442695
        %v1411 = vpow.pop %v1410
        %v1412 = vsel %vm1242, %v1411, 0.0
        %1413 = vadd.xlane.f32.xlu0 %v1412
        %v1414 = vpop.xlane.xlu0 %1413
        %v1415 = vrcp.pop %v1414
        %v1416 = vmul.f32 %v1411, %v1415
        %1418 = vrot.lane.b32.xlu0 %v1158, 96
        %v1419 = vpop.permute.xlu0 %1418
        %v1422 = vsel %vm1242, %v1416, 0
        %1424 = vmatprep.subr.mxu0 0.0
        %1425 = vmatpush1.msra.mxu0 0.0
        %1426 = vmatprep.subr.mxu0 0.0
        %1427 = vmatpush1.msra.mxu0 0.0
        %1428 = vmatprep.subr.mxu0 0.0
        %1429 = vmatpush1.msra.mxu0 0.0
        %1430 = vmatprep.subr.mxu0 0.0
        %1431 = vmatpush1.msra.mxu0 0.0
        %1432 = vmatprep.subr.mxu0 0.0
        %1433 = vmatpush1.msra.mxu0 0.0
        %1434 = vmatprep.subr.mxu0 0.0
        %1435 = vmatpush1.msra.mxu0 0.0
        %1436 = vmatprep.subr.mxu0 0.0
        %1437 = vmatpush1.msra.mxu0 0.0
        %1438 = vmatprep.subr.mxu0 0.0
        %1439 = vmatpush1.msra.mxu0 0.0
        %1440 = vmatprep.subr.mxu0 0.0
        %1441 = vmatpush1.msra.mxu0 0.0
        %1442 = vmatprep.subr.mxu0 0.0
        %1443 = vmatpush1.msra.mxu0 0.0
        %1444 = vmatprep.subr.mxu0 0.0
        %1445 = vmatpush1.msra.mxu0 0.0
        %1446 = vmatprep.subr.mxu0 0.0
        %1447 = vmatpush1.msra.mxu0 0.0
        %1448 = vmatprep.subr.mxu0 0.0
        %1449 = vmatpush1.msra.mxu0 0.0
        %1450 = vmatprep.subr.mxu0 0.0
        %1451 = vmatpush1.msra.mxu0 0.0
        %1452 = vmatprep.subr.mxu0 0.0
        %1453 = vmatpush1.msra.mxu0 0.0
        %1454 = vmatprep.subr.mxu0 0.0
        %1455 = vmatpush1.msra.mxu0 %v1419
        %1456 = vmatprep.subr.mxu0 0.0
        %1457 = vmatpush2.msra.mxu0 0.0
        %1458 = vmatprep.subr.mxu0 0.0
        %1459 = vmatpush2.msra.mxu0 0.0
        %1460 = vmatprep.subr.mxu0 0.0
        %1461 = vmatpush2.msra.mxu0 0.0
        %1462 = vmatprep.subr.mxu0 0.0
        %1463 = vmatpush2.msra.mxu0 0.0
        %1464 = vmatprep.subr.mxu0 0.0
        %1465 = vmatpush2.msra.mxu0 0.0
        %1466 = vmatprep.subr.mxu0 0.0
        %1467 = vmatpush2.msra.mxu0 0.0
        %1468 = vmatprep.subr.mxu0 0.0
        %1469 = vmatpush2.msra.mxu0 0.0
        %1470 = vmatprep.subr.mxu0 0.0
        %1471 = vmatpush2.msra.mxu0 0.0
        %1472 = vmatprep.subr.mxu0 0.0
        %1473 = vmatpush2.msra.mxu0 0.0
        %1474 = vmatprep.subr.mxu0 0.0
        %1475 = vmatpush2.msra.mxu0 0.0
        %1476 = vmatprep.subr.mxu0 0.0
        %1477 = vmatpush2.msra.mxu0 0.0
        %1478 = vmatprep.subr.mxu0 0.0
        %1479 = vmatpush2.msra.mxu0 0.0
        %1480 = vmatprep.subr.mxu0 0.0
        %1481 = vmatpush2.msra.mxu0 0.0
        %1482 = vmatprep.subr.mxu0 0.0
        %1483 = vmatpush2.msra.mxu0 0.0
        %1484 = vmatprep.subr.mxu0 0.0
        %1485 = vmatpush2.msra.mxu0 0.0
        %1486 = vmatprep.subr.mxu0 0.0
        %1487 = vmatpush2.msra.mxu0 0.0
        %1488 = vmatprep.mubr.f32.mxu0 0.0
        %1489 = vmatmul.mubr.f32.gmra.mxu0 %v1422
        %v1490 = vpop.f32.mrf.mxu0
        %v1491 = vadd.f32 0.0, %v1490
        %v1492 = vpop.f32.mrf.mxu0
        %1493 = vdwg.mxu0
        %1495 = vrot.lane.b32.xlu0 %v1491, 32
        %v1496 = vpop.permute.xlu0 %1495
        %vm1498 = vcmask 523520
        %1499 = vst.msk [vmem:[#allocation2] sm:$0xff] %vm1498, %v1496
        %1500 = vrot.lane.b32.xlu0 %v1115, 64
        %v1501 = vpop.permute.xlu0 %1500
        %1502 = vrot.lane.b32.xlu0 %v1117, 64
        %v1503 = vpop.permute.xlu0 %1502
        %v1504 = vsel %vm1165, %v1501, 0
        %v1506 = vsel %vm1165, %v1503, 0
        %1508 = vmatprep.subr.mxu0 0.0
        %1509 = vmatpush1.xpose.msra.mxu0 0.0
        %1510 = vmatprep.subr.mxu0 0.0
        %1511 = vmatpush1.xpose.msra.mxu0 0.0
        %1512 = vmatprep.subr.mxu0 0.0
        %1513 = vmatpush1.xpose.msra.mxu0 0.0
        %1514 = vmatprep.subr.mxu0 0.0
        %1515 = vmatpush1.xpose.msra.mxu0 0.0
        %1516 = vmatprep.subr.mxu0 0.0
        %1517 = vmatpush1.xpose.msra.mxu0 0.0
        %1518 = vmatprep.subr.mxu0 0.0
        %1519 = vmatpush1.xpose.msra.mxu0 0.0
        %1520 = vmatprep.subr.mxu0 0.0
        %1521 = vmatpush1.xpose.msra.mxu0 0.0
        %1522 = vmatprep.subr.mxu0 0.0
        %1523 = vmatpush1.xpose.msra.mxu0 0.0
        %1524 = vmatprep.subr.mxu0 0.0
        %1525 = vmatpush1.xpose.msra.mxu0 0.0
        %1526 = vmatprep.subr.mxu0 0.0
        %1527 = vmatpush1.xpose.msra.mxu0 0.0
        %1528 = vmatprep.subr.mxu0 0.0
        %1529 = vmatpush1.xpose.msra.mxu0 0.0
        %1530 = vmatprep.subr.mxu0 0.0
        %1531 = vmatpush1.xpose.msra.mxu0 0.0
        %1532 = vmatprep.subr.mxu0 0.0
        %1533 = vmatpush1.xpose.msra.mxu0 0.0
        %1534 = vmatprep.subr.mxu0 0.0
        %1535 = vmatpush1.xpose.msra.mxu0 0.0
        %1536 = vmatprep.subr.mxu0 0.0
        %1537 = vmatpush1.xpose.msra.mxu0 0.0
        %1538 = vmatprep.subr.mxu0 0.0
        %1539 = vmatpush1.xpose.msra.mxu0 %v1506
        %1540 = vmatprep.subr.mxu0 0.0
        %1541 = vmatpush2.xpose.msra.mxu0 0.0
        %1542 = vmatprep.subr.mxu0 0.0
        %1543 = vmatpush2.xpose.msra.mxu0 0.0
        %1544 = vmatprep.subr.mxu0 0.0
        %1545 = vmatpush2.xpose.msra.mxu0 0.0
        %1546 = vmatprep.subr.mxu0 0.0
        %1547 = vmatpush2.xpose.msra.mxu0 0.0
        %1548 = vmatprep.subr.mxu0 0.0
        %1549 = vmatpush2.xpose.msra.mxu0 0.0
        %1550 = vmatprep.subr.mxu0 0.0
        %1551 = vmatpush2.xpose.msra.mxu0 0.0
        %1552 = vmatprep.subr.mxu0 0.0
        %1553 = vmatpush2.xpose.msra.mxu0 0.0
        %1554 = vmatprep.subr.mxu0 0.0
        %1555 = vmatpush2.xpose.msra.mxu0 0.0
        %1556 = vmatprep.subr.mxu0 0.0
        %1557 = vmatpush2.xpose.msra.mxu0 0.0
        %1558 = vmatprep.subr.mxu0 0.0
        %1559 = vmatpush2.xpose.msra.mxu0 0.0
        %1560 = vmatprep.subr.mxu0 0.0
        %1561 = vmatpush2.xpose.msra.mxu0 0.0
        %1562 = vmatprep.subr.mxu0 0.0
        %1563 = vmatpush2.xpose.msra.mxu0 0.0
        %1564 = vmatprep.subr.mxu0 0.0
        %1565 = vmatpush2.xpose.msra.mxu0 0.0
        %1566 = vmatprep.subr.mxu0 0.0
        %1567 = vmatpush2.xpose.msra.mxu0 0.0
        %1568 = vmatprep.subr.mxu0 0.0
        %1569 = vmatpush2.xpose.msra.mxu0 0.0
        %1570 = vmatprep.subr.mxu0 0.0
        %1571 = vmatpush2.xpose.msra.mxu0 0.0
        %1572 = vmatprep.mubr.f32.mxu0 0.0
        %1573 = vmatmul.mubr.f32.gmra.mxu0 %v1504
        %v1574 = vpop.f32.mrf.mxu0
        %v1575 = vadd.f32 %v1164, %v1574
        %v1576 = vpop.f32.mrf.mxu0
        %1577 = vdwg.mxu0
        %v1578 = vsel %vm1242, %v1575, -inf
        %1579 = vmax.xlane.f32.xlu0 %v1578
        %v1580 = vpop.xlane.xlu0 %1579
        %v1581 = vsub.f32 %v1575, %v1580
        %v1582 = vmul.f32 %v1581, 1.442695
        %v1583 = vpow.pop %v1582
        %v1584 = vsel %vm1242, %v1583, 0.0
        %1585 = vadd.xlane.f32.xlu0 %v1584
        %v1586 = vpop.xlane.xlu0 %1585
        %v1587 = vrcp.pop %v1586
        %v1588 = vmul.f32 %v1583, %v1587
        %1589 = vrot.lane.b32.xlu0 %v1158, 64
        %v1590 = vpop.permute.xlu0 %1589
        %v1593 = vsel %vm1242, %v1588, 0
        %1595 = vmatprep.subr.mxu0 0.0
        %1596 = vmatpush1.msra.mxu0 0.0
        %1597 = vmatprep.subr.mxu0 0.0
        %1598 = vmatpush1.msra.mxu0 0.0
        %1599 = vmatprep.subr.mxu0 0.0
        %1600 = vmatpush1.msra.mxu0 0.0
        %1601 = vmatprep.subr.mxu0 0.0
        %1602 = vmatpush1.msra.mxu0 0.0
        %1603 = vmatprep.subr.mxu0 0.0
        %1604 = vmatpush1.msra.mxu0 0.0
        %1605 = vmatprep.subr.mxu0 0.0
        %1606 = vmatpush1.msra.mxu0 0.0
        %1607 = vmatprep.subr.mxu0 0.0
        %1608 = vmatpush1.msra.mxu0 0.0
        %1609 = vmatprep.subr.mxu0 0.0
        %1610 = vmatpush1.msra.mxu0 0.0
        %1611 = vmatprep.subr.mxu0 0.0
        %1612 = vmatpush1.msra.mxu0 0.0
        %1613 = vmatprep.subr.mxu0 0.0
        %1614 = vmatpush1.msra.mxu0 0.0
        %1615 = vmatprep.subr.mxu0 0.0
        %1616 = vmatpush1.msra.mxu0 0.0
        %1617 = vmatprep.subr.mxu0 0.0
        %1618 = vmatpush1.msra.mxu0 0.0
        %1619 = vmatprep.subr.mxu0 0.0
        %1620 = vmatpush1.msra.mxu0 0.0
        %1621 = vmatprep.subr.mxu0 0.0
        %1622 = vmatpush1.msra.mxu0 0.0
        %1623 = vmatprep.subr.mxu0 0.0
        %1624 = vmatpush1.msra.mxu0 0.0
        %1625 = vmatprep.subr.mxu0 0.0
        %1626 = vmatpush1.msra.mxu0 %v1590
        %1627 = vmatprep.subr.mxu0 0.0
        %1628 = vmatpush2.msra.mxu0 0.0
        %1629 = vmatprep.subr.mxu0 0.0
        %1630 = vmatpush2.msra.mxu0 0.0
        %1631 = vmatprep.subr.mxu0 0.0
        %1632 = vmatpush2.msra.mxu0 0.0
        %1633 = vmatprep.subr.mxu0 0.0
        %1634 = vmatpush2.msra.mxu0 0.0
        %1635 = vmatprep.subr.mxu0 0.0
        %1636 = vmatpush2.msra.mxu0 0.0
        %1637 = vmatprep.subr.mxu0 0.0
        %1638 = vmatpush2.msra.mxu0 0.0
        %1639 = vmatprep.subr.mxu0 0.0
        %1640 = vmatpush2.msra.mxu0 0.0
        %1641 = vmatprep.subr.mxu0 0.0
        %1642 = vmatpush2.msra.mxu0 0.0
        %1643 = vmatprep.subr.mxu0 0.0
        %1644 = vmatpush2.msra.mxu0 0.0
        %1645 = vmatprep.subr.mxu0 0.0
        %1646 = vmatpush2.msra.mxu0 0.0
        %1647 = vmatprep.subr.mxu0 0.0
        %1648 = vmatpush2.msra.mxu0 0.0
        %1649 = vmatprep.subr.mxu0 0.0
        %1650 = vmatpush2.msra.mxu0 0.0
        %1651 = vmatprep.subr.mxu0 0.0
        %1652 = vmatpush2.msra.mxu0 0.0
        %1653 = vmatprep.subr.mxu0 0.0
        %1654 = vmatpush2.msra.mxu0 0.0
        %1655 = vmatprep.subr.mxu0 0.0
        %1656 = vmatpush2.msra.mxu0 0.0
        %1657 = vmatprep.subr.mxu0 0.0
        %1658 = vmatpush2.msra.mxu0 0.0
        %1659 = vmatprep.mubr.f32.mxu0 0.0
        %1660 = vmatmul.mubr.f32.gmra.mxu0 %v1593
        %v1661 = vpop.f32.mrf.mxu0
        %v1662 = vadd.f32 0.0, %v1661
        %v1663 = vpop.f32.mrf.mxu0
        %1664 = vdwg.mxu0
        %1666 = vrot.lane.b32.xlu0 %v1662, 64
        %v1667 = vpop.permute.xlu0 %1666
        %vm1669 = vcmask 785920
        %1670 = vst.msk [vmem:[#allocation2] sm:$0xff] %vm1669, %v1667
        %1671 = vrot.lane.b32.xlu0 %v1115, 32
        %v1672 = vpop.permute.xlu0 %1671
        %1673 = vrot.lane.b32.xlu0 %v1117, 32
        %v1674 = vpop.permute.xlu0 %1673
        %v1675 = vsel %vm1165, %v1672, 0
        %v1677 = vsel %vm1165, %v1674, 0
        %1679 = vmatprep.subr.mxu0 0.0
        %1680 = vmatpush1.xpose.msra.mxu0 0.0
        %1681 = vmatprep.subr.mxu0 0.0
        %1682 = vmatpush1.xpose.msra.mxu0 0.0
        %1683 = vmatprep.subr.mxu0 0.0
        %1684 = vmatpush1.xpose.msra.mxu0 0.0
        %1685 = vmatprep.subr.mxu0 0.0
        %1686 = vmatpush1.xpose.msra.mxu0 0.0
        %1687 = vmatprep.subr.mxu0 0.0
        %1688 = vmatpush1.xpose.msra.mxu0 0.0
        %1689 = vmatprep.subr.mxu0 0.0
        %1690 = vmatpush1.xpose.msra.mxu0 0.0
        %1691 = vmatprep.subr.mxu0 0.0
        %1692 = vmatpush1.xpose.msra.mxu0 0.0
        %1693 = vmatprep.subr.mxu0 0.0
        %1694 = vmatpush1.xpose.msra.mxu0 0.0
        %1695 = vmatprep.subr.mxu0 0.0
        %1696 = vmatpush1.xpose.msra.mxu0 0.0
        %1697 = vmatprep.subr.mxu0 0.0
        %1698 = vmatpush1.xpose.msra.mxu0 0.0
        %1699 = vmatprep.subr.mxu0 0.0
        %1700 = vmatpush1.xpose.msra.mxu0 0.0
        %1701 = vmatprep.subr.mxu0 0.0
        %1702 = vmatpush1.xpose.msra.mxu0 0.0
        %1703 = vmatprep.subr.mxu0 0.0
        %1704 = vmatpush1.xpose.msra.mxu0 0.0
        %1705 = vmatprep.subr.mxu0 0.0
        %1706 = vmatpush1.xpose.msra.mxu0 0.0
        %1707 = vmatprep.subr.mxu0 0.0
        %1708 = vmatpush1.xpose.msra.mxu0 0.0
        %1709 = vmatprep.subr.mxu0 0.0
        %1710 = vmatpush1.xpose.msra.mxu0 %v1677
        %1711 = vmatprep.subr.mxu0 0.0
        %1712 = vmatpush2.xpose.msra.mxu0 0.0
        %1713 = vmatprep.subr.mxu0 0.0
        %1714 = vmatpush2.xpose.msra.mxu0 0.0
        %1715 = vmatprep.subr.mxu0 0.0
        %1716 = vmatpush2.xpose.msra.mxu0 0.0
        %1717 = vmatprep.subr.mxu0 0.0
        %1718 = vmatpush2.xpose.msra.mxu0 0.0
        %1719 = vmatprep.subr.mxu0 0.0
        %1720 = vmatpush2.xpose.msra.mxu0 0.0
        %1721 = vmatprep.subr.mxu0 0.0
        %1722 = vmatpush2.xpose.msra.mxu0 0.0
        %1723 = vmatprep.subr.mxu0 0.0
        %1724 = vmatpush2.xpose.msra.mxu0 0.0
        %1725 = vmatprep.subr.mxu0 0.0
        %1726 = vmatpush2.xpose.msra.mxu0 0.0
        %1727 = vmatprep.subr.mxu0 0.0
        %1728 = vmatpush2.xpose.msra.mxu0 0.0
        %1729 = vmatprep.subr.mxu0 0.0
        %1730 = vmatpush2.xpose.msra.mxu0 0.0
        %1731 = vmatprep.subr.mxu0 0.0
        %1732 = vmatpush2.xpose.msra.mxu0 0.0
        %1733 = vmatprep.subr.mxu0 0.0
        %1734 = vmatpush2.xpose.msra.mxu0 0.0
        %1735 = vmatprep.subr.mxu0 0.0
        %1736 = vmatpush2.xpose.msra.mxu0 0.0
        %1737 = vmatprep.subr.mxu0 0.0
        %1738 = vmatpush2.xpose.msra.mxu0 0.0
        %1739 = vmatprep.subr.mxu0 0.0
        %1740 = vmatpush2.xpose.msra.mxu0 0.0
        %1741 = vmatprep.subr.mxu0 0.0
        %1742 = vmatpush2.xpose.msra.mxu0 0.0
        %1743 = vmatprep.mubr.f32.mxu0 0.0
        %1744 = vmatmul.mubr.f32.gmra.mxu0 %v1675
        %v1745 = vpop.f32.mrf.mxu0
        %v1746 = vadd.f32 %v1164, %v1745
        %v1747 = vpop.f32.mrf.mxu0
        %1748 = vdwg.mxu0
        %v1749 = vsel %vm1242, %v1746, -inf
        %1750 = vmax.xlane.f32.xlu0 %v1749
        %v1751 = vpop.xlane.xlu0 %1750
        %v1752 = vsub.f32 %v1746, %v1751
        %v1753 = vmul.f32 %v1752, 1.442695
        %v1754 = vpow.pop %v1753
        %v1755 = vsel %vm1242, %v1754, 0.0
        %1756 = vadd.xlane.f32.xlu0 %v1755
        %v1757 = vpop.xlane.xlu0 %1756
        %v1758 = vrcp.pop %v1757
        %v1759 = vmul.f32 %v1754, %v1758
        %1760 = vrot.lane.b32.xlu0 %v1158, 32
        %v1761 = vpop.permute.xlu0 %1760
        %v1764 = vsel %vm1242, %v1759, 0
        %1766 = vmatprep.subr.mxu0 0.0
        %1767 = vmatpush1.msra.mxu0 0.0
        %1768 = vmatprep.subr.mxu0 0.0
        %1769 = vmatpush1.msra.mxu0 0.0
        %1770 = vmatprep.subr.mxu0 0.0
        %1771 = vmatpush1.msra.mxu0 0.0
        %1772 = vmatprep.subr.mxu0 0.0
        %1773 = vmatpush1.msra.mxu0 0.0
        %1774 = vmatprep.subr.mxu0 0.0
        %1775 = vmatpush1.msra.mxu0 0.0
        %1776 = vmatprep.subr.mxu0 0.0
        %1777 = vmatpush1.msra.mxu0 0.0
        %1778 = vmatprep.subr.mxu0 0.0
        %1779 = vmatpush1.msra.mxu0 0.0
        %1780 = vmatprep.subr.mxu0 0.0
        %1781 = vmatpush1.msra.mxu0 0.0
        %1782 = vmatprep.subr.mxu0 0.0
        %1783 = vmatpush1.msra.mxu0 0.0
        %1784 = vmatprep.subr.mxu0 0.0
        %1785 = vmatpush1.msra.mxu0 0.0
        %1786 = vmatprep.subr.mxu0 0.0
        %1787 = vmatpush1.msra.mxu0 0.0
        %1788 = vmatprep.subr.mxu0 0.0
        %1789 = vmatpush1.msra.mxu0 0.0
        %1790 = vmatprep.subr.mxu0 0.0
        %1791 = vmatpush1.msra.mxu0 0.0
        %1792 = vmatprep.subr.mxu0 0.0
        %1793 = vmatpush1.msra.mxu0 0.0
        %1794 = vmatprep.subr.mxu0 0.0
        %1795 = vmatpush1.msra.mxu0 0.0
        %1796 = vmatprep.subr.mxu0 0.0
        %1797 = vmatpush1.msra.mxu0 %v1761
        %1798 = vmatprep.subr.mxu0 0.0
        %1799 = vmatpush2.msra.mxu0 0.0
        %1800 = vmatprep.subr.mxu0 0.0
        %1801 = vmatpush2.msra.mxu0 0.0
        %1802 = vmatprep.subr.mxu0 0.0
        %1803 = vmatpush2.msra.mxu0 0.0
        %1804 = vmatprep.subr.mxu0 0.0
        %1805 = vmatpush2.msra.mxu0 0.0
        %1806 = vmatprep.subr.mxu0 0.0
        %1807 = vmatpush2.msra.mxu0 0.0
        %1808 = vmatprep.subr.mxu0 0.0
        %1809 = vmatpush2.msra.mxu0 0.0
        %1810 = vmatprep.subr.mxu0 0.0
        %1811 = vmatpush2.msra.mxu0 0.0
        %1812 = vmatprep.subr.mxu0 0.0
        %1813 = vmatpush2.msra.mxu0 0.0
        %1814 = vmatprep.subr.mxu0 0.0
        %1815 = vmatpush2.msra.mxu0 0.0
        %1816 = vmatprep.subr.mxu0 0.0
        %1817 = vmatpush2.msra.mxu0 0.0
        %1818 = vmatprep.subr.mxu0 0.0
        %1819 = vmatpush2.msra.mxu0 0.0
        %1820 = vmatprep.subr.mxu0 0.0
        %1821 = vmatpush2.msra.mxu0 0.0
        %1822 = vmatprep.subr.mxu0 0.0
        %1823 = vmatpush2.msra.mxu0 0.0
        %1824 = vmatprep.subr.mxu0 0.0
        %1825 = vmatpush2.msra.mxu0 0.0
        %1826 = vmatprep.subr.mxu0 0.0
        %1827 = vmatpush2.msra.mxu0 0.0
        %1828 = vmatprep.subr.mxu0 0.0
        %1829 = vmatpush2.msra.mxu0 0.0
        %1830 = vmatprep.mubr.f32.mxu0 0.0
        %1831 = vmatmul.mubr.f32.gmra.mxu0 %v1764
        %v1832 = vpop.f32.mrf.mxu0
        %v1833 = vadd.f32 0.0, %v1832
        %v1834 = vpop.f32.mrf.mxu0
        %1835 = vdwg.mxu0
        %1837 = vrot.lane.b32.xlu0 %v1833, 96
        %v1838 = vpop.permute.xlu0 %1837
        %vm1840 = vcmask 1048320
        %1841 = vst.msk [vmem:[#allocation2] sm:$0xff] %vm1840, %v1838
        %v1843 = vsel %vm1165, %v1119, 0
        %v1846 = vsel %vm1165, %v1121, 0
        %1848 = vmatprep.subr.mxu0 0.0
        %1849 = vmatpush1.xpose.msra.mxu0 0.0
        %1850 = vmatprep.subr.mxu0 0.0
        %1851 = vmatpush1.xpose.msra.mxu0 0.0
        %1852 = vmatprep.subr.mxu0 0.0
        %1853 = vmatpush1.xpose.msra.mxu0 0.0
        %1854 = vmatprep.subr.mxu0 0.0
        %1855 = vmatpush1.xpose.msra.mxu0 0.0
        %1856 = vmatprep.subr.mxu0 0.0
        %1857 = vmatpush1.xpose.msra.mxu0 0.0
        %1858 = vmatprep.subr.mxu0 0.0
        %1859 = vmatpush1.xpose.msra.mxu0 0.0
        %1860 = vmatprep.subr.mxu0 0.0
        %1861 = vmatpush1.xpose.msra.mxu0 0.0
        %1862 = vmatprep.subr.mxu0 0.0
        %1863 = vmatpush1.xpose.msra.mxu0 0.0
        %1864 = vmatprep.subr.mxu0 0.0
        %1865 = vmatpush1.xpose.msra.mxu0 0.0
        %1866 = vmatprep.subr.mxu0 0.0
        %1867 = vmatpush1.xpose.msra.mxu0 0.0
        %1868 = vmatprep.subr.mxu0 0.0
        %1869 = vmatpush1.xpose.msra.mxu0 0.0
        %1870 = vmatprep.subr.mxu0 0.0
        %1871 = vmatpush1.xpose.msra.mxu0 0.0
        %1872 = vmatprep.subr.mxu0 0.0
        %1873 = vmatpush1.xpose.msra.mxu0 0.0
        %1874 = vmatprep.subr.mxu0 0.0
        %1875 = vmatpush1.xpose.msra.mxu0 0.0
        %1876 = vmatprep.subr.mxu0 0.0
        %1877 = vmatpush1.xpose.msra.mxu0 0.0
        %1878 = vmatprep.subr.mxu0 0.0
        %1879 = vmatpush1.xpose.msra.mxu0 %v1846
        %1880 = vmatprep.subr.mxu0 0.0
        %1881 = vmatpush2.xpose.msra.mxu0 0.0
        %1882 = vmatprep.subr.mxu0 0.0
        %1883 = vmatpush2.xpose.msra.mxu0 0.0
        %1884 = vmatprep.subr.mxu0 0.0
        %1885 = vmatpush2.xpose.msra.mxu0 0.0
        %1886 = vmatprep.subr.mxu0 0.0
        %1887 = vmatpush2.xpose.msra.mxu0 0.0
        %1888 = vmatprep.subr.mxu0 0.0
        %1889 = vmatpush2.xpose.msra.mxu0 0.0
        %1890 = vmatprep.subr.mxu0 0.0
        %1891 = vmatpush2.xpose.msra.mxu0 0.0
        %1892 = vmatprep.subr.mxu0 0.0
        %1893 = vmatpush2.xpose.msra.mxu0 0.0
        %1894 = vmatprep.subr.mxu0 0.0
        %1895 = vmatpush2.xpose.msra.mxu0 0.0
        %1896 = vmatprep.subr.mxu0 0.0
        %1897 = vmatpush2.xpose.msra.mxu0 0.0
        %1898 = vmatprep.subr.mxu0 0.0
        %1899 = vmatpush2.xpose.msra.mxu0 0.0
        %1900 = vmatprep.subr.mxu0 0.0
        %1901 = vmatpush2.xpose.msra.mxu0 0.0
        %1902 = vmatprep.subr.mxu0 0.0
        %1903 = vmatpush2.xpose.msra.mxu0 0.0
        %1904 = vmatprep.subr.mxu0 0.0
        %1905 = vmatpush2.xpose.msra.mxu0 0.0
        %1906 = vmatprep.subr.mxu0 0.0
        %1907 = vmatpush2.xpose.msra.mxu0 0.0
        %1908 = vmatprep.subr.mxu0 0.0
        %1909 = vmatpush2.xpose.msra.mxu0 0.0
        %1910 = vmatprep.subr.mxu0 0.0
        %1911 = vmatpush2.xpose.msra.mxu0 0.0
        %1912 = vmatprep.mubr.f32.mxu0 0.0
        %1913 = vmatmul.mubr.f32.gmra.mxu0 %v1843
        %v1914 = vpop.f32.mrf.mxu0
        %v1915 = vadd.f32 %v1164, %v1914
        %v1916 = vpop.f32.mrf.mxu0
        %1917 = vdwg.mxu0
        %v1918 = vsel %vm1242, %v1915, -inf
        %1919 = vmax.xlane.f32.xlu0 %v1918
        %v1920 = vpop.xlane.xlu0 %1919
        %v1921 = vsub.f32 %v1915, %v1920
        %v1922 = vmul.f32 %v1921, 1.442695
        %v1923 = vpow.pop %v1922
        %v1924 = vsel %vm1242, %v1923, 0.0
        %1925 = vadd.xlane.f32.xlu0 %v1924
        %v1926 = vpop.xlane.xlu0 %1925
        %v1927 = vrcp.pop %v1926
        %v1928 = vmul.f32 %v1923, %v1927
        %v1930 = vsel %vm1242, %v1928, 0
        %1932 = vmatprep.subr.mxu0 0.0
        %1933 = vmatpush1.msra.mxu0 0.0
        %1934 = vmatprep.subr.mxu0 0.0
        %1935 = vmatpush1.msra.mxu0 0.0
        %1936 = vmatprep.subr.mxu0 0.0
        %1937 = vmatpush1.msra.mxu0 0.0
        %1938 = vmatprep.subr.mxu0 0.0
        %1939 = vmatpush1.msra.mxu0 0.0
        %1940 = vmatprep.subr.mxu0 0.0
        %1941 = vmatpush1.msra.mxu0 0.0
        %1942 = vmatprep.subr.mxu0 0.0
        %1943 = vmatpush1.msra.mxu0 0.0
        %1944 = vmatprep.subr.mxu0 0.0
        %1945 = vmatpush1.msra.mxu0 0.0
        %1946 = vmatprep.subr.mxu0 0.0
        %1947 = vmatpush1.msra.mxu0 0.0
        %1948 = vmatprep.subr.mxu0 0.0
        %1949 = vmatpush1.msra.mxu0 0.0
        %1950 = vmatprep.subr.mxu0 0.0
        %1951 = vmatpush1.msra.mxu0 0.0
        %1952 = vmatprep.subr.mxu0 0.0
        %1953 = vmatpush1.msra.mxu0 0.0
        %1954 = vmatprep.subr.mxu0 0.0
        %1955 = vmatpush1.msra.mxu0 0.0
        %1956 = vmatprep.subr.mxu0 0.0
        %1957 = vmatpush1.msra.mxu0 0.0
        %1958 = vmatprep.subr.mxu0 0.0
        %1959 = vmatpush1.msra.mxu0 0.0
        %1960 = vmatprep.subr.mxu0 0.0
        %1961 = vmatpush1.msra.mxu0 0.0
        %1962 = vmatprep.subr.mxu0 0.0
        %1963 = vmatpush1.msra.mxu0 %v1161
        %1964 = vmatprep.subr.mxu0 0.0
        %1965 = vmatpush2.msra.mxu0 0.0
        %1966 = vmatprep.subr.mxu0 0.0
        %1967 = vmatpush2.msra.mxu0 0.0
        %1968 = vmatprep.subr.mxu0 0.0
        %1969 = vmatpush2.msra.mxu0 0.0
        %1970 = vmatprep.subr.mxu0 0.0
        %1971 = vmatpush2.msra.mxu0 0.0
        %1972 = vmatprep.subr.mxu0 0.0
        %1973 = vmatpush2.msra.mxu0 0.0
        %1974 = vmatprep.subr.mxu0 0.0
        %1975 = vmatpush2.msra.mxu0 0.0
        %1976 = vmatprep.subr.mxu0 0.0
        %1977 = vmatpush2.msra.mxu0 0.0
        %1978 = vmatprep.subr.mxu0 0.0
        %1979 = vmatpush2.msra.mxu0 0.0
        %1980 = vmatprep.subr.mxu0 0.0
        %1981 = vmatpush2.msra.mxu0 0.0
        %1982 = vmatprep.subr.mxu0 0.0
        %1983 = vmatpush2.msra.mxu0 0.0
        %1984 = vmatprep.subr.mxu0 0.0
        %1985 = vmatpush2.msra.mxu0 0.0
        %1986 = vmatprep.subr.mxu0 0.0
        %1987 = vmatpush2.msra.mxu0 0.0
        %1988 = vmatprep.subr.mxu0 0.0
        %1989 = vmatpush2.msra.mxu0 0.0
        %1990 = vmatprep.subr.mxu0 0.0
        %1991 = vmatpush2.msra.mxu0 0.0
        %1992 = vmatprep.subr.mxu0 0.0
        %1993 = vmatpush2.msra.mxu0 0.0
        %1994 = vmatprep.subr.mxu0 0.0
        %1995 = vmatpush2.msra.mxu0 0.0
        %1996 = vmatprep.mubr.f32.mxu0 0.0
        %1997 = vmatmul.mubr.f32.gmra.mxu0 %v1930
        %v1998 = vpop.f32.mrf.mxu0
        %v1999 = vadd.f32 0.0, %v1998
        %v2000 = vpop.f32.mrf.mxu0
        %2001 = vdwg.mxu0
        %2002 = vst.msk [vmem:[#allocation2 + $0x8] sm:$0xff] %vm1165, %v1999
        %2003 = vrot.lane.b32.xlu0 %v1119, 96
        %v2004 = vpop.permute.xlu0 %2003
        %2005 = vrot.lane.b32.xlu0 %v1121, 96
        %v2006 = vpop.permute.xlu0 %2005
        %v2007 = vsel %vm1165, %v2004, 0
        %v2009 = vsel %vm1165, %v2006, 0
        %2011 = vmatprep.subr.mxu0 0.0
        %2012 = vmatpush1.xpose.msra.mxu0 0.0
        %2013 = vmatprep.subr.mxu0 0.0
        %2014 = vmatpush1.xpose.msra.mxu0 0.0
        %2015 = vmatprep.subr.mxu0 0.0
        %2016 = vmatpush1.xpose.msra.mxu0 0.0
        %2017 = vmatprep.subr.mxu0 0.0
        %2018 = vmatpush1.xpose.msra.mxu0 0.0
        %2019 = vmatprep.subr.mxu0 0.0
        %2020 = vmatpush1.xpose.msra.mxu0 0.0
        %2021 = vmatprep.subr.mxu0 0.0
        %2022 = vmatpush1.xpose.msra.mxu0 0.0
        %2023 = vmatprep.subr.mxu0 0.0
        %2024 = vmatpush1.xpose.msra.mxu0 0.0
        %2025 = vmatprep.subr.mxu0 0.0
        %2026 = vmatpush1.xpose.msra.mxu0 0.0
        %2027 = vmatprep.subr.mxu0 0.0
        %2028 = vmatpush1.xpose.msra.mxu0 0.0
        %2029 = vmatprep.subr.mxu0 0.0
        %2030 = vmatpush1.xpose.msra.mxu0 0.0
        %2031 = vmatprep.subr.mxu0 0.0
        %2032 = vmatpush1.xpose.msra.mxu0 0.0
        %2033 = vmatprep.subr.mxu0 0.0
        %2034 = vmatpush1.xpose.msra.mxu0 0.0
        %2035 = vmatprep.subr.mxu0 0.0
        %2036 = vmatpush1.xpose.msra.mxu0 0.0
        %2037 = vmatprep.subr.mxu0 0.0
        %2038 = vmatpush1.xpose.msra.mxu0 0.0
        %2039 = vmatprep.subr.mxu0 0.0
        %2040 = vmatpush1.xpose.msra.mxu0 0.0
        %2041 = vmatprep.subr.mxu0 0.0
        %2042 = vmatpush1.xpose.msra.mxu0 %v2009
        %2043 = vmatprep.subr.mxu0 0.0
        %2044 = vmatpush2.xpose.msra.mxu0 0.0
        %2045 = vmatprep.subr.mxu0 0.0
        %2046 = vmatpush2.xpose.msra.mxu0 0.0
        %2047 = vmatprep.subr.mxu0 0.0
        %2048 = vmatpush2.xpose.msra.mxu0 0.0
        %2049 = vmatprep.subr.mxu0 0.0
        %2050 = vmatpush2.xpose.msra.mxu0 0.0
        %2051 = vmatprep.subr.mxu0 0.0
        %2052 = vmatpush2.xpose.msra.mxu0 0.0
        %2053 = vmatprep.subr.mxu0 0.0
        %2054 = vmatpush2.xpose.msra.mxu0 0.0
        %2055 = vmatprep.subr.mxu0 0.0
        %2056 = vmatpush2.xpose.msra.mxu0 0.0
        %2057 = vmatprep.subr.mxu0 0.0
        %2058 = vmatpush2.xpose.msra.mxu0 0.0
        %2059 = vmatprep.subr.mxu0 0.0
        %2060 = vmatpush2.xpose.msra.mxu0 0.0
        %2061 = vmatprep.subr.mxu0 0.0
        %2062 = vmatpush2.xpose.msra.mxu0 0.0
        %2063 = vmatprep.subr.mxu0 0.0
        %2064 = vmatpush2.xpose.msra.mxu0 0.0
        %2065 = vmatprep.subr.mxu0 0.0
        %2066 = vmatpush2.xpose.msra.mxu0 0.0
        %2067 = vmatprep.subr.mxu0 0.0
        %2068 = vmatpush2.xpose.msra.mxu0 0.0
        %2069 = vmatprep.subr.mxu0 0.0
        %2070 = vmatpush2.xpose.msra.mxu0 0.0
        %2071 = vmatprep.subr.mxu0 0.0
        %2072 = vmatpush2.xpose.msra.mxu0 0.0
        %2073 = vmatprep.subr.mxu0 0.0
        %2074 = vmatpush2.xpose.msra.mxu0 0.0
        %2075 = vmatprep.mubr.f32.mxu0 0.0
        %2076 = vmatmul.mubr.f32.gmra.mxu0 %v2007
        %v2077 = vpop.f32.mrf.mxu0
        %v2078 = vadd.f32 %v1164, %v2077
        %v2079 = vpop.f32.mrf.mxu0
        %2080 = vdwg.mxu0
        %v2081 = vsel %vm1242, %v2078, -inf
        %2082 = vmax.xlane.f32.xlu0 %v2081
        %v2083 = vpop.xlane.xlu0 %2082
        %v2084 = vsub.f32 %v2078, %v2083
        %v2085 = vmul.f32 %v2084, 1.442695
        %v2086 = vpow.pop %v2085
        %v2087 = vsel %vm1242, %v2086, 0.0
        %2088 = vadd.xlane.f32.xlu0 %v2087
        %v2089 = vpop.xlane.xlu0 %2088
        %v2090 = vrcp.pop %v2089
        %v2091 = vmul.f32 %v2086, %v2090
        %2093 = vrot.lane.b32.xlu0 %v1161, 96
        %v2094 = vpop.permute.xlu0 %2093
        %v2097 = vsel %vm1242, %v2091, 0
        %2099 = vmatprep.subr.mxu0 0.0
        %2100 = vmatpush1.msra.mxu0 0.0
        %2101 = vmatprep.subr.mxu0 0.0
        %2102 = vmatpush1.msra.mxu0 0.0
        %2103 = vmatprep.subr.mxu0 0.0
        %2104 = vmatpush1.msra.mxu0 0.0
        %2105 = vmatprep.subr.mxu0 0.0
        %2106 = vmatpush1.msra.mxu0 0.0
        %2107 = vmatprep.subr.mxu0 0.0
        %2108 = vmatpush1.msra.mxu0 0.0
        %2109 = vmatprep.subr.mxu0 0.0
        %2110 = vmatpush1.msra.mxu0 0.0
        %2111 = vmatprep.subr.mxu0 0.0
        %2112 = vmatpush1.msra.mxu0 0.0
        %2113 = vmatprep.subr.mxu0 0.0
        %2114 = vmatpush1.msra.mxu0 0.0
        %2115 = vmatprep.subr.mxu0 0.0
        %2116 = vmatpush1.msra.mxu0 0.0
        %2117 = vmatprep.subr.mxu0 0.0
        %2118 = vmatpush1.msra.mxu0 0.0
        %2119 = vmatprep.subr.mxu0 0.0
        %2120 = vmatpush1.msra.mxu0 0.0
        %2121 = vmatprep.subr.mxu0 0.0
        %2122 = vmatpush1.msra.mxu0 0.0
        %2123 = vmatprep.subr.mxu0 0.0
        %2124 = vmatpush1.msra.mxu0 0.0
        %2125 = vmatprep.subr.mxu0 0.0
        %2126 = vmatpush1.msra.mxu0 0.0
        %2127 = vmatprep.subr.mxu0 0.0
        %2128 = vmatpush1.msra.mxu0 0.0
        %2129 = vmatprep.subr.mxu0 0.0
        %2130 = vmatpush1.msra.mxu0 %v2094
        %2131 = vmatprep.subr.mxu0 0.0
        %2132 = vmatpush2.msra.mxu0 0.0
        %2133 = vmatprep.subr.mxu0 0.0
        %2134 = vmatpush2.msra.mxu0 0.0
        %2135 = vmatprep.subr.mxu0 0.0
        %2136 = vmatpush2.msra.mxu0 0.0
        %2137 = vmatprep.subr.mxu0 0.0
        %2138 = vmatpush2.msra.mxu0 0.0
        %2139 = vmatprep.subr.mxu0 0.0
        %2140 = vmatpush2.msra.mxu0 0.0
        %2141 = vmatprep.subr.mxu0 0.0
        %2142 = vmatpush2.msra.mxu0 0.0
        %2143 = vmatprep.subr.mxu0 0.0
        %2144 = vmatpush2.msra.mxu0 0.0
        %2145 = vmatprep.subr.mxu0 0.0
        %2146 = vmatpush2.msra.mxu0 0.0
        %2147 = vmatprep.subr.mxu0 0.0
        %2148 = vmatpush2.msra.mxu0 0.0
        %2149 = vmatprep.subr.mxu0 0.0
        %2150 = vmatpush2.msra.mxu0 0.0
        %2151 = vmatprep.subr.mxu0 0.0
        %2152 = vmatpush2.msra.mxu0 0.0
        %2153 = vmatprep.subr.mxu0 0.0
        %2154 = vmatpush2.msra.mxu0 0.0
        %2155 = vmatprep.subr.mxu0 0.0
        %2156 = vmatpush2.msra.mxu0 0.0
        %2157 = vmatprep.subr.mxu0 0.0
        %2158 = vmatpush2.msra.mxu0 0.0
        %2159 = vmatprep.subr.mxu0 0.0
        %2160 = vmatpush2.msra.mxu0 0.0
        %2161 = vmatprep.subr.mxu0 0.0
        %2162 = vmatpush2.msra.mxu0 0.0
        %2163 = vmatprep.mubr.f32.mxu0 0.0
        %2164 = vmatmul.mubr.f32.gmra.mxu0 %v2097
        %v2165 = vpop.f32.mrf.mxu0
        %v2166 = vadd.f32 0.0, %v2165
        %v2167 = vpop.f32.mrf.mxu0
        %2168 = vdwg.mxu0
        %2170 = vrot.lane.b32.xlu0 %v2166, 32
        %v2171 = vpop.permute.xlu0 %2170
        %2173 = vst.msk [vmem:[#allocation2 + $0x8] sm:$0xff] %vm1498, %v2171
        %2174 = vrot.lane.b32.xlu0 %v1119, 64
        %v2175 = vpop.permute.xlu0 %2174
        %2176 = vrot.lane.b32.xlu0 %v1121, 64
        %v2177 = vpop.permute.xlu0 %2176
        %v2178 = vsel %vm1165, %v2175, 0
        %v2180 = vsel %vm1165, %v2177, 0
        %2182 = vmatprep.subr.mxu0 0.0
        %2183 = vmatpush1.xpose.msra.mxu0 0.0
        %2184 = vmatprep.subr.mxu0 0.0
        %2185 = vmatpush1.xpose.msra.mxu0 0.0
        %2186 = vmatprep.subr.mxu0 0.0
        %2187 = vmatpush1.xpose.msra.mxu0 0.0
        %2188 = vmatprep.subr.mxu0 0.0
        %2189 = vmatpush1.xpose.msra.mxu0 0.0
        %2190 = vmatprep.subr.mxu0 0.0
        %2191 = vmatpush1.xpose.msra.mxu0 0.0
        %2192 = vmatprep.subr.mxu0 0.0
        %2193 = vmatpush1.xpose.msra.mxu0 0.0
        %2194 = vmatprep.subr.mxu0 0.0
        %2195 = vmatpush1.xpose.msra.mxu0 0.0
        %2196 = vmatprep.subr.mxu0 0.0
        %2197 = vmatpush1.xpose.msra.mxu0 0.0
        %2198 = vmatprep.subr.mxu0 0.0
        %2199 = vmatpush1.xpose.msra.mxu0 0.0
        %2200 = vmatprep.subr.mxu0 0.0
        %2201 = vmatpush1.xpose.msra.mxu0 0.0
        %2202 = vmatprep.subr.mxu0 0.0
        %2203 = vmatpush1.xpose.msra.mxu0 0.0
        %2204 = vmatprep.subr.mxu0 0.0
        %2205 = vmatpush1.xpose.msra.mxu0 0.0
        %2206 = vmatprep.subr.mxu0 0.0
        %2207 = vmatpush1.xpose.msra.mxu0 0.0
        %2208 = vmatprep.subr.mxu0 0.0
        %2209 = vmatpush1.xpose.msra.mxu0 0.0
        %2210 = vmatprep.subr.mxu0 0.0
        %2211 = vmatpush1.xpose.msra.mxu0 0.0
        %2212 = vmatprep.subr.mxu0 0.0
        %2213 = vmatpush1.xpose.msra.mxu0 %v2180
        %2214 = vmatprep.subr.mxu0 0.0
        %2215 = vmatpush2.xpose.msra.mxu0 0.0
        %2216 = vmatprep.subr.mxu0 0.0
        %2217 = vmatpush2.xpose.msra.mxu0 0.0
        %2218 = vmatprep.subr.mxu0 0.0
        %2219 = vmatpush2.xpose.msra.mxu0 0.0
        %2220 = vmatprep.subr.mxu0 0.0
        %2221 = vmatpush2.xpose.msra.mxu0 0.0
        %2222 = vmatprep.subr.mxu0 0.0
        %2223 = vmatpush2.xpose.msra.mxu0 0.0
        %2224 = vmatprep.subr.mxu0 0.0
        %2225 = vmatpush2.xpose.msra.mxu0 0.0
        %2226 = vmatprep.subr.mxu0 0.0
        %2227 = vmatpush2.xpose.msra.mxu0 0.0
        %2228 = vmatprep.subr.mxu0 0.0
        %2229 = vmatpush2.xpose.msra.mxu0 0.0
        %2230 = vmatprep.subr.mxu0 0.0
        %2231 = vmatpush2.xpose.msra.mxu0 0.0
        %2232 = vmatprep.subr.mxu0 0.0
        %2233 = vmatpush2.xpose.msra.mxu0 0.0
        %2234 = vmatprep.subr.mxu0 0.0
        %2235 = vmatpush2.xpose.msra.mxu0 0.0
        %2236 = vmatprep.subr.mxu0 0.0
        %2237 = vmatpush2.xpose.msra.mxu0 0.0
        %2238 = vmatprep.subr.mxu0 0.0
        %2239 = vmatpush2.xpose.msra.mxu0 0.0
        %2240 = vmatprep.subr.mxu0 0.0
        %2241 = vmatpush2.xpose.msra.mxu0 0.0
        %2242 = vmatprep.subr.mxu0 0.0
        %2243 = vmatpush2.xpose.msra.mxu0 0.0
        %2244 = vmatprep.subr.mxu0 0.0
        %2245 = vmatpush2.xpose.msra.mxu0 0.0
        %2246 = vmatprep.mubr.f32.mxu0 0.0
        %2247 = vmatmul.mubr.f32.gmra.mxu0 %v2178
        %v2248 = vpop.f32.mrf.mxu0
        %v2249 = vadd.f32 %v1164, %v2248
        %v2250 = vpop.f32.mrf.mxu0
        %2251 = vdwg.mxu0
        %v2252 = vsel %vm1242, %v2249, -inf
        %2253 = vmax.xlane.f32.xlu0 %v2252
        %v2254 = vpop.xlane.xlu0 %2253
        %v2255 = vsub.f32 %v2249, %v2254
        %v2256 = vmul.f32 %v2255, 1.442695
        %v2257 = vpow.pop %v2256
        %v2258 = vsel %vm1242, %v2257, 0.0
        %2259 = vadd.xlane.f32.xlu0 %v2258
        %v2260 = vpop.xlane.xlu0 %2259
        %v2261 = vrcp.pop %v2260
        %v2262 = vmul.f32 %v2257, %v2261
        %2263 = vrot.lane.b32.xlu0 %v1161, 64
        %v2264 = vpop.permute.xlu0 %2263
        %v2267 = vsel %vm1242, %v2262, 0
        %2269 = vmatprep.subr.mxu0 0.0
        %2270 = vmatpush1.msra.mxu0 0.0
        %2271 = vmatprep.subr.mxu0 0.0
        %2272 = vmatpush1.msra.mxu0 0.0
        %2273 = vmatprep.subr.mxu0 0.0
        %2274 = vmatpush1.msra.mxu0 0.0
        %2275 = vmatprep.subr.mxu0 0.0
        %2276 = vmatpush1.msra.mxu0 0.0
        %2277 = vmatprep.subr.mxu0 0.0
        %2278 = vmatpush1.msra.mxu0 0.0
        %2279 = vmatprep.subr.mxu0 0.0
        %2280 = vmatpush1.msra.mxu0 0.0
        %2281 = vmatprep.subr.mxu0 0.0
        %2282 = vmatpush1.msra.mxu0 0.0
        %2283 = vmatprep.subr.mxu0 0.0
        %2284 = vmatpush1.msra.mxu0 0.0
        %2285 = vmatprep.subr.mxu0 0.0
        %2286 = vmatpush1.msra.mxu0 0.0
        %2287 = vmatprep.subr.mxu0 0.0
        %2288 = vmatpush1.msra.mxu0 0.0
        %2289 = vmatprep.subr.mxu0 0.0
        %2290 = vmatpush1.msra.mxu0 0.0
        %2291 = vmatprep.subr.mxu0 0.0
        %2292 = vmatpush1.msra.mxu0 0.0
        %2293 = vmatprep.subr.mxu0 0.0
        %2294 = vmatpush1.msra.mxu0 0.0
        %2295 = vmatprep.subr.mxu0 0.0
        %2296 = vmatpush1.msra.mxu0 0.0
        %2297 = vmatprep.subr.mxu0 0.0
        %2298 = vmatpush1.msra.mxu0 0.0
        %2299 = vmatprep.subr.mxu0 0.0
        %2300 = vmatpush1.msra.mxu0 %v2264
        %2301 = vmatprep.subr.mxu0 0.0
        %2302 = vmatpush2.msra.mxu0 0.0
        %2303 = vmatprep.subr.mxu0 0.0
        %2304 = vmatpush2.msra.mxu0 0.0
        %2305 = vmatprep.subr.mxu0 0.0
        %2306 = vmatpush2.msra.mxu0 0.0
        %2307 = vmatprep.subr.mxu0 0.0
        %2308 = vmatpush2.msra.mxu0 0.0
        %2309 = vmatprep.subr.mxu0 0.0
        %2310 = vmatpush2.msra.mxu0 0.0
        %2311 = vmatprep.subr.mxu0 0.0
        %2312 = vmatpush2.msra.mxu0 0.0
        %2313 = vmatprep.subr.mxu0 0.0
        %2314 = vmatpush2.msra.mxu0 0.0
        %2315 = vmatprep.subr.mxu0 0.0
        %2316 = vmatpush2.msra.mxu0 0.0
        %2317 = vmatprep.subr.mxu0 0.0
        %2318 = vmatpush2.msra.mxu0 0.0
        %2319 = vmatprep.subr.mxu0 0.0
        %2320 = vmatpush2.msra.mxu0 0.0
        %2321 = vmatprep.subr.mxu0 0.0
        %2322 = vmatpush2.msra.mxu0 0.0
        %2323 = vmatprep.subr.mxu0 0.0
        %2324 = vmatpush2.msra.mxu0 0.0
        %2325 = vmatprep.subr.mxu0 0.0
        %2326 = vmatpush2.msra.mxu0 0.0
        %2327 = vmatprep.subr.mxu0 0.0
        %2328 = vmatpush2.msra.mxu0 0.0
        %2329 = vmatprep.subr.mxu0 0.0
        %2330 = vmatpush2.msra.mxu0 0.0
        %2331 = vmatprep.subr.mxu0 0.0
        %2332 = vmatpush2.msra.mxu0 0.0
        %2333 = vmatprep.mubr.f32.mxu0 0.0
        %2334 = vmatmul.mubr.f32.gmra.mxu0 %v2267
        %v2335 = vpop.f32.mrf.mxu0
        %v2336 = vadd.f32 0.0, %v2335
        %v2337 = vpop.f32.mrf.mxu0
        %2338 = vdwg.mxu0
        %2340 = vrot.lane.b32.xlu0 %v2336, 64
        %v2341 = vpop.permute.xlu0 %2340
        %2343 = vst.msk [vmem:[#allocation2 + $0x8] sm:$0xff] %vm1669, %v2341
        %2344 = vrot.lane.b32.xlu0 %v1119, 32
        %v2345 = vpop.permute.xlu0 %2344
        %2346 = vrot.lane.b32.xlu0 %v1121, 32
        %v2347 = vpop.permute.xlu0 %2346
        %v2348 = vsel %vm1165, %v2345, 0
        %v2350 = vsel %vm1165, %v2347, 0
        %2352 = vmatprep.subr.mxu0 0.0
        %2353 = vmatpush1.xpose.msra.mxu0 0.0
        %2354 = vmatprep.subr.mxu0 0.0
        %2355 = vmatpush1.xpose.msra.mxu0 0.0
        %2356 = vmatprep.subr.mxu0 0.0
        %2357 = vmatpush1.xpose.msra.mxu0 0.0
        %2358 = vmatprep.subr.mxu0 0.0
        %2359 = vmatpush1.xpose.msra.mxu0 0.0
        %2360 = vmatprep.subr.mxu0 0.0
        %2361 = vmatpush1.xpose.msra.mxu0 0.0
        %2362 = vmatprep.subr.mxu0 0.0
        %2363 = vmatpush1.xpose.msra.mxu0 0.0
        %2364 = vmatprep.subr.mxu0 0.0
        %2365 = vmatpush1.xpose.msra.mxu0 0.0
        %2366 = vmatprep.subr.mxu0 0.0
        %2367 = vmatpush1.xpose.msra.mxu0 0.0
        %2368 = vmatprep.subr.mxu0 0.0
        %2369 = vmatpush1.xpose.msra.mxu0 0.0
        %2370 = vmatprep.subr.mxu0 0.0
        %2371 = vmatpush1.xpose.msra.mxu0 0.0
        %2372 = vmatprep.subr.mxu0 0.0
        %2373 = vmatpush1.xpose.msra.mxu0 0.0
        %2374 = vmatprep.subr.mxu0 0.0
        %2375 = vmatpush1.xpose.msra.mxu0 0.0
        %2376 = vmatprep.subr.mxu0 0.0
        %2377 = vmatpush1.xpose.msra.mxu0 0.0
        %2378 = vmatprep.subr.mxu0 0.0
        %2379 = vmatpush1.xpose.msra.mxu0 0.0
        %2380 = vmatprep.subr.mxu0 0.0
        %2381 = vmatpush1.xpose.msra.mxu0 0.0
        %2382 = vmatprep.subr.mxu0 0.0
        %2383 = vmatpush1.xpose.msra.mxu0 %v2350
        %2384 = vmatprep.subr.mxu0 0.0
        %2385 = vmatpush2.xpose.msra.mxu0 0.0
        %2386 = vmatprep.subr.mxu0 0.0
        %2387 = vmatpush2.xpose.msra.mxu0 0.0
        %2388 = vmatprep.subr.mxu0 0.0
        %2389 = vmatpush2.xpose.msra.mxu0 0.0
        %2390 = vmatprep.subr.mxu0 0.0
        %2391 = vmatpush2.xpose.msra.mxu0 0.0
        %2392 = vmatprep.subr.mxu0 0.0
        %2393 = vmatpush2.xpose.msra.mxu0 0.0
        %2394 = vmatprep.subr.mxu0 0.0
        %2395 = vmatpush2.xpose.msra.mxu0 0.0
        %2396 = vmatprep.subr.mxu0 0.0
        %2397 = vmatpush2.xpose.msra.mxu0 0.0
        %2398 = vmatprep.subr.mxu0 0.0
        %2399 = vmatpush2.xpose.msra.mxu0 0.0
        %2400 = vmatprep.subr.mxu0 0.0
        %2401 = vmatpush2.xpose.msra.mxu0 0.0
        %2402 = vmatprep.subr.mxu0 0.0
        %2403 = vmatpush2.xpose.msra.mxu0 0.0
        %2404 = vmatprep.subr.mxu0 0.0
        %2405 = vmatpush2.xpose.msra.mxu0 0.0
        %2406 = vmatprep.subr.mxu0 0.0
        %2407 = vmatpush2.xpose.msra.mxu0 0.0
        %2408 = vmatprep.subr.mxu0 0.0
        %2409 = vmatpush2.xpose.msra.mxu0 0.0
        %2410 = vmatprep.subr.mxu0 0.0
        %2411 = vmatpush2.xpose.msra.mxu0 0.0
        %2412 = vmatprep.subr.mxu0 0.0
        %2413 = vmatpush2.xpose.msra.mxu0 0.0
        %2414 = vmatprep.subr.mxu0 0.0
        %2415 = vmatpush2.xpose.msra.mxu0 0.0
        %2416 = vmatprep.mubr.f32.mxu0 0.0
        %2417 = vmatmul.mubr.f32.gmra.mxu0 %v2348
        %v2418 = vpop.f32.mrf.mxu0
        %v2419 = vadd.f32 %v1164, %v2418
        %v2420 = vpop.f32.mrf.mxu0
        %2421 = vdwg.mxu0
        %v2422 = vsel %vm1242, %v2419, -inf
        %2423 = vmax.xlane.f32.xlu0 %v2422
        %v2424 = vpop.xlane.xlu0 %2423
        %v2425 = vsub.f32 %v2419, %v2424
        %v2426 = vmul.f32 %v2425, 1.442695
        %v2427 = vpow.pop %v2426
        %v2428 = vsel %vm1242, %v2427, 0.0
        %2429 = vadd.xlane.f32.xlu0 %v2428
        %v2430 = vpop.xlane.xlu0 %2429
        %v2431 = vrcp.pop %v2430
        %v2432 = vmul.f32 %v2427, %v2431
        %2433 = vrot.lane.b32.xlu0 %v1161, 32
        %v2434 = vpop.permute.xlu0 %2433
        %v2437 = vsel %vm1242, %v2432, 0
        %2439 = vmatprep.subr.mxu0 0.0
        %2440 = vmatpush1.msra.mxu0 0.0
        %2441 = vmatprep.subr.mxu0 0.0
        %2442 = vmatpush1.msra.mxu0 0.0
        %2443 = vmatprep.subr.mxu0 0.0
        %2444 = vmatpush1.msra.mxu0 0.0
        %2445 = vmatprep.subr.mxu0 0.0
        %2446 = vmatpush1.msra.mxu0 0.0
        %2447 = vmatprep.subr.mxu0 0.0
        %2448 = vmatpush1.msra.mxu0 0.0
        %2449 = vmatprep.subr.mxu0 0.0
        %2450 = vmatpush1.msra.mxu0 0.0
        %2451 = vmatprep.subr.mxu0 0.0
        %2452 = vmatpush1.msra.mxu0 0.0
        %2453 = vmatprep.subr.mxu0 0.0
        %2454 = vmatpush1.msra.mxu0 0.0
        %2455 = vmatprep.subr.mxu0 0.0
        %2456 = vmatpush1.msra.mxu0 0.0
        %2457 = vmatprep.subr.mxu0 0.0
        %2458 = vmatpush1.msra.mxu0 0.0
        %2459 = vmatprep.subr.mxu0 0.0
        %2460 = vmatpush1.msra.mxu0 0.0
        %2461 = vmatprep.subr.mxu0 0.0
        %2462 = vmatpush1.msra.mxu0 0.0
        %2463 = vmatprep.subr.mxu0 0.0
        %2464 = vmatpush1.msra.mxu0 0.0
        %2465 = vmatprep.subr.mxu0 0.0
        %2466 = vmatpush1.msra.mxu0 0.0
        %2467 = vmatprep.subr.mxu0 0.0
        %2468 = vmatpush1.msra.mxu0 0.0
        %2469 = vmatprep.subr.mxu0 0.0
        %2470 = vmatpush1.msra.mxu0 %v2434
        %2471 = vmatprep.subr.mxu0 0.0
        %2472 = vmatpush2.msra.mxu0 0.0
        %2473 = vmatprep.subr.mxu0 0.0
        %2474 = vmatpush2.msra.mxu0 0.0
        %2475 = vmatprep.subr.mxu0 0.0
        %2476 = vmatpush2.msra.mxu0 0.0
        %2477 = vmatprep.subr.mxu0 0.0
        %2478 = vmatpush2.msra.mxu0 0.0
        %2479 = vmatprep.subr.mxu0 0.0
        %2480 = vmatpush2.msra.mxu0 0.0
        %2481 = vmatprep.subr.mxu0 0.0
        %2482 = vmatpush2.msra.mxu0 0.0
        %2483 = vmatprep.subr.mxu0 0.0
        %2484 = vmatpush2.msra.mxu0 0.0
        %2485 = vmatprep.subr.mxu0 0.0
        %2486 = vmatpush2.msra.mxu0 0.0
        %2487 = vmatprep.subr.mxu0 0.0
        %2488 = vmatpush2.msra.mxu0 0.0
        %2489 = vmatprep.subr.mxu0 0.0
        %2490 = vmatpush2.msra.mxu0 0.0
        %2491 = vmatprep.subr.mxu0 0.0
        %2492 = vmatpush2.msra.mxu0 0.0
        %2493 = vmatprep.subr.mxu0 0.0
        %2494 = vmatpush2.msra.mxu0 0.0
        %2495 = vmatprep.subr.mxu0 0.0
        %2496 = vmatpush2.msra.mxu0 0.0
        %2497 = vmatprep.subr.mxu0 0.0
        %2498 = vmatpush2.msra.mxu0 0.0
        %2499 = vmatprep.subr.mxu0 0.0
        %2500 = vmatpush2.msra.mxu0 0.0
        %2501 = vmatprep.subr.mxu0 0.0
        %2502 = vmatpush2.msra.mxu0 0.0
        %2503 = vmatprep.mubr.f32.mxu0 0.0
        %2504 = vmatmul.mubr.f32.gmra.mxu0 %v2437
        %v2505 = vpop.f32.mrf.mxu0
        %v2506 = vadd.f32 0.0, %v2505
        %v2507 = vpop.f32.mrf.mxu0
        %2508 = vdwg.mxu0
        %2510 = vrot.lane.b32.xlu0 %v2506, 96
        %v2511 = vpop.permute.xlu0 %2510
        %2513 = vst.msk [vmem:[#allocation2 + $0x8] sm:$0xff] %vm1840, %v2511
        %v2514 = vld [vmem:[#allocation2] sm:$0xff]
        %v2515 = vld [vmem:[#allocation2 + $0x8] sm:$0xff]
        %v2516 = vpack.c.bf16 %v2515, %v2514
        %v2517 = vld [vmem:[%s705] sm:$0xf]
        %v2518 = vld [vmem:[%s705 + $0x4] sm:$0xf]
        %v2519 = vld [vmem:[%s705 + $0x8] sm:$0xf]
        %v2520 = vld [vmem:[%s705 + $0xc] sm:$0xf]
        %v2521 = vld [vmem:[%s705 + $0x10] sm:$0xf]
        %v2522 = vld [vmem:[%s705 + $0x14] sm:$0xf]
        %v2523 = vld [vmem:[%s705 + $0x18] sm:$0xf]
        %v2524 = vld [vmem:[%s705 + $0x1c] sm:$0xf]
        %v2525 = vld [vmem:[%s705 + $0x20] sm:$0xf]
        %v2526 = vld [vmem:[%s705 + $0x24] sm:$0xf]
        %v2527 = vld [vmem:[%s705 + $0x28] sm:$0xf]
        %v2528 = vld [vmem:[%s705 + $0x2c] sm:$0xf]
        %v2529 = vld [vmem:[%s705 + $0x30] sm:$0xf]
        %v2530 = vld [vmem:[%s705 + $0x34] sm:$0xf]
        %v2531 = vld [vmem:[%s705 + $0x38] sm:$0xf]
        %v2532 = vld [vmem:[%s705 + $0x3c] sm:$0xf]
        %v2533 = vld [vmem:[%s713] sm:$0x1]
        %v2535 = vlaneseq
        %v2536 = vshrl.u32 %v2535, 7
        %v2537 = vsub.s32 0, %v2536
        %v2538 = vrot.slane %v2533, %v2537
        %v2556 = vunpack.c.l.b16 %v2517
        %v2557 = vunpack.c.l.b16 %v2518
        %v2558 = vunpack.c.l.b16 %v2519
        %v2559 = vunpack.c.l.b16 %v2520
        %v2560 = vunpack.c.l.b16 %v2521
        %v2561 = vunpack.c.l.b16 %v2522
        %v2562 = vunpack.c.l.b16 %v2523
        %v2563 = vunpack.c.l.b16 %v2524
        %v2564 = vunpack.c.l.b16 %v2525
        %v2565 = vunpack.c.l.b16 %v2526
        %v2566 = vunpack.c.l.b16 %v2527
        %v2567 = vunpack.c.l.b16 %v2528
        %v2568 = vunpack.c.l.b16 %v2529
        %v2569 = vunpack.c.l.b16 %v2530
        %v2570 = vunpack.c.l.b16 %v2531
        %v2571 = vunpack.c.l.b16 %v2532
        %v2572 = vpack.c.b16 %v2557, %v2556
        %v2573 = vpack.c.b16 %v2559, %v2558
        %v2574 = vpack.c.b16 %v2561, %v2560
        %v2575 = vpack.c.b16 %v2563, %v2562
        %v2576 = vpack.c.b16 %v2565, %v2564
        %v2577 = vpack.c.b16 %v2567, %v2566
        %v2578 = vpack.c.b16 %v2569, %v2568
        %v2579 = vpack.c.b16 %v2571, %v2570
        %2588 = vmatprep.subr.bf16.mxu0 0
        %2589 = vmatpush1.bf16.msra.mxu0 %v2579
        %2590 = vmatprep.subr.bf16.mxu0 0
        %2591 = vmatpush1.bf16.msra.mxu0 %v2578
        %2592 = vmatprep.subr.bf16.mxu0 0
        %2593 = vmatpush1.bf16.msra.mxu0 %v2577
        %2594 = vmatprep.subr.bf16.mxu0 0
        %2595 = vmatpush1.bf16.msra.mxu0 %v2576
        %2596 = vmatprep.subr.bf16.mxu0 0
        %2597 = vmatpush1.bf16.msra.mxu0 %v2575
        %2598 = vmatprep.subr.bf16.mxu0 0
        %2599 = vmatpush1.bf16.msra.mxu0 %v2574
        %2600 = vmatprep.subr.bf16.mxu0 0
        %2601 = vmatpush1.bf16.msra.mxu0 %v2573
        %2602 = vmatprep.subr.bf16.mxu0 0
        %2603 = vmatpush1.bf16.msra.mxu0 %v2572
        %2604 = vmatprep.subr.bf16.mxu0 0
        %2605 = vmatpush2.bf16.msra.mxu0 0
        %2606 = vmatprep.subr.bf16.mxu0 0
        %2607 = vmatpush2.bf16.msra.mxu0 0
        %2608 = vmatprep.subr.bf16.mxu0 0
        %2609 = vmatpush2.bf16.msra.mxu0 0
        %2610 = vmatprep.subr.bf16.mxu0 0
        %2611 = vmatpush2.bf16.msra.mxu0 0
        %2612 = vmatprep.subr.bf16.mxu0 0
        %2613 = vmatpush2.bf16.msra.mxu0 0
        %2614 = vmatprep.subr.bf16.mxu0 0
        %2615 = vmatpush2.bf16.msra.mxu0 0
        %2616 = vmatprep.subr.bf16.mxu0 0
        %2617 = vmatpush2.bf16.msra.mxu0 0
        %2618 = vmatprep.subr.bf16.mxu0 0
        %2619 = vmatpush2.bf16.msra.mxu0 0
        %2620 = vmatprep.mubr.bf16.mxu0 0
        %2621 = vmatmul.mubr.bf16.gmra.mxu0 %v2516
        %v2622 = vpop.f32.mrf.mxu0
        %v2623 = vadd.f32 %v2538, %v2622
        %v2624 = vpop.f32.mrf.mxu0
        %v2625 = vpop.f32.mrf.mxu0
        %v2626 = vadd.f32 %v2538, %v2625
        %v2627 = vpop.f32.mrf.mxu0
        %2628 = vdwg.mxu0
        %v2629 = vadd.f32 %v859, %v2623
        %v2630 = vadd.f32 %v860, %v2626
        %v2631 = vld [vmem:[%s721] sm:$0x1]
        %v2632 = vld [vmem:[%s729] sm:$0x1]
        %2633 = vadd.xlane.f32.xlu0 %v2629
        %v2634 = vpop.xlane.xlu0 %2633
        %2635 = vadd.xlane.f32.xlu0 %v2630
        %v2636 = vpop.xlane.xlu0 %2635
        %v2637 = vmul.f32 %v2634, %v867
        %v2638 = vmul.f32 %v2636, %v867
        %v2639 = vsub.f32 %v2629, %v2637
        %v2640 = vsub.f32 %v2630, %v2638
        %v2641 = vmul.f32 %v2639, %v2639
        %v2642 = vmul.f32 %v2640, %v2640
        %2643 = vadd.xlane.f32.xlu0 %v2641
        %v2644 = vpop.xlane.xlu0 %2643
        %2645 = vadd.xlane.f32.xlu0 %v2642
        %v2646 = vpop.xlane.xlu0 %2645
        %v2647 = vmul.f32 %v2644, %v867
        %v2648 = vmul.f32 %v2646, %v867
        %v2649 = vadd.f32 %v2647, 1e-05
        %v2650 = vadd.f32 %v2648, 1e-05
        %v2651 = vrsqrt.pop %v2649
        %v2652 = vrsqrt.pop %v2650
        %v2653 = vmul.f32 %v2639, %v2651
        %v2654 = vmul.f32 %v2640, %v2652
        %v2656 = vlaneseq
        %v2657 = vshrl.u32 %v2656, 7
        %v2658 = vsub.s32 0, %v2657
        %v2659 = vrot.slane %v2631, %v2658
        %v2661 = vmul.f32 %v2653, %v2659
        %v2662 = vmul.f32 %v2654, %v2659
        %v2664 = vlaneseq
        %v2665 = vshrl.u32 %v2664, 7
        %v2666 = vsub.s32 0, %v2665
        %v2667 = vrot.slane %v2632, %v2666
        %v2669 = vadd.f32 %v2661, %v2667
        %v2670 = vadd.f32 %v2662, %v2667
        %v2671 = vpack.c.bf16 %v2670, %v2669
        %v2672 = vld [vmem:[%s738] sm:$0xff]
        %v2673 = vld [vmem:[%s738 + $0x8] sm:$0xff]
        %v2674 = vld [vmem:[%s738 + $0x10] sm:$0xff]
        %v2675 = vld [vmem:[%s738 + $0x18] sm:$0xff]
        %v2676 = vld [vmem:[%s738 + $0x20] sm:$0xff]
        %v2677 = vld [vmem:[%s738 + $0x28] sm:$0xff]
        %v2678 = vld [vmem:[%s738 + $0x30] sm:$0xff]
        %v2679 = vld [vmem:[%s738 + $0x38] sm:$0xff]
        %v2680 = vld [vmem:[%s738 + $0x40] sm:$0xff]
        %v2681 = vld [vmem:[%s738 + $0x48] sm:$0xff]
        %v2682 = vld [vmem:[%s738 + $0x50] sm:$0xff]
        %v2683 = vld [vmem:[%s738 + $0x58] sm:$0xff]
        %v2684 = vld [vmem:[%s738 + $0x60] sm:$0xff]
        %v2685 = vld [vmem:[%s738 + $0x68] sm:$0xff]
        %v2686 = vld [vmem:[%s738 + $0x70] sm:$0xff]
        %v2687 = vld [vmem:[%s738 + $0x78] sm:$0xff]
        %v2688 = vld [vmem:[%s738 + $0x80] sm:$0xff]
        %v2689 = vld [vmem:[%s738 + $0x88] sm:$0xff]
        %v2690 = vld [vmem:[%s738 + $0x90] sm:$0xff]
        %v2691 = vld [vmem:[%s738 + $0x98] sm:$0xff]
        %v2692 = vld [vmem:[%s738 + $0xa0] sm:$0xff]
        %v2693 = vld [vmem:[%s738 + $0xa8] sm:$0xff]
        %v2694 = vld [vmem:[%s738 + $0xb0] sm:$0xff]
        %v2695 = vld [vmem:[%s738 + $0xb8] sm:$0xff]
        %v2696 = vld [vmem:[%s738 + $0xc0] sm:$0xff]
        %v2697 = vld [vmem:[%s738 + $0xc8] sm:$0xff]
        %v2698 = vld [vmem:[%s738 + $0xd0] sm:$0xff]
        %v2699 = vld [vmem:[%s738 + $0xd8] sm:$0xff]
        %v2700 = vld [vmem:[%s738 + $0xe0] sm:$0xff]
        %v2701 = vld [vmem:[%s738 + $0xe8] sm:$0xff]
        %v2702 = vld [vmem:[%s738 + $0xf0] sm:$0xff]
        %v2703 = vld [vmem:[%s738 + $0xf8] sm:$0xff]
        %v2704 = vld [vmem:[%s846] sm:$0xf]
        %v2706 = vlaneseq
        %v2707 = vshrl.u32 %v2706, 7
        %v2708 = vsub.s32 0, %v2707
        %v2709 = vrot.slane %v2704, %v2708
        %v2710 = vlaneseq
        %v2711 = vshrl.u32 %v2710, 7
        %v2712 = vsub.s32 1, %v2711
        %v2713 = vrot.slane %v2704, %v2712
        %v2714 = vlaneseq
        %v2715 = vshrl.u32 %v2714, 7
        %v2716 = vsub.s32 2, %v2715
        %v2717 = vrot.slane %v2704, %v2716
        %v2718 = vlaneseq
        %v2719 = vshrl.u32 %v2718, 7
        %v2720 = vsub.s32 3, %v2719
        %v2721 = vrot.slane %v2704, %v2720
        %v2758 = vunpack.c.l.b16 %v2672
        %v2759 = vunpack.c.h.b16 %v2672
        %v2760 = vunpack.c.l.b16 %v2673
        %v2761 = vunpack.c.h.b16 %v2673
        %v2762 = vunpack.c.l.b16 %v2674
        %v2763 = vunpack.c.h.b16 %v2674
        %v2764 = vunpack.c.l.b16 %v2675
        %v2765 = vunpack.c.h.b16 %v2675
        %v2766 = vunpack.c.l.b16 %v2676
        %v2767 = vunpack.c.h.b16 %v2676
        %v2768 = vunpack.c.l.b16 %v2677
        %v2769 = vunpack.c.h.b16 %v2677
        %v2770 = vunpack.c.l.b16 %v2678
        %v2771 = vunpack.c.h.b16 %v2678
        %v2772 = vunpack.c.l.b16 %v2679
        %v2773 = vunpack.c.h.b16 %v2679
        %v2774 = vunpack.c.l.b16 %v2680
        %v2775 = vunpack.c.h.b16 %v2680
        %v2776 = vunpack.c.l.b16 %v2681
        %v2777 = vunpack.c.h.b16 %v2681
        %v2778 = vunpack.c.l.b16 %v2682
        %v2779 = vunpack.c.h.b16 %v2682
        %v2780 = vunpack.c.l.b16 %v2683
        %v2781 = vunpack.c.h.b16 %v2683
        %v2782 = vunpack.c.l.b16 %v2684
        %v2783 = vunpack.c.h.b16 %v2684
        %v2784 = vunpack.c.l.b16 %v2685
        %v2785 = vunpack.c.h.b16 %v2685
        %v2786 = vunpack.c.l.b16 %v2686
        %v2787 = vunpack.c.h.b16 %v2686
        %v2788 = vunpack.c.l.b16 %v2687
        %v2789 = vunpack.c.h.b16 %v2687
        %v2790 = vunpack.c.l.b16 %v2688
        %v2791 = vunpack.c.h.b16 %v2688
        %v2792 = vunpack.c.l.b16 %v2689
        %v2793 = vunpack.c.h.b16 %v2689
        %v2794 = vunpack.c.l.b16 %v2690
        %v2795 = vunpack.c.h.b16 %v2690
        %v2796 = vunpack.c.l.b16 %v2691
        %v2797 = vunpack.c.h.b16 %v2691
        %v2798 = vunpack.c.l.b16 %v2692
        %v2799 = vunpack.c.h.b16 %v2692
        %v2800 = vunpack.c.l.b16 %v2693
        %v2801 = vunpack.c.h.b16 %v2693
        %v2802 = vunpack.c.l.b16 %v2694
        %v2803 = vunpack.c.h.b16 %v2694
        %v2804 = vunpack.c.l.b16 %v2695
        %v2805 = vunpack.c.h.b16 %v2695
        %v2806 = vunpack.c.l.b16 %v2696
        %v2807 = vunpack.c.h.b16 %v2696
        %v2808 = vunpack.c.l.b16 %v2697
        %v2809 = vunpack.c.h.b16 %v2697
        %v2810 = vunpack.c.l.b16 %v2698
        %v2811 = vunpack.c.h.b16 %v2698
        %v2812 = vunpack.c.l.b16 %v2699
        %v2813 = vunpack.c.h.b16 %v2699
        %v2814 = vunpack.c.l.b16 %v2700
        %v2815 = vunpack.c.h.b16 %v2700
        %v2816 = vunpack.c.l.b16 %v2701
        %v2817 = vunpack.c.h.b16 %v2701
        %v2818 = vunpack.c.l.b16 %v2702
        %v2819 = vunpack.c.h.b16 %v2702
        %v2820 = vunpack.c.l.b16 %v2703
        %v2821 = vunpack.c.h.b16 %v2703
        %v2822 = vpack.c.b16 %v2762, %v2758
        %v2823 = vpack.c.b16 %v2763, %v2759
        %v2824 = vpack.c.b16 %v2764, %v2760
        %v2825 = vpack.c.b16 %v2765, %v2761
        %v2826 = vpack.c.b16 %v2770, %v2766
        %v2827 = vpack.c.b16 %v2771, %v2767
        %v2828 = vpack.c.b16 %v2772, %v2768
        %v2829 = vpack.c.b16 %v2773, %v2769
        %v2830 = vpack.c.b16 %v2778, %v2774
        %v2831 = vpack.c.b16 %v2779, %v2775
        %v2832 = vpack.c.b16 %v2780, %v2776
        %v2833 = vpack.c.b16 %v2781, %v2777
        %v2834 = vpack.c.b16 %v2786, %v2782
        %v2835 = vpack.c.b16 %v2787, %v2783
        %v2836 = vpack.c.b16 %v2788, %v2784
        %v2837 = vpack.c.b16 %v2789, %v2785
        %v2838 = vpack.c.b16 %v2794, %v2790
        %v2839 = vpack.c.b16 %v2795, %v2791
        %v2840 = vpack.c.b16 %v2796, %v2792
        %v2841 = vpack.c.b16 %v2797, %v2793
        %v2842 = vpack.c.b16 %v2802, %v2798
        %v2843 = vpack.c.b16 %v2803, %v2799
        %v2844 = vpack.c.b16 %v2804, %v2800
        %v2845 = vpack.c.b16 %v2805, %v2801
        %v2846 = vpack.c.b16 %v2810, %v2806
        %v2847 = vpack.c.b16 %v2811, %v2807
        %v2848 = vpack.c.b16 %v2812, %v2808
        %v2849 = vpack.c.b16 %v2813, %v2809
        %v2850 = vpack.c.b16 %v2818, %v2814
        %v2851 = vpack.c.b16 %v2819, %v2815
        %v2852 = vpack.c.b16 %v2820, %v2816
        %v2853 = vpack.c.b16 %v2821, %v2817
        %2886 = vmatprep.subr.bf16.mxu0 %v2851
        %2887 = vmatpush1.bf16.msra.mxu0 %v2850
        %2888 = vmatprep.subr.bf16.mxu0 %v2847
        %2889 = vmatpush1.bf16.msra.mxu0 %v2846
        %2890 = vmatprep.subr.bf16.mxu0 %v2843
        %2891 = vmatpush1.bf16.msra.mxu0 %v2842
        %2892 = vmatprep.subr.bf16.mxu0 %v2839
        %2893 = vmatpush1.bf16.msra.mxu0 %v2838
        %2894 = vmatprep.subr.bf16.mxu0 %v2835
        %2895 = vmatpush1.bf16.msra.mxu0 %v2834
        %2896 = vmatprep.subr.bf16.mxu0 %v2831
        %2897 = vmatpush1.bf16.msra.mxu0 %v2830
        %2898 = vmatprep.subr.bf16.mxu0 %v2827
        %2899 = vmatpush1.bf16.msra.mxu0 %v2826
        %2900 = vmatprep.subr.bf16.mxu0 %v2823
        %2901 = vmatpush1.bf16.msra.mxu0 %v2822
        %2902 = vmatprep.subr.bf16.mxu0 0
        %2903 = vmatpush2.bf16.msra.mxu0 0
        %2904 = vmatprep.subr.bf16.mxu0 0
        %2905 = vmatpush2.bf16.msra.mxu0 0
        %2906 = vmatprep.subr.bf16.mxu0 0
        %2907 = vmatpush2.bf16.msra.mxu0 0
        %2908 = vmatprep.subr.bf16.mxu0 0
        %2909 = vmatpush2.bf16.msra.mxu0 0
        %2910 = vmatprep.subr.bf16.mxu0 0
        %2911 = vmatpush2.bf16.msra.mxu0 0
        %2912 = vmatprep.subr.bf16.mxu0 0
        %2913 = vmatpush2.bf16.msra.mxu0 0
        %2914 = vmatprep.subr.bf16.mxu0 0
        %2915 = vmatpush2.bf16.msra.mxu0 0
        %2916 = vmatprep.subr.bf16.mxu0 0
        %2917 = vmatpush2.bf16.msra.mxu0 0
        %2918 = vmatprep.mubr.bf16.mxu0 0
        %2919 = vmatmul.mubr.bf16.gmra.mxu0 %v2671
        %v2920 = vpop.f32.mrf.mxu0
        %v2921 = vadd.f32 %v2709, %v2920
        %v2922 = vpop.f32.mrf.mxu0
        %v2923 = vadd.f32 %v2713, %v2922
        %v2924 = vpop.f32.mrf.mxu0
        %v2925 = vadd.f32 %v2709, %v2924
        %v2926 = vpop.f32.mrf.mxu0
        %v2927 = vadd.f32 %v2713, %v2926
        %2928 = vdwg.mxu0
        %2929 = vmatprep.subr.bf16.mxu0 %v2853
        %2930 = vmatpush1.bf16.msra.mxu0 %v2852
        %2931 = vmatprep.subr.bf16.mxu0 %v2849
        %2932 = vmatpush1.bf16.msra.mxu0 %v2848
        %2933 = vmatprep.subr.bf16.mxu0 %v2845
        %2934 = vmatpush1.bf16.msra.mxu0 %v2844
        %2935 = vmatprep.subr.bf16.mxu0 %v2841
        %2936 = vmatpush1.bf16.msra.mxu0 %v2840
        %2937 = vmatprep.subr.bf16.mxu0 %v2837
        %2938 = vmatpush1.bf16.msra.mxu0 %v2836
        %2939 = vmatprep.subr.bf16.mxu0 %v2833
        %2940 = vmatpush1.bf16.msra.mxu0 %v2832
        %2941 = vmatprep.subr.bf16.mxu0 %v2829
        %2942 = vmatpush1.bf16.msra.mxu0 %v2828
        %2943 = vmatprep.subr.bf16.mxu0 %v2825
        %2944 = vmatpush1.bf16.msra.mxu0 %v2824
        %2945 = vmatprep.subr.bf16.mxu0 0
        %2946 = vmatpush2.bf16.msra.mxu0 0
        %2947 = vmatprep.subr.bf16.mxu0 0
        %2948 = vmatpush2.bf16.msra.mxu0 0
        %2949 = vmatprep.subr.bf16.mxu0 0
        %2950 = vmatpush2.bf16.msra.mxu0 0
        %2951 = vmatprep.subr.bf16.mxu0 0
        %2952 = vmatpush2.bf16.msra.mxu0 0
        %2953 = vmatprep.subr.bf16.mxu0 0
        %2954 = vmatpush2.bf16.msra.mxu0 0
        %2955 = vmatprep.subr.bf16.mxu0 0
        %2956 = vmatpush2.bf16.msra.mxu0 0
        %2957 = vmatprep.subr.bf16.mxu0 0
        %2958 = vmatpush2.bf16.msra.mxu0 0
        %2959 = vmatprep.subr.bf16.mxu0 0
        %2960 = vmatpush2.bf16.msra.mxu0 0
        %2961 = vmatprep.mubr.bf16.mxu0 0
        %2962 = vmatmul.mubr.bf16.gmra.mxu0 %v2671
        %v2963 = vpop.f32.mrf.mxu0
        %v2964 = vadd.f32 %v2717, %v2963
        %v2965 = vpop.f32.mrf.mxu0
        %v2966 = vadd.f32 %v2721, %v2965
        %v2967 = vpop.f32.mrf.mxu0
        %v2968 = vadd.f32 %v2717, %v2967
        %v2969 = vpop.f32.mrf.mxu0
        %v2970 = vadd.f32 %v2721, %v2969
        %2971 = vdwg.mxu0
        %v2972 = vmul.f32 %v2921, 1.702
        %v2973 = vmul.f32 %v2923, 1.702
        %v2974 = vmul.f32 %v2964, 1.702
        %v2975 = vmul.f32 %v2966, 1.702
        %v2976 = vmul.f32 %v2925, 1.702
        %v2977 = vmul.f32 %v2927, 1.702
        %v2978 = vmul.f32 %v2968, 1.702
        %v2979 = vmul.f32 %v2970, 1.702
        %v2980 = vxor.u32 %v2972, 2147483648
        %v2981 = vxor.u32 %v2973, 2147483648
        %v2982 = vxor.u32 %v2974, 2147483648
        %v2983 = vxor.u32 %v2975, 2147483648
        %v2984 = vxor.u32 %v2976, 2147483648
        %v2985 = vxor.u32 %v2977, 2147483648
        %v2986 = vxor.u32 %v2978, 2147483648
        %v2987 = vxor.u32 %v2979, 2147483648
        %v2988 = vmul.f32 %v2980, 1.442695
        %v2989 = vpow.pop %v2988
        %v2990 = vmul.f32 %v2981, 1.442695
        %v2991 = vpow.pop %v2990
        %v2992 = vmul.f32 %v2982, 1.442695
        %v2993 = vpow.pop %v2992
        %v2994 = vmul.f32 %v2983, 1.442695
        %v2995 = vpow.pop %v2994
        %v2996 = vmul.f32 %v2984, 1.442695
        %v2997 = vpow.pop %v2996
        %v2998 = vmul.f32 %v2985, 1.442695
        %v2999 = vpow.pop %v2998
        %v3000 = vmul.f32 %v2986, 1.442695
        %v3001 = vpow.pop %v3000
        %v3002 = vmul.f32 %v2987, 1.442695
        %v3003 = vpow.pop %v3002
        %v3004 = vadd.f32 %v2989, 1.0
        %v3005 = vadd.f32 %v2991, 1.0
        %v3006 = vadd.f32 %v2993, 1.0
        %v3007 = vadd.f32 %v2995, 1.0
        %v3008 = vadd.f32 %v2997, 1.0
        %v3009 = vadd.f32 %v2999, 1.0
        %v3010 = vadd.f32 %v3001, 1.0
        %v3011 = vadd.f32 %v3003, 1.0
        %v3012 = vrcp.pop %v3004
        %v3013 = vmul.f32 1.0, %v3012
        %v3014 = vrcp.pop %v3005
        %v3015 = vmul.f32 1.0, %v3014
        %v3016 = vrcp.pop %v3006
        %v3017 = vmul.f32 1.0, %v3016
        %v3018 = vrcp.pop %v3007
        %v3019 = vmul.f32 1.0, %v3018
        %v3020 = vrcp.pop %v3008
        %v3021 = vmul.f32 1.0, %v3020
        %v3022 = vrcp.pop %v3009
        %v3023 = vmul.f32 1.0, %v3022
        %v3024 = vrcp.pop %v3010
        %v3025 = vmul.f32 1.0, %v3024
        %v3026 = vrcp.pop %v3011
        %v3027 = vmul.f32 1.0, %v3026
        %v3028 = vmul.f32 %v2921, %v3013
        %v3029 = vmul.f32 %v2923, %v3015
        %v3030 = vmul.f32 %v2964, %v3017
        %v3031 = vmul.f32 %v2966, %v3019
        %v3032 = vmul.f32 %v2925, %v3021
        %v3033 = vmul.f32 %v2927, %v3023
        %v3034 = vmul.f32 %v2968, %v3025
        %v3035 = vmul.f32 %v2970, %v3027
        %v3036 = vpack.c.bf16 %v3032, %v3028
        %v3037 = vpack.c.bf16 %v3033, %v3029
        %v3038 = vpack.c.bf16 %v3034, %v3030
        %v3039 = vpack.c.bf16 %v3035, %v3031
        %v3040 = vld [vmem:[%s747] sm:$0xf]
        %v3041 = vld [vmem:[%s747 + $0x4] sm:$0xf]
        %v3042 = vld [vmem:[%s747 + $0x8] sm:$0xf]
        %v3043 = vld [vmem:[%s747 + $0xc] sm:$0xf]
        %v3044 = vld [vmem:[%s747 + $0x10] sm:$0xf]
        %v3045 = vld [vmem:[%s747 + $0x14] sm:$0xf]
        %v3046 = vld [vmem:[%s747 + $0x18] sm:$0xf]
        %v3047 = vld [vmem:[%s747 + $0x1c] sm:$0xf]
        %v3048 = vld [vmem:[%s747 + $0x20] sm:$0xf]
        %v3049 = vld [vmem:[%s747 + $0x24] sm:$0xf]
        %v3050 = vld [vmem:[%s747 + $0x28] sm:$0xf]
        %v3051 = vld [vmem:[%s747 + $0x2c] sm:$0xf]
        %v3052 = vld [vmem:[%s747 + $0x30] sm:$0xf]
        %v3053 = vld [vmem:[%s747 + $0x34] sm:$0xf]
        %v3054 = vld [vmem:[%s747 + $0x38] sm:$0xf]
        %v3055 = vld [vmem:[%s747 + $0x3c] sm:$0xf]
        %v3056 = vld [vmem:[%s747 + $0x40] sm:$0xf]
        %v3057 = vld [vmem:[%s747 + $0x44] sm:$0xf]
        %v3058 = vld [vmem:[%s747 + $0x48] sm:$0xf]
        %v3059 = vld [vmem:[%s747 + $0x4c] sm:$0xf]
        %v3060 = vld [vmem:[%s747 + $0x50] sm:$0xf]
        %v3061 = vld [vmem:[%s747 + $0x54] sm:$0xf]
        %v3062 = vld [vmem:[%s747 + $0x58] sm:$0xf]
        %v3063 = vld [vmem:[%s747 + $0x5c] sm:$0xf]
        %v3064 = vld [vmem:[%s747 + $0x60] sm:$0xf]
        %v3065 = vld [vmem:[%s747 + $0x64] sm:$0xf]
        %v3066 = vld [vmem:[%s747 + $0x68] sm:$0xf]
        %v3067 = vld [vmem:[%s747 + $0x6c] sm:$0xf]
        %v3068 = vld [vmem:[%s747 + $0x70] sm:$0xf]
        %v3069 = vld [vmem:[%s747 + $0x74] sm:$0xf]
        %v3070 = vld [vmem:[%s747 + $0x78] sm:$0xf]
        %v3071 = vld [vmem:[%s747 + $0x7c] sm:$0xf]
        %v3072 = vld [vmem:[%s747 + $0x80] sm:$0xf]
        %v3073 = vld [vmem:[%s747 + $0x84] sm:$0xf]
        %v3074 = vld [vmem:[%s747 + $0x88] sm:$0xf]
        %v3075 = vld [vmem:[%s747 + $0x8c] sm:$0xf]
        %v3076 = vld [vmem:[%s747 + $0x90] sm:$0xf]
        %v3077 = vld [vmem:[%s747 + $0x94] sm:$0xf]
        %v3078 = vld [vmem:[%s747 + $0x98] sm:$0xf]
        %v3079 = vld [vmem:[%s747 + $0x9c] sm:$0xf]
        %v3080 = vld [vmem:[%s747 + $0xa0] sm:$0xf]
        %v3081 = vld [vmem:[%s747 + $0xa4] sm:$0xf]
        %v3082 = vld [vmem:[%s747 + $0xa8] sm:$0xf]
        %v3083 = vld [vmem:[%s747 + $0xac] sm:$0xf]
        %v3084 = vld [vmem:[%s747 + $0xb0] sm:$0xf]
        %v3085 = vld [vmem:[%s747 + $0xb4] sm:$0xf]
        %v3086 = vld [vmem:[%s747 + $0xb8] sm:$0xf]
        %v3087 = vld [vmem:[%s747 + $0xbc] sm:$0xf]
        %v3088 = vld [vmem:[%s747 + $0xc0] sm:$0xf]
        %v3089 = vld [vmem:[%s747 + $0xc4] sm:$0xf]
        %v3090 = vld [vmem:[%s747 + $0xc8] sm:$0xf]
        %v3091 = vld [vmem:[%s747 + $0xcc] sm:$0xf]
        %v3092 = vld [vmem:[%s747 + $0xd0] sm:$0xf]
        %v3093 = vld [vmem:[%s747 + $0xd4] sm:$0xf]
        %v3094 = vld [vmem:[%s747 + $0xd8] sm:$0xf]
        %v3095 = vld [vmem:[%s747 + $0xdc] sm:$0xf]
        %v3096 = vld [vmem:[%s747 + $0xe0] sm:$0xf]
        %v3097 = vld [vmem:[%s747 + $0xe4] sm:$0xf]
        %v3098 = vld [vmem:[%s747 + $0xe8] sm:$0xf]
        %v3099 = vld [vmem:[%s747 + $0xec] sm:$0xf]
        %v3100 = vld [vmem:[%s747 + $0xf0] sm:$0xf]
        %v3101 = vld [vmem:[%s747 + $0xf4] sm:$0xf]
        %v3102 = vld [vmem:[%s747 + $0xf8] sm:$0xf]
        %v3103 = vld [vmem:[%s747 + $0xfc] sm:$0xf]
        %v3104 = vld [vmem:[%s849] sm:$0x1]
        %v3106 = vlaneseq
        %v3107 = vshrl.u32 %v3106, 7
        %v3108 = vsub.s32 0, %v3107
        %v3109 = vrot.slane %v3104, %v3108
        %v3175 = vunpack.c.l.b16 %v3040
        %v3176 = vunpack.c.l.b16 %v3041
        %v3177 = vunpack.c.l.b16 %v3042
        %v3178 = vunpack.c.l.b16 %v3043
        %v3179 = vunpack.c.l.b16 %v3044
        %v3180 = vunpack.c.l.b16 %v3045
        %v3181 = vunpack.c.l.b16 %v3046
        %v3182 = vunpack.c.l.b16 %v3047
        %v3183 = vunpack.c.l.b16 %v3048
        %v3184 = vunpack.c.l.b16 %v3049
        %v3185 = vunpack.c.l.b16 %v3050
        %v3186 = vunpack.c.l.b16 %v3051
        %v3187 = vunpack.c.l.b16 %v3052
        %v3188 = vunpack.c.l.b16 %v3053
        %v3189 = vunpack.c.l.b16 %v3054
        %v3190 = vunpack.c.l.b16 %v3055
        %v3191 = vunpack.c.l.b16 %v3056
        %v3192 = vunpack.c.l.b16 %v3057
        %v3193 = vunpack.c.l.b16 %v3058
        %v3194 = vunpack.c.l.b16 %v3059
        %v3195 = vunpack.c.l.b16 %v3060
        %v3196 = vunpack.c.l.b16 %v3061
        %v3197 = vunpack.c.l.b16 %v3062
        %v3198 = vunpack.c.l.b16 %v3063
        %v3199 = vunpack.c.l.b16 %v3064
        %v3200 = vunpack.c.l.b16 %v3065
        %v3201 = vunpack.c.l.b16 %v3066
        %v3202 = vunpack.c.l.b16 %v3067
        %v3203 = vunpack.c.l.b16 %v3068
        %v3204 = vunpack.c.l.b16 %v3069
        %v3205 = vunpack.c.l.b16 %v3070
        %v3206 = vunpack.c.l.b16 %v3071
        %v3207 = vunpack.c.l.b16 %v3072
        %v3208 = vunpack.c.l.b16 %v3073
        %v3209 = vunpack.c.l.b16 %v3074
        %v3210 = vunpack.c.l.b16 %v3075
        %v3211 = vunpack.c.l.b16 %v3076
        %v3212 = vunpack.c.l.b16 %v3077
        %v3213 = vunpack.c.l.b16 %v3078
        %v3214 = vunpack.c.l.b16 %v3079
        %v3215 = vunpack.c.l.b16 %v3080
        %v3216 = vunpack.c.l.b16 %v3081
        %v3217 = vunpack.c.l.b16 %v3082
        %v3218 = vunpack.c.l.b16 %v3083
        %v3219 = vunpack.c.l.b16 %v3084
        %v3220 = vunpack.c.l.b16 %v3085
        %v3221 = vunpack.c.l.b16 %v3086
        %v3222 = vunpack.c.l.b16 %v3087
        %v3223 = vunpack.c.l.b16 %v3088
        %v3224 = vunpack.c.l.b16 %v3089
        %v3225 = vunpack.c.l.b16 %v3090
        %v3226 = vunpack.c.l.b16 %v3091
        %v3227 = vunpack.c.l.b16 %v3092
        %v3228 = vunpack.c.l.b16 %v3093
        %v3229 = vunpack.c.l.b16 %v3094
        %v3230 = vunpack.c.l.b16 %v3095
        %v3231 = vunpack.c.l.b16 %v3096
        %v3232 = vunpack.c.l.b16 %v3097
        %v3233 = vunpack.c.l.b16 %v3098
        %v3234 = vunpack.c.l.b16 %v3099
        %v3235 = vunpack.c.l.b16 %v3100
        %v3236 = vunpack.c.l.b16 %v3101
        %v3237 = vunpack.c.l.b16 %v3102
        %v3238 = vunpack.c.l.b16 %v3103
        %v3239 = vpack.c.b16 %v3176, %v3175
        %v3240 = vpack.c.b16 %v3178, %v3177
        %v3241 = vpack.c.b16 %v3180, %v3179
        %v3242 = vpack.c.b16 %v3182, %v3181
        %v3243 = vpack.c.b16 %v3184, %v3183
        %v3244 = vpack.c.b16 %v3186, %v3185
        %v3245 = vpack.c.b16 %v3188, %v3187
        %v3246 = vpack.c.b16 %v3190, %v3189
        %v3247 = vpack.c.b16 %v3192, %v3191
        %v3248 = vpack.c.b16 %v3194, %v3193
        %v3249 = vpack.c.b16 %v3196, %v3195
        %v3250 = vpack.c.b16 %v3198, %v3197
        %v3251 = vpack.c.b16 %v3200, %v3199
        %v3252 = vpack.c.b16 %v3202, %v3201
        %v3253 = vpack.c.b16 %v3204, %v3203
        %v3254 = vpack.c.b16 %v3206, %v3205
        %v3255 = vpack.c.b16 %v3208, %v3207
        %v3256 = vpack.c.b16 %v3210, %v3209
        %v3257 = vpack.c.b16 %v3212, %v3211
        %v3258 = vpack.c.b16 %v3214, %v3213
        %v3259 = vpack.c.b16 %v3216, %v3215
        %v3260 = vpack.c.b16 %v3218, %v3217
        %v3261 = vpack.c.b16 %v3220, %v3219
        %v3262 = vpack.c.b16 %v3222, %v3221
        %v3263 = vpack.c.b16 %v3224, %v3223
        %v3264 = vpack.c.b16 %v3226, %v3225
        %v3265 = vpack.c.b16 %v3228, %v3227
        %v3266 = vpack.c.b16 %v3230, %v3229
        %v3267 = vpack.c.b16 %v3232, %v3231
        %v3268 = vpack.c.b16 %v3234, %v3233
        %v3269 = vpack.c.b16 %v3236, %v3235
        %v3270 = vpack.c.b16 %v3238, %v3237
        %3303 = vmatprep.subr.bf16.mxu0 0
        %3304 = vmatpush1.bf16.msra.mxu0 %v3246
        %3305 = vmatprep.subr.bf16.mxu0 0
        %3306 = vmatpush1.bf16.msra.mxu0 %v3245
        %3307 = vmatprep.subr.bf16.mxu0 0
        %3308 = vmatpush1.bf16.msra.mxu0 %v3244
        %3309 = vmatprep.subr.bf16.mxu0 0
        %3310 = vmatpush1.bf16.msra.mxu0 %v3243
        %3311 = vmatprep.subr.bf16.mxu0 0
        %3312 = vmatpush1.bf16.msra.mxu0 %v3242
        %3313 = vmatprep.subr.bf16.mxu0 0
        %3314 = vmatpush1.bf16.msra.mxu0 %v3241
        %3315 = vmatprep.subr.bf16.mxu0 0
        %3316 = vmatpush1.bf16.msra.mxu0 %v3240
        %3317 = vmatprep.subr.bf16.mxu0 0
        %3318 = vmatpush1.bf16.msra.mxu0 %v3239
        %3319 = vmatprep.subr.bf16.mxu0 0
        %3320 = vmatpush2.bf16.msra.mxu0 %v3254
        %3321 = vmatprep.subr.bf16.mxu0 0
        %3322 = vmatpush2.bf16.msra.mxu0 %v3253
        %3323 = vmatprep.subr.bf16.mxu0 0
        %3324 = vmatpush2.bf16.msra.mxu0 %v3252
        %3325 = vmatprep.subr.bf16.mxu0 0
        %3326 = vmatpush2.bf16.msra.mxu0 %v3251
        %3327 = vmatprep.subr.bf16.mxu0 0
        %3328 = vmatpush2.bf16.msra.mxu0 %v3250
        %3329 = vmatprep.subr.bf16.mxu0 0
        %3330 = vmatpush2.bf16.msra.mxu0 %v3249
        %3331 = vmatprep.subr.bf16.mxu0 0
        %3332 = vmatpush2.bf16.msra.mxu0 %v3248
        %3333 = vmatprep.subr.bf16.mxu0 0
        %3334 = vmatpush2.bf16.msra.mxu0 %v3247
        %3335 = vmatprep.mubr.bf16.mxu0 %v3037
        %3336 = vmatmul.mubr.bf16.gmra.mxu0 %v3036
        %v3337 = vpop.f32.mrf.mxu0
        %v3338 = vadd.f32 %v3109, %v3337
        %v3339 = vpop.f32.mrf.mxu0
        %v3340 = vpop.f32.mrf.mxu0
        %v3341 = vadd.f32 %v3109, %v3340
        %v3342 = vpop.f32.mrf.mxu0
        %3343 = vdwg.mxu0
        %3344 = vmatprep.subr.bf16.mxu0 0
        %3345 = vmatpush1.bf16.msra.mxu0 %v3262
        %3346 = vmatprep.subr.bf16.mxu0 0
        %3347 = vmatpush1.bf16.msra.mxu0 %v3261
        %3348 = vmatprep.subr.bf16.mxu0 0
        %3349 = vmatpush1.bf16.msra.mxu0 %v3260
        %3350 = vmatprep.subr.bf16.mxu0 0
        %3351 = vmatpush1.bf16.msra.mxu0 %v3259
        %3352 = vmatprep.subr.bf16.mxu0 0
        %3353 = vmatpush1.bf16.msra.mxu0 %v3258
        %3354 = vmatprep.subr.bf16.mxu0 0
        %3355 = vmatpush1.bf16.msra.mxu0 %v3257
        %3356 = vmatprep.subr.bf16.mxu0 0
        %3357 = vmatpush1.bf16.msra.mxu0 %v3256
        %3358 = vmatprep.subr.bf16.mxu0 0
        %3359 = vmatpush1.bf16.msra.mxu0 %v3255
        %3360 = vmatprep.subr.bf16.mxu0 0
        %3361 = vmatpush2.bf16.msra.mxu0 %v3270
        %3362 = vmatprep.subr.bf16.mxu0 0
        %3363 = vmatpush2.bf16.msra.mxu0 %v3269
        %3364 = vmatprep.subr.bf16.mxu0 0
        %3365 = vmatpush2.bf16.msra.mxu0 %v3268
        %3366 = vmatprep.subr.bf16.mxu0 0
        %3367 = vmatpush2.bf16.msra.mxu0 %v3267
        %3368 = vmatprep.subr.bf16.mxu0 0
        %3369 = vmatpush2.bf16.msra.mxu0 %v3266
        %3370 = vmatprep.subr.bf16.mxu0 0
        %3371 = vmatpush2.bf16.msra.mxu0 %v3265
        %3372 = vmatprep.subr.bf16.mxu0 0
        %3373 = vmatpush2.bf16.msra.mxu0 %v3264
        %3374 = vmatprep.subr.bf16.mxu0 0
        %3375 = vmatpush2.bf16.msra.mxu0 %v3263
        %3376 = vmatprep.mubr.bf16.mxu0 %v3039
        %3377 = vmatmul.mubr.bf16.gmra.mxu0 %v3038
        %v3378 = vpop.f32.mrf.mxu0
        %v3379 = vadd.f32 %v3338, %v3378
        %v3380 = vpop.f32.mrf.mxu0
        %v3381 = vpop.f32.mrf.mxu0
        %v3382 = vadd.f32 %v3341, %v3381
        %v3383 = vpop.f32.mrf.mxu0
        %3384 = vdwg.mxu0
        %v3385 = vadd.f32 %v2629, %v3379
        %v3386 = vadd.f32 %v2630, %v3382
        %p3387 = scmp.ne.s32.totalorder %s30, 1
        // Predicated region
        $region129: #{tpu_custom_call.1} parent=83 // pred_check
          %p3388 = pneg %p3387
        $region130: #{tpu_custom_call.1} parent=83 // pred_check_branch
          %3390 = sbr.rel (%p3388) target = $region132
        $region131: #{tpu_custom_call.1} parent=83 // pred_region
          %3391 = vst [vmem:[#allocation16] sm:$0xff] %v3385
          %3392 = vst [vmem:[#allocation16 + $0x8] sm:$0xff] %v3386
        $region132: #{tpu_custom_call.1} parent=83 // pred_fallthru
          _
        %p3393 = scmp.eq.s32.totalorder %s30, 1
        // Predicated region
        $region133: #{tpu_custom_call.1} parent=83 // pred_check
          %p3394 = pneg %p3393
        $region134: #{tpu_custom_call.1} parent=83 // pred_check_branch
          %3396 = sbr.rel (%p3394) target = $region136
        $region135: #{tpu_custom_call.1} parent=83 // pred_region
          %v3397 = vld [vmem:[%s14] sm:$0x1]
          %v3398 = vld [vmem:[%s15] sm:$0x1]
          %3399 = vadd.xlane.f32.xlu0 %v3385
          %v3400 = vpop.xlane.xlu0 %3399
          %3401 = vadd.xlane.f32.xlu0 %v3386
          %v3402 = vpop.xlane.xlu0 %3401
          %v3403 = vmul.f32 %v3400, %v867
          %v3404 = vmul.f32 %v3402, %v867
          %v3405 = vsub.f32 %v3385, %v3403
          %v3406 = vsub.f32 %v3386, %v3404
          %v3407 = vmul.f32 %v3405, %v3405
          %v3408 = vmul.f32 %v3406, %v3406
          %3409 = vadd.xlane.f32.xlu0 %v3407
          %v3410 = vpop.xlane.xlu0 %3409
          %3411 = vadd.xlane.f32.xlu0 %v3408
          %v3412 = vpop.xlane.xlu0 %3411
          %v3413 = vmul.f32 %v3410, %v867
          %v3414 = vmul.f32 %v3412, %v867
          %v3415 = vadd.f32 %v3413, 1e-05
          %v3416 = vadd.f32 %v3414, 1e-05
          %v3417 = vrsqrt.pop %v3415
          %v3418 = vrsqrt.pop %v3416
          %v3419 = vmul.f32 %v3405, %v3417
          %v3420 = vmul.f32 %v3406, %v3418
          %v3422 = vlaneseq
          %v3423 = vshrl.u32 %v3422, 7
          %v3424 = vsub.s32 0, %v3423
          %v3425 = vrot.slane %v3397, %v3424
          %v3427 = vmul.f32 %v3419, %v3425
          %v3428 = vmul.f32 %v3420, %v3425
          %v3430 = vlaneseq
          %v3431 = vshrl.u32 %v3430, 7
          %v3432 = vsub.s32 0, %v3431
          %v3433 = vrot.slane %v3398, %v3432
          %v3435 = vadd.f32 %v3427, %v3433
          %v3436 = vadd.f32 %v3428, %v3433
          %3437 = vst [vmem:[#allocation16] sm:$0xff] %v3435
          %3438 = vst [vmem:[#allocation16 + $0x8] sm:$0xff] %v3436
        $region136: #{tpu_custom_call.1} parent=83 // pred_fallthru
          _
        // Predicated region
        $region137: #{tpu_custom_call.1} parent=83 // pred_check
          %p3439 = pneg %p439
        $region138: #{tpu_custom_call.1} parent=83 // pred_check_branch
          %3441 = sbr.rel (%p3439) target = $region140
        $region139: #{tpu_custom_call.1} parent=83 // pred_region
          %s3443 = ssub.s32 256, 256
          %3444 = vsyncadd [#allocation5], %s3443
          %s3445 = sshll.u32 [#allocation16], 4
          %s3446 = int_to_ptr.vmem [resolvable:$true] %s3445
          %3451 = dma.vmem_to_hbm [thread:$0]  %s3446, 256, %s16, [#allocation5], 128, 128, 8
        $region140: #{tpu_custom_call.1} parent=83 // pred_fallthru
          _
        // Predicated region
        $region141: #{tpu_custom_call.1} parent=83 // pred_check
          %p3452 = pneg %p439
        $region142: #{tpu_custom_call.1} parent=83 // pred_check_branch
          %3454 = sbr.rel (%p3452) target = $region144
        $region143: #{tpu_custom_call.1} parent=83 // pred_region
          %3455 = dma.done [#allocation5], 256
        $region144: #{tpu_custom_call.1} parent=83 // pred_fallthru
          _
      $region84: #{tpu_custom_call.1} parent=5 // pred_fallthru
        _
      %p3456 = scmp.le.s32.totalorder 2, %s25
      // Predicated region
      $region145: #{tpu_custom_call.1} parent=5 // pred_check
        %p3457 = pneg %p3456
      $region146: #{tpu_custom_call.1} parent=5 // pred_check_branch
        %3459 = sbr.rel (%p3457) target = $region148
      $region147: #{tpu_custom_call.1} parent=5 // pred_region
        %s3460 = ssub.s32 %s25, 2
      $region148: #{tpu_custom_call.1} parent=5 // pred_fallthru
        _
    $region6: #{tpu_custom_call.1} parent=1 // loop_footer
      %s29 = sadd.s32 1, %s25
    $region7: #{tpu_custom_call.1} parent=1 // loop_footer_branch
      %24 = sbr.rel target = $region3
    $region8: #{tpu_custom_call.1} parent=1 // loop_exit
      _
    %3461 = vsyncpa [#allocation4], 1
    %s3462 = scalar_lea.sflag [#allocation4], 1
    %3463 = vsyncpa %s3462, 1
    %3464 = vsyncpa [#allocation7], 1
    %3465 = vsyncpa [#allocation5], 1
    %s3466 = scalar_lea.sflag [#allocation5], 1
    %3467 = vsyncpa %s3466, 1

</llo_original>
